<compile_context>
chip_gen: v5e
topology: v5e:2x2
jax: 0.10.0
libtpu: 0.0.40
codegen_flags: <defaults>
</compile_context>

<pallas_src>
import numpy as np

import jax
import jax.numpy as jnp
from jax.experimental import pallas as pl
from jax.experimental.pallas import tpu as pltpu


_MAX_BB = 256   # batch rows presented to the MXU per grid step


# ------------------------------ fused kernel ------------------------------- #

def _lenet8_kernel(x_ref, w1_ref, b1_ref, w2_ref, b2_ref,
                   f1_ref, g1_ref, f2_ref, g2_ref, f3_ref, g3_ref,
                   f4_ref, g4_ref, f5_ref, g5_ref, out_ref):
    """Whole LeNet8 forward for one batch block, fully VMEM-resident."""
    x = x_ref[...].astype(jnp.bfloat16)                               # (bb, 64)

    # conv1 + bias + ReLU (dense matmul, pool-group-major output layout).
    a1 = jnp.dot(x, w1_ref[...], preferred_element_type=jnp.float32)
    a1 = jnp.maximum(a1 + b1_ref[...], 0.0)                           # (bb, 1024)

    # 2x2/2 max pool == elementwise max of the four window-offset groups
    # (contiguous 256-lane slices by construction of w1).
    p = jnp.maximum(jnp.maximum(a1[:, 0:256], a1[:, 256:512]),
                    jnp.maximum(a1[:, 512:768], a1[:, 768:1024]))     # (bb, 256)

    # conv2 + bias + ReLU (single K=256 matmul, output NHWC(5,5,64)).
    a2 = jnp.dot(p.astype(jnp.bfloat16), w2_ref[...],
                 preferred_element_type=jnp.float32)
    h = jnp.maximum(a2 + b2_ref[...], 0.0)                            # (bb, 1600)

    # fc1 (with 2x2 avgpool + NCHW flatten folded into its weight) .. fc4.
    for w_ref, g_ref in ((f1_ref, g1_ref), (f2_ref, g2_ref),
                         (f3_ref, g3_ref), (f4_ref, g4_ref)):
        h = jnp.dot(h.astype(jnp.bfloat16), w_ref[...],
                    preferred_element_type=jnp.float32) + g_ref[...]
        h = jnp.maximum(h, 0.0)

    # fc5 + sigmoid.
    logits = jnp.dot(h.astype(jnp.bfloat16), f5_ref[...],
                     preferred_element_type=jnp.float32) + g5_ref[...]
    out_ref[...] = jax.nn.sigmoid(logits)                             # (bb, 1)


# --------------------------- host-side preparation ------------------------- #

def prepare_params(params):
    """One-time weight preprocessing (outside jit, host numpy).

    * conv1 -> dense (64, 1024): column = (dh*2+dw)*256 + (ho*4+wo)*16 + c
      for output pixel (h, w) = (2ho+dh, 2wo+dw), so the in-kernel maxpool
      is a max over 4 contiguous 256-lane groups.
    * conv2 -> dense (256, 1600): rows = pooled NHWC(4,4,16) input features,
      columns = NHWC(5,5,64) conv2 outputs (padding baked in).
    * fc1 absorbs the 2x2 avgpool (floor mode) and PyTorch's NCHW flatten:
      (1600, 512).
    * fc2..fc5 transposed to (in, out).
    * Matmul weights cast to bf16 (native MXU dtype); biases stay f32.
    """
    p = {k: np.asarray(v, np.float32) for k, v in params.items()}

    # conv1: (16, 1, 3, 3), 8x8 input, pad 1 -> 8x8x16 output.
    W1 = np.zeros((64, 1024), np.float32)
    b1 = np.zeros((1024,), np.float32)
    for h in range(8):
        for w in range(8):
            col = ((h % 2) * 2 + (w % 2)) * 256 + ((h // 2) * 4 + (w // 2)) * 16
            b1[col:col + 16] = p["conv1_b"]
            for ky in range(3):
                for kx in range(3):
                    hi, wi = h + ky - 1, w + kx - 1
                    if 0 <= hi < 8 and 0 <= wi < 8:
                        W1[hi * 8 + wi, col:col + 16] += p["conv1_w"][:, 0, ky, kx]

    # conv2: (64, 16, 2, 2), 4x4 NHWC input, pad 1 -> 5x5x64 NHWC output.
    W2 = np.zeros((256, 1600), np.float32)
    b2 = np.zeros((1600,), np.float32)
    for ho in range(5):
        for wo in range(5):
            col = (ho * 5 + wo) * 64
            b2[col:col + 64] = p["conv2_b"]
            for ky in range(2):
                for kx in range(2):
                    hi, wi = ho + ky - 1, wo + kx - 1
                    if 0 <= hi < 4 and 0 <= wi < 4:
                        row = (hi * 4 + wi) * 16
                        W2[row:row + 16, col:col + 64] += p["conv2_w"][:, :, ky, kx].T

    # fc1 (512, 256) with avgpool(2x2, floor) + NCHW flatten folded in.
    F1 = np.zeros((1600, 512), np.float32)
    for h in range(4):
        for w in range(4):
            row = (h * 5 + w) * 64
            k = np.arange(64) * 4 + (h // 2) * 2 + (w // 2)
            F1[row:row + 64, :] = 0.25 * p["fc1_w"][:, k].T

    def mx(a):      # MXU operand
        return jnp.asarray(a, jnp.bfloat16)

    def bias(a):
        return jnp.asarray(a, jnp.float32).reshape(1, -1)

    return {
        "w1": mx(W1), "b1": bias(b1),
        "w2": mx(W2), "b2": bias(b2),
        "f1": mx(F1),            "g1": bias(p["fc1_b"]),
        "f2": mx(p["fc2_w"].T),  "g2": bias(p["fc2_b"]),
        "f3": mx(p["fc3_w"].T),  "g3": bias(p["fc3_b"]),
        "f4": mx(p["fc4_w"].T),  "g4": bias(p["fc4_b"]),
        "f5": mx(p["fc5_w"].T),  "g5": bias(p["fc5_b"]),
    }


@jax.jit
def lenet8_forward(x_nchw, prep):
    B = x_nchw.shape[0]
    assert x_nchw.shape[1:] == (1, 8, 8), x_nchw.shape

    # Batch block: fills the 256-row MXU on v6e/v7x (and fully feeds v5e's
    # 128-row MXU).  Non-multiple batches are zero-padded and sliced off;
    # for B > 256 the grid has >= 2 steps so v7x's second TensorCore gets
    # work via the "parallel" axis.
    bb = B if B <= _MAX_BB else _MAX_BB
    n_blocks = -(-B // bb)
    Bp = n_blocks * bb

    # Layout-preserving flatten: (B, 1, 8, 8) -> (B, 64); lane index = h*8+w.
    x = x_nchw.astype(jnp.float32).reshape(B, 64)
    if Bp != B:
        x = jnp.pad(x, ((0, Bp - B), (0, 0)))

    names = ["w1", "b1", "w2", "b2",
             "f1", "g1", "f2", "g2", "f3", "g3", "f4", "g4", "f5", "g5"]
    weights = [prep[n] for n in names]

    in_specs = [pl.BlockSpec((bb, 64), lambda i: (i, 0))]
    in_specs += [pl.BlockSpec(w.shape, lambda i: (0, 0)) for w in weights]

    out = pl.pallas_call(
        _lenet8_kernel,
        out_shape=jax.ShapeDtypeStruct((Bp, 1), jnp.float32),
        grid_spec=pltpu.PrefetchScalarGridSpec(
            num_scalar_prefetch=0,
            grid=(n_blocks,),
            in_specs=in_specs,
            out_specs=pl.BlockSpec((bb, 1), lambda i: (i, 0)),
        ),
        compiler_params=pltpu.CompilerParams(
            dimension_semantics=("parallel",)),
    )(x, *weights)
    return out[:B]


# ------------------------------ params / reference ------------------------- #

def init_params(key):
    ks = jax.random.split(key, 14)
    s = 0.1
    return {
        "conv1_w": s * jax.random.normal(ks[0], (16, 1, 3, 3), jnp.float32),
        "conv1_b": s * jax.random.normal(ks[1], (16,), jnp.float32),
        "conv2_w": s * jax.random.normal(ks[2], (64, 16, 2, 2), jnp.float32),
        "conv2_b": s * jax.random.normal(ks[3], (64,), jnp.float32),
        "fc1_w": s * jax.random.normal(ks[4], (512, 256), jnp.float32),
        "fc1_b": s * jax.random.normal(ks[5], (512,), jnp.float32),
        "fc2_w": s * jax.random.normal(ks[6], (512, 512), jnp.float32),
        "fc2_b": s * jax.random.normal(ks[7], (512,), jnp.float32),
        "fc3_w": s * jax.random.normal(ks[8], (256, 512), jnp.float32),
        "fc3_b": s * jax.random.normal(ks[9], (256,), jnp.float32),
        "fc4_w": s * jax.random.normal(ks[10], (128, 256), jnp.float32),
        "fc4_b": s * jax.random.normal(ks[11], (128,), jnp.float32),
        "fc5_w": s * jax.random.normal(ks[12], (1, 128), jnp.float32),
        "fc5_b": s * jax.random.normal(ks[13], (1,), jnp.float32),
    }


def lenet8_reference(x, params):
    """Pure-JAX eval-mode reference mirroring the PyTorch module."""
    dn = ("NCHW", "OIHW", "NCHW")
    hi = jax.lax.Precision.HIGHEST
    y = jax.lax.conv_general_dilated(x, params["conv1_w"], (1, 1),
                                     ((1, 1), (1, 1)), dimension_numbers=dn,
                                     precision=hi)
    y = jax.nn.relu(y + params["conv1_b"][None, :, None, None])
    y = jax.lax.reduce_window(y, -jnp.inf, jax.lax.max,
                              (1, 1, 2, 2), (1, 1, 2, 2), "VALID")
    y = jax.lax.conv_general_dilated(y, params["conv2_w"], (1, 1),
                                     ((1, 1), (1, 1)), dimension_numbers=dn,
                                     precision=hi)
    y = jax.nn.relu(y + params["conv2_b"][None, :, None, None])
    y = jax.lax.reduce_window(y, 0.0, jax.lax.add,
                              (1, 1, 2, 2), (1, 1, 2, 2), "VALID") / 4.0
    y = y.reshape(y.shape[0], -1)
    for i in range(1, 5):
        y = jnp.dot(y, params[f"fc{i}_w"].T, precision=hi) + params[f"fc{i}_b"]
        y = jax.nn.relu(y)
    y = jnp.dot(y, params["fc5_w"].T, precision=hi) + params["fc5_b"]
    return jax.nn.sigmoid(y)


if __name__ == "__main__":
    key = jax.random.PRNGKey(0)
    kx, kp = jax.random.split(key)
    # 8x8 single-channel input so the flatten sees 64*2*2 = 256 features,
    # exactly as nn.Linear(64*2*2, 512) requires.
    x = jax.random.normal(kx, (2, 1, 8, 8), jnp.float32)   # NCHW, like PyTorch
    params = init_params(kp)
    prep = prepare_params(params)      # one-time, outside jit

    out = lenet8_forward(x, prep)
    out = jax.block_until_ready(out)

    ref = lenet8_reference(x, params)
    assert out.shape == (2, 1), out.shape
    # bf16 MXU operands / f32 accumulation vs a HIGHEST-precision reference.
    assert jnp.allclose(out, ref, atol=1e-2, rtol=1e-2), (out, ref)
    print("KERNEL_OK")
</pallas_src>

<mosaic_0001>
module attributes {stable_mosaic.version = 11 : i64} {
  func.func @_lenet8_kernel(%arg0: i32, %arg1: memref<2x64xf32, #tpu.memory_space<vmem>>, %arg2: memref<64x1024xbf16, #tpu.memory_space<vmem>>, %arg3: memref<1x1024xf32, #tpu.memory_space<vmem>>, %arg4: memref<256x1600xbf16, #tpu.memory_space<vmem>>, %arg5: memref<1x1600xf32, #tpu.memory_space<vmem>>, %arg6: memref<1600x512xbf16, #tpu.memory_space<vmem>>, %arg7: memref<1x512xf32, #tpu.memory_space<vmem>>, %arg8: memref<512x512xbf16, #tpu.memory_space<vmem>>, %arg9: memref<1x512xf32, #tpu.memory_space<vmem>>, %arg10: memref<512x256xbf16, #tpu.memory_space<vmem>>, %arg11: memref<1x256xf32, #tpu.memory_space<vmem>>, %arg12: memref<256x128xbf16, #tpu.memory_space<vmem>>, %arg13: memref<1x128xf32, #tpu.memory_space<vmem>>, %arg14: memref<128x1xbf16, #tpu.memory_space<vmem>>, %arg15: memref<1x1xf32, #tpu.memory_space<vmem>>, %arg16: memref<2x1xf32, #tpu.memory_space<vmem>>) attributes {dimension_semantics = [#tpu.dimension_semantics<parallel>], iteration_bounds = array<i64: 1>, scalar_prefetch = 0 : i64, scratch_operands = 0 : i64, tpu.core_type = #tpu.core_type<tc>, window_params = [{transform_indices = @transform_0, window_bounds = array<i64: 2, 64>}, {pipeline_mode = #tpu.pipeline_mode<synchronous>, transform_indices = @transform_1, window_bounds = array<i64: 64, 1024>}, {pipeline_mode = #tpu.pipeline_mode<synchronous>, transform_indices = @transform_2, window_bounds = array<i64: 1, 1024>}, {pipeline_mode = #tpu.pipeline_mode<synchronous>, transform_indices = @transform_3, window_bounds = array<i64: 256, 1600>}, {pipeline_mode = #tpu.pipeline_mode<synchronous>, transform_indices = @transform_4, window_bounds = array<i64: 1, 1600>}, {pipeline_mode = #tpu.pipeline_mode<synchronous>, transform_indices = @transform_5, window_bounds = array<i64: 1600, 512>}, {pipeline_mode = #tpu.pipeline_mode<synchronous>, transform_indices = @transform_6, window_bounds = array<i64: 1, 512>}, {pipeline_mode = #tpu.pipeline_mode<synchronous>, transform_indices = @transform_7, window_bounds = array<i64: 512, 512>}, {pipeline_mode = #tpu.pipeline_mode<synchronous>, transform_indices = @transform_8, window_bounds = array<i64: 1, 512>}, {pipeline_mode = #tpu.pipeline_mode<synchronous>, transform_indices = @transform_9, window_bounds = array<i64: 512, 256>}, {pipeline_mode = #tpu.pipeline_mode<synchronous>, transform_indices = @transform_10, window_bounds = array<i64: 1, 256>}, {pipeline_mode = #tpu.pipeline_mode<synchronous>, transform_indices = @transform_11, window_bounds = array<i64: 256, 128>}, {pipeline_mode = #tpu.pipeline_mode<synchronous>, transform_indices = @transform_12, window_bounds = array<i64: 1, 128>}, {pipeline_mode = #tpu.pipeline_mode<synchronous>, transform_indices = @transform_13, window_bounds = array<i64: 128, 1>}, {pipeline_mode = #tpu.pipeline_mode<synchronous>, transform_indices = @transform_14, window_bounds = array<i64: 1, 1>}, {transform_indices = @transform_15, window_bounds = array<i64: 2, 1>}]} {
    %c0 = arith.constant 0 : index
    %c0_0 = arith.constant 0 : index
    %0 = vector.load %arg1[%c0, %c0_0] : memref<2x64xf32, #tpu.memory_space<vmem>>, vector<2x64xf32>
    %1 = arith.truncf %0 : vector<2x64xf32> to vector<2x64xbf16>
    %c0_1 = arith.constant 0 : index
    %c0_2 = arith.constant 0 : index
    %2 = vector.load %arg2[%c0_1, %c0_2] : memref<64x1024xbf16, #tpu.memory_space<vmem>>, vector<64x1024xbf16>
    %cst = arith.constant dense<0.000000e+00> : vector<2x1024xf32>
    %3 = tpu.matmul %1, %2, %cst {dimension_numbers = #tpu.dot_dimension_numbers<[1], [0], [0], [1], [0, 0, 1, 1], [], []>} : vector<2x64xbf16>, vector<64x1024xbf16>, vector<2x1024xf32> -> vector<2x1024xf32>
    %c0_3 = arith.constant 0 : index
    %c0_4 = arith.constant 0 : index
    %4 = vector.load %arg3[%c0_3, %c0_4] : memref<1x1024xf32, #tpu.memory_space<vmem>>, vector<1x1024xf32>
    %5 = vector.broadcast %4 : vector<1x1024xf32> to vector<2x1024xf32>
    %6 = arith.addf %3, %5 : vector<2x1024xf32>
    %cst_5 = arith.constant 0.000000e+00 : f32
    %7 = vector.broadcast %cst_5 : f32 to vector<2x1024xf32>
    %8 = arith.maximumf %6, %7 : vector<2x1024xf32>
    %9 = vector.extract_strided_slice %8 {offsets = [0, 0], sizes = [2, 256], strides = [1, 1]} : vector<2x1024xf32> to vector<2x256xf32>
    %10 = vector.extract_strided_slice %8 {offsets = [0, 256], sizes = [2, 256], strides = [1, 1]} : vector<2x1024xf32> to vector<2x256xf32>
    %11 = arith.maximumf %9, %10 : vector<2x256xf32>
    %12 = vector.extract_strided_slice %8 {offsets = [0, 512], sizes = [2, 256], strides = [1, 1]} : vector<2x1024xf32> to vector<2x256xf32>
    %13 = vector.extract_strided_slice %8 {offsets = [0, 768], sizes = [2, 256], strides = [1, 1]} : vector<2x1024xf32> to vector<2x256xf32>
    %14 = arith.maximumf %12, %13 : vector<2x256xf32>
    %15 = arith.maximumf %11, %14 : vector<2x256xf32>
    %16 = arith.truncf %15 : vector<2x256xf32> to vector<2x256xbf16>
    %c0_6 = arith.constant 0 : index
    %c0_7 = arith.constant 0 : index
    %17 = vector.load %arg4[%c0_6, %c0_7] : memref<256x1600xbf16, #tpu.memory_space<vmem>>, vector<256x1600xbf16>
    %cst_8 = arith.constant dense<0.000000e+00> : vector<2x1600xf32>
    %18 = tpu.matmul %16, %17, %cst_8 {dimension_numbers = #tpu.dot_dimension_numbers<[1], [0], [0], [1], [0, 0, 1, 1], [], []>} : vector<2x256xbf16>, vector<256x1600xbf16>, vector<2x1600xf32> -> vector<2x1600xf32>
    %c0_9 = arith.constant 0 : index
    %c0_10 = arith.constant 0 : index
    %19 = vector.load %arg5[%c0_9, %c0_10] : memref<1x1600xf32, #tpu.memory_space<vmem>>, vector<1x1600xf32>
    %20 = vector.broadcast %19 : vector<1x1600xf32> to vector<2x1600xf32>
    %21 = arith.addf %18, %20 : vector<2x1600xf32>
    %cst_11 = arith.constant 0.000000e+00 : f32
    %22 = vector.broadcast %cst_11 : f32 to vector<2x1600xf32>
    %23 = arith.maximumf %21, %22 : vector<2x1600xf32>
    %24 = arith.truncf %23 : vector<2x1600xf32> to vector<2x1600xbf16>
    %c0_12 = arith.constant 0 : index
    %c0_13 = arith.constant 0 : index
    %25 = vector.load %arg6[%c0_12, %c0_13] : memref<1600x512xbf16, #tpu.memory_space<vmem>>, vector<1600x512xbf16>
    %cst_14 = arith.constant dense<0.000000e+00> : vector<2x512xf32>
    %26 = tpu.matmul %24, %25, %cst_14 {dimension_numbers = #tpu.dot_dimension_numbers<[1], [0], [0], [1], [0, 0, 1, 1], [], []>} : vector<2x1600xbf16>, vector<1600x512xbf16>, vector<2x512xf32> -> vector<2x512xf32>
    %c0_15 = arith.constant 0 : index
    %c0_16 = arith.constant 0 : index
    %27 = vector.load %arg7[%c0_15, %c0_16] : memref<1x512xf32, #tpu.memory_space<vmem>>, vector<1x512xf32>
    %28 = vector.broadcast %27 : vector<1x512xf32> to vector<2x512xf32>
    %29 = arith.addf %26, %28 : vector<2x512xf32>
    %cst_17 = arith.constant 0.000000e+00 : f32
    %30 = vector.broadcast %cst_17 : f32 to vector<2x512xf32>
    %31 = arith.maximumf %29, %30 : vector<2x512xf32>
    %32 = arith.truncf %31 : vector<2x512xf32> to vector<2x512xbf16>
    %c0_18 = arith.constant 0 : index
    %c0_19 = arith.constant 0 : index
    %33 = vector.load %arg8[%c0_18, %c0_19] : memref<512x512xbf16, #tpu.memory_space<vmem>>, vector<512x512xbf16>
    %cst_20 = arith.constant dense<0.000000e+00> : vector<2x512xf32>
    %34 = tpu.matmul %32, %33, %cst_20 {dimension_numbers = #tpu.dot_dimension_numbers<[1], [0], [0], [1], [0, 0, 1, 1], [], []>} : vector<2x512xbf16>, vector<512x512xbf16>, vector<2x512xf32> -> vector<2x512xf32>
    %c0_21 = arith.constant 0 : index
    %c0_22 = arith.constant 0 : index
    %35 = vector.load %arg9[%c0_21, %c0_22] : memref<1x512xf32, #tpu.memory_space<vmem>>, vector<1x512xf32>
    %36 = vector.broadcast %35 : vector<1x512xf32> to vector<2x512xf32>
    %37 = arith.addf %34, %36 : vector<2x512xf32>
    %cst_23 = arith.constant 0.000000e+00 : f32
    %38 = vector.broadcast %cst_23 : f32 to vector<2x512xf32>
    %39 = arith.maximumf %37, %38 : vector<2x512xf32>
    %40 = arith.truncf %39 : vector<2x512xf32> to vector<2x512xbf16>
    %c0_24 = arith.constant 0 : index
    %c0_25 = arith.constant 0 : index
    %41 = vector.load %arg10[%c0_24, %c0_25] : memref<512x256xbf16, #tpu.memory_space<vmem>>, vector<512x256xbf16>
    %cst_26 = arith.constant dense<0.000000e+00> : vector<2x256xf32>
    %42 = tpu.matmul %40, %41, %cst_26 {dimension_numbers = #tpu.dot_dimension_numbers<[1], [0], [0], [1], [0, 0, 1, 1], [], []>} : vector<2x512xbf16>, vector<512x256xbf16>, vector<2x256xf32> -> vector<2x256xf32>
    %c0_27 = arith.constant 0 : index
    %c0_28 = arith.constant 0 : index
    %43 = vector.load %arg11[%c0_27, %c0_28] : memref<1x256xf32, #tpu.memory_space<vmem>>, vector<1x256xf32>
    %44 = vector.broadcast %43 : vector<1x256xf32> to vector<2x256xf32>
    %45 = arith.addf %42, %44 : vector<2x256xf32>
    %cst_29 = arith.constant 0.000000e+00 : f32
    %46 = vector.broadcast %cst_29 : f32 to vector<2x256xf32>
    %47 = arith.maximumf %45, %46 : vector<2x256xf32>
    %48 = arith.truncf %47 : vector<2x256xf32> to vector<2x256xbf16>
    %c0_30 = arith.constant 0 : index
    %c0_31 = arith.constant 0 : index
    %49 = vector.load %arg12[%c0_30, %c0_31] : memref<256x128xbf16, #tpu.memory_space<vmem>>, vector<256x128xbf16>
    %cst_32 = arith.constant dense<0.000000e+00> : vector<2x128xf32>
    %50 = tpu.matmul %48, %49, %cst_32 {dimension_numbers = #tpu.dot_dimension_numbers<[1], [0], [0], [1], [0, 0, 1, 1], [], []>} : vector<2x256xbf16>, vector<256x128xbf16>, vector<2x128xf32> -> vector<2x128xf32>
    %c0_33 = arith.constant 0 : index
    %c0_34 = arith.constant 0 : index
    %51 = vector.load %arg13[%c0_33, %c0_34] : memref<1x128xf32, #tpu.memory_space<vmem>>, vector<1x128xf32>
    %52 = vector.broadcast %51 : vector<1x128xf32> to vector<2x128xf32>
    %53 = arith.addf %50, %52 : vector<2x128xf32>
    %cst_35 = arith.constant 0.000000e+00 : f32
    %54 = vector.broadcast %cst_35 : f32 to vector<2x128xf32>
    %55 = arith.maximumf %53, %54 : vector<2x128xf32>
    %56 = arith.truncf %55 : vector<2x128xf32> to vector<2x128xbf16>
    %c0_36 = arith.constant 0 : index
    %c0_37 = arith.constant 0 : index
    %57 = vector.load %arg14[%c0_36, %c0_37] : memref<128x1xbf16, #tpu.memory_space<vmem>>, vector<128x1xbf16>
    %cst_38 = arith.constant dense<0.000000e+00> : vector<2x1xf32>
    %58 = tpu.matmul %56, %57, %cst_38 {dimension_numbers = #tpu.dot_dimension_numbers<[1], [0], [0], [1], [0, 0, 1, 1], [], []>} : vector<2x128xbf16>, vector<128x1xbf16>, vector<2x1xf32> -> vector<2x1xf32>
    %c0_39 = arith.constant 0 : index
    %c0_40 = arith.constant 0 : index
    %59 = vector.load %arg15[%c0_39, %c0_40] : memref<1x1xf32, #tpu.memory_space<vmem>>, vector<1x1xf32>
    %60 = vector.broadcast %59 : vector<1x1xf32> to vector<2x1xf32>
    %61 = arith.addf %58, %60 : vector<2x1xf32>
    %62 = arith.negf %61 : vector<2x1xf32>
    %63 = math.exp %62 : vector<2x1xf32>
    %cst_41 = arith.constant 1.000000e+00 : f32
    %64 = vector.broadcast %cst_41 : f32 to vector<2x1xf32>
    %65 = arith.addf %64, %63 : vector<2x1xf32>
    %66 = arith.divf %64, %65 : vector<2x1xf32>
    %c0_42 = arith.constant 0 : index
    %c0_43 = arith.constant 0 : index
    %67 = vector.load %arg16[%c0_42, %c0_43] : memref<2x1xf32, #tpu.memory_space<vmem>>, vector<2x1xf32>
    tpu.vector_store %arg16[%c0_42, %c0_43], %66 {strides = array<i32>} : memref<2x1xf32, #tpu.memory_space<vmem>>, vector<2x1xf32>,
    return
  }
  func.func @transform_0(%arg0: i32) -> (i32, i32) {
    %c0_i32 = arith.constant 0 : i32
    %c0_i32_0 = arith.constant 0 : i32
    return %arg0, %c0_i32 : i32, i32
  }
  func.func @transform_1(%arg0: i32) -> (i32, i32) {
    %c0_i32 = arith.constant 0 : i32
    %c0_i32_0 = arith.constant 0 : i32
    %c0_i32_1 = arith.constant 0 : i32
    return %c0_i32, %c0_i32_0 : i32, i32
  }
  func.func @transform_2(%arg0: i32) -> (i32, i32) {
    %c0_i32 = arith.constant 0 : i32
    %c0_i32_0 = arith.constant 0 : i32
    %c0_i32_1 = arith.constant 0 : i32
    return %c0_i32, %c0_i32_0 : i32, i32
  }
  func.func @transform_3(%arg0: i32) -> (i32, i32) {
    %c0_i32 = arith.constant 0 : i32
    %c0_i32_0 = arith.constant 0 : i32
    %c0_i32_1 = arith.constant 0 : i32
    return %c0_i32, %c0_i32_0 : i32, i32
  }
  func.func @transform_4(%arg0: i32) -> (i32, i32) {
    %c0_i32 = arith.constant 0 : i32
    %c0_i32_0 = arith.constant 0 : i32
    %c0_i32_1 = arith.constant 0 : i32
    return %c0_i32, %c0_i32_0 : i32, i32
  }
  func.func @transform_5(%arg0: i32) -> (i32, i32) {
    %c0_i32 = arith.constant 0 : i32
    %c0_i32_0 = arith.constant 0 : i32
    %c0_i32_1 = arith.constant 0 : i32
    return %c0_i32, %c0_i32_0 : i32, i32
  }
  func.func @transform_6(%arg0: i32) -> (i32, i32) {
    %c0_i32 = arith.constant 0 : i32
    %c0_i32_0 = arith.constant 0 : i32
    %c0_i32_1 = arith.constant 0 : i32
    return %c0_i32, %c0_i32_0 : i32, i32
  }
  func.func @transform_7(%arg0: i32) -> (i32, i32) {
    %c0_i32 = arith.constant 0 : i32
    %c0_i32_0 = arith.constant 0 : i32
    %c0_i32_1 = arith.constant 0 : i32
    return %c0_i32, %c0_i32_0 : i32, i32
  }
  func.func @transform_8(%arg0: i32) -> (i32, i32) {
    %c0_i32 = arith.constant 0 : i32
    %c0_i32_0 = arith.constant 0 : i32
    %c0_i32_1 = arith.constant 0 : i32
    return %c0_i32, %c0_i32_0 : i32, i32
  }
  func.func @transform_9(%arg0: i32) -> (i32, i32) {
    %c0_i32 = arith.constant 0 : i32
    %c0_i32_0 = arith.constant 0 : i32
    %c0_i32_1 = arith.constant 0 : i32
    return %c0_i32, %c0_i32_0 : i32, i32
  }
  func.func @transform_10(%arg0: i32) -> (i32, i32) {
    %c0_i32 = arith.constant 0 : i32
    %c0_i32_0 = arith.constant 0 : i32
    %c0_i32_1 = arith.constant 0 : i32
    return %c0_i32, %c0_i32_0 : i32, i32
  }
  func.func @transform_11(%arg0: i32) -> (i32, i32) {
    %c0_i32 = arith.constant 0 : i32
    %c0_i32_0 = arith.constant 0 : i32
    %c0_i32_1 = arith.constant 0 : i32
    return %c0_i32, %c0_i32_0 : i32, i32
  }
  func.func @transform_12(%arg0: i32) -> (i32, i32) {
    %c0_i32 = arith.constant 0 : i32
    %c0_i32_0 = arith.constant 0 : i32
    %c0_i32_1 = arith.constant 0 : i32
    return %c0_i32, %c0_i32_0 : i32, i32
  }
  func.func @transform_13(%arg0: i32) -> (i32, i32) {
    %c0_i32 = arith.constant 0 : i32
    %c0_i32_0 = arith.constant 0 : i32
    %c0_i32_1 = arith.constant 0 : i32
    return %c0_i32, %c0_i32_0 : i32, i32
  }
  func.func @transform_14(%arg0: i32) -> (i32, i32) {
    %c0_i32 = arith.constant 0 : i32
    %c0_i32_0 = arith.constant 0 : i32
    %c0_i32_1 = arith.constant 0 : i32
    return %c0_i32, %c0_i32_0 : i32, i32
  }
  func.func @transform_15(%arg0: i32) -> (i32, i32) {
    %c0_i32 = arith.constant 0 : i32
    %c0_i32_0 = arith.constant 0 : i32
    return %arg0, %c0_i32 : i32, i32
  }
}

</mosaic_0001>

<llo_original>
// kernel: lenet8_forward.1
$region0: #{lenet8_forward.1}
  #allocation0 [shape = 'u32[]', space=smem, size = 0x4, offset = 0x4, fixed_abs, tag = 'smem constant byte address 0x4 - core index']
  #allocation1 [shape = 'u32[72,128]{1,0:T(1,128)}', space=vmem, size = 0x9000, scoped, tag = 'internal scratch']
  #allocation2 [shape = 'f32[1,1]{1,0:T(1,128)S(1)}', space=vmem, size = 0x200, scoped, tag = 'scoped memory for lenet8_forward.1']
  %s0 = inlined_call_operand.vmem [shape: f32[2,64], index: 0, kind: input, shape index: {}]
  %s1 = inlined_call_operand.hbm [shape: bf16[64,1024], index: 1, kind: input, shape index: {}]
  %s2 = inlined_call_operand.vmem [shape: f32[1,1024], index: 2, kind: input, shape index: {}]
  %s3 = inlined_call_operand.vmem [shape: bf16[256,1600], index: 3, kind: input, shape index: {}]
  %s4 = inlined_call_operand.vmem [shape: f32[1,1600], index: 4, kind: input, shape index: {}]
  %s5 = inlined_call_operand.vmem [shape: bf16[1600,512], index: 5, kind: input, shape index: {}]
  %s6 = inlined_call_operand.vmem [shape: f32[1,512], index: 6, kind: input, shape index: {}]
  %s7 = inlined_call_operand.hbm [shape: bf16[512,512], index: 7, kind: input, shape index: {}]
  %s8 = inlined_call_operand.vmem [shape: f32[1,512], index: 8, kind: input, shape index: {}]
  %s9 = inlined_call_operand.hbm [shape: bf16[512,256], index: 9, kind: input, shape index: {}]
  %s10 = inlined_call_operand.hbm [shape: f32[1,256], index: 10, kind: input, shape index: {}]
  %s11 = inlined_call_operand.vmem [shape: bf16[256,128], index: 11, kind: input, shape index: {}]
  %s12 = inlined_call_operand.vmem [shape: f32[1,128], index: 12, kind: input, shape index: {}]
  %s13 = inlined_call_operand.vmem [shape: bf16[128,1], index: 13, kind: input, shape index: {}]
  %s14 = inlined_call_operand.<no memory space> [shape: f32[1,1], index: 14, kind: input, shape index: {}]
  %s15 = inlined_call_operand.vmem [shape: f32[2,1], index: 15, kind: output, shape index: {}]
  %s16 = sld [smem:[#allocation0]]
  $region86: #{lenet8_forward.1} parent=0
    _
  %s18 = ssub.s32 1, %s16
  %s19 = scalar_select 0, %s18, %s16
  %v20 = vstv %s14
  %21 = vst [vmem:[#allocation2] sm:$0x1] %v20
  $region1: #{lenet8_forward.1} parent=0
    #allocation3 [shape = 'u8[131072]{0}', space=vmem, size = 0x20000, scoped, tag = 'input window, operand 1, single buffered']
    #allocation4 [shape = 's32[1]{0}', space=sflag, size = 0x4, scoped, tag = 'scoped memory for lenet8_forward.1']
    #allocation5 [shape = 'u8[524288]{0}', space=vmem, size = 0x80000, scoped, tag = 'input window, operand 7, single buffered']
    #allocation6 [shape = 's32[1]{0}', space=sflag, size = 0x4, scoped, tag = 'scoped memory for lenet8_forward.1']
    #allocation7 [shape = 'u8[262144]{0}', space=vmem, size = 0x40000, scoped, tag = 'input window, operand 9, single buffered']
    #allocation8 [shape = 'u8[1024]{0}', space=vmem, size = 0x400, scoped, tag = 'input window, operand 10, single buffered']
    #allocation9 [shape = 's32[1]{0}', space=sflag, size = 0x4, scoped, tag = 'scoped memory for lenet8_forward.1']
    %22 = vsyncpa [#allocation4], 0
    %23 = vsyncpa [#allocation6], 0
    %24 = vsyncpa [#allocation9], 0
    // Predicated region
    $region2: #{lenet8_forward.1} parent=1 // pred_check
      _
    $region3: #{lenet8_forward.1} parent=1 // pred_check_branch
      %26 = sbr.rel (0) target = $region5
    $region4: #{lenet8_forward.1} parent=1 // pred_region
      _
    $region5: #{lenet8_forward.1} parent=1 // pred_fallthru
      _
    // Predicated region
    $region6: #{lenet8_forward.1} parent=1 // pred_check
      _
    $region7: #{lenet8_forward.1} parent=1 // pred_check_branch
      %28 = sbr.rel (0) target = $region9
    $region8: #{lenet8_forward.1} parent=1 // pred_region
      %30 = vsyncadd [#allocation4], 0
      %s31 = sshll.u32 %s1, 4
      %s32 = int_to_ptr.hbm [resolvable:$true] %s31
      %s33 = sshll.u32 [#allocation3], 4
      %s34 = int_to_ptr.vmem [resolvable:$true] %s33
      %39 = dma.hbm_to_vmem [thread:$0]  %s32, 4096, %s34, [#allocation4], 512, 512, 32
    $region9: #{lenet8_forward.1} parent=1 // pred_fallthru
      _
    // Predicated region
    $region10: #{lenet8_forward.1} parent=1 // pred_check
      _
    $region11: #{lenet8_forward.1} parent=1 // pred_check_branch
      %41 = sbr.rel (0) target = $region13
    $region12: #{lenet8_forward.1} parent=1 // pred_region
      _
    $region13: #{lenet8_forward.1} parent=1 // pred_fallthru
      _
    // Predicated region
    $region14: #{lenet8_forward.1} parent=1 // pred_check
      _
    $region15: #{lenet8_forward.1} parent=1 // pred_check_branch
      %43 = sbr.rel (0) target = $region17
    $region16: #{lenet8_forward.1} parent=1 // pred_region
      _
    $region17: #{lenet8_forward.1} parent=1 // pred_fallthru
      _
    // Predicated region
    $region18: #{lenet8_forward.1} parent=1 // pred_check
      _
    $region19: #{lenet8_forward.1} parent=1 // pred_check_branch
      %45 = sbr.rel (0) target = $region21
    $region20: #{lenet8_forward.1} parent=1 // pred_region
      _
    $region21: #{lenet8_forward.1} parent=1 // pred_fallthru
      _
    // Predicated region
    $region22: #{lenet8_forward.1} parent=1 // pred_check
      _
    $region23: #{lenet8_forward.1} parent=1 // pred_check_branch
      %47 = sbr.rel (0) target = $region25
    $region24: #{lenet8_forward.1} parent=1 // pred_region
      _
    $region25: #{lenet8_forward.1} parent=1 // pred_fallthru
      _
    // Predicated region
    $region26: #{lenet8_forward.1} parent=1 // pred_check
      _
    $region27: #{lenet8_forward.1} parent=1 // pred_check_branch
      %49 = sbr.rel (0) target = $region29
    $region28: #{lenet8_forward.1} parent=1 // pred_region
      _
    $region29: #{lenet8_forward.1} parent=1 // pred_fallthru
      _
    // Predicated region
    $region30: #{lenet8_forward.1} parent=1 // pred_check
      _
    $region31: #{lenet8_forward.1} parent=1 // pred_check_branch
      %51 = sbr.rel (0) target = $region33
    $region32: #{lenet8_forward.1} parent=1 // pred_region
      %53 = vsyncadd [#allocation6], 0
      %s54 = sshll.u32 %s7, 4
      %s55 = int_to_ptr.hbm [resolvable:$true] %s54
      %s56 = sshll.u32 [#allocation5], 4
      %s57 = int_to_ptr.vmem [resolvable:$true] %s56
      %62 = dma.hbm_to_vmem [thread:$0]  %s55, 16384, %s57, [#allocation6], 256, 256, 16
    $region33: #{lenet8_forward.1} parent=1 // pred_fallthru
      _
    // Predicated region
    $region34: #{lenet8_forward.1} parent=1 // pred_check
      _
    $region35: #{lenet8_forward.1} parent=1 // pred_check_branch
      %64 = sbr.rel (0) target = $region37
    $region36: #{lenet8_forward.1} parent=1 // pred_region
      _
    $region37: #{lenet8_forward.1} parent=1 // pred_fallthru
      _
    // Predicated region
    $region38: #{lenet8_forward.1} parent=1 // pred_check
      _
    $region39: #{lenet8_forward.1} parent=1 // pred_check_branch
      %66 = sbr.rel (0) target = $region41
    $region40: #{lenet8_forward.1} parent=1 // pred_region
      %68 = vsyncadd [#allocation6], 0
      %s69 = sshll.u32 %s9, 4
      %s70 = int_to_ptr.hbm [resolvable:$true] %s69
      %s71 = sshll.u32 [#allocation7], 4
      %s72 = int_to_ptr.vmem [resolvable:$true] %s71
      %77 = dma.hbm_to_vmem [thread:$0]  %s70, 8192, %s72, [#allocation6], 128, 128, 8
    $region41: #{lenet8_forward.1} parent=1 // pred_fallthru
      _
    // Predicated region
    $region42: #{lenet8_forward.1} parent=1 // pred_check
      _
    $region43: #{lenet8_forward.1} parent=1 // pred_check_branch
      %79 = sbr.rel (0) target = $region45
    $region44: #{lenet8_forward.1} parent=1 // pred_region
      %81 = vsyncadd [#allocation9], 0
      %s83 = sshll.u32 %s10, 4
      %s84 = int_to_ptr.hbm [resolvable:$true] %s83
      %s85 = sshll.u32 [#allocation8], 4
      %s86 = int_to_ptr.vmem [resolvable:$true] %s85
      %88 = dma.hbm_to_vmem [thread:$0]  %s84, 32, %s86, [#allocation9]
    $region45: #{lenet8_forward.1} parent=1 // pred_fallthru
      _
    // Predicated region
    $region46: #{lenet8_forward.1} parent=1 // pred_check
      _
    $region47: #{lenet8_forward.1} parent=1 // pred_check_branch
      %90 = sbr.rel (0) target = $region49
    $region48: #{lenet8_forward.1} parent=1 // pred_region
      _
    $region49: #{lenet8_forward.1} parent=1 // pred_fallthru
      _
    // Predicated region
    $region50: #{lenet8_forward.1} parent=1 // pred_check
      _
    $region51: #{lenet8_forward.1} parent=1 // pred_check_branch
      %92 = sbr.rel (0) target = $region53
    $region52: #{lenet8_forward.1} parent=1 // pred_region
      _
    $region53: #{lenet8_forward.1} parent=1 // pred_fallthru
      _
    // Predicated region
    $region54: #{lenet8_forward.1} parent=1 // pred_check
      _
    $region55: #{lenet8_forward.1} parent=1 // pred_check_branch
      %94 = sbr.rel (0) target = $region57
    $region56: #{lenet8_forward.1} parent=1 // pred_region
      _
    $region57: #{lenet8_forward.1} parent=1 // pred_fallthru
      _
    // Predicated region
    $region58: #{lenet8_forward.1} parent=1 // pred_check
      _
    $region59: #{lenet8_forward.1} parent=1 // pred_check_branch
      %96 = sbr.rel (0) target = $region61
    $region60: #{lenet8_forward.1} parent=1 // pred_region
      _
    $region61: #{lenet8_forward.1} parent=1 // pred_fallthru
      _
    // Predicated region
    $region62: #{lenet8_forward.1} parent=1 // pred_check
      _
    $region63: #{lenet8_forward.1} parent=1 // pred_check_branch
      %98 = sbr.rel (0) target = $region65
    $region64: #{lenet8_forward.1} parent=1 // pred_region
      %100 = dma.done [#allocation4], 4096
    $region65: #{lenet8_forward.1} parent=1 // pred_fallthru
      _
    // Predicated region
    $region66: #{lenet8_forward.1} parent=1 // pred_check
      _
    $region67: #{lenet8_forward.1} parent=1 // pred_check_branch
      %102 = sbr.rel (0) target = $region69
    $region68: #{lenet8_forward.1} parent=1 // pred_region
      %104 = dma.done [#allocation6], 16384
    $region69: #{lenet8_forward.1} parent=1 // pred_fallthru
      _
    // Predicated region
    $region70: #{lenet8_forward.1} parent=1 // pred_check
      _
    $region71: #{lenet8_forward.1} parent=1 // pred_check_branch
      %106 = sbr.rel (0) target = $region73
    $region72: #{lenet8_forward.1} parent=1 // pred_region
      %108 = dma.done [#allocation6], 8192
    $region73: #{lenet8_forward.1} parent=1 // pred_fallthru
      _
    // Predicated region
    $region74: #{lenet8_forward.1} parent=1 // pred_check
      _
    $region75: #{lenet8_forward.1} parent=1 // pred_check_branch
      %110 = sbr.rel (0) target = $region77
    $region76: #{lenet8_forward.1} parent=1 // pred_region
      %112 = dma.done [#allocation9], 32
    $region77: #{lenet8_forward.1} parent=1 // pred_fallthru
      _
    %v114 = vld [vmem:[%s0] sm:$0x3]
    %v115 = vpack.c.bf16 %v114, %v114
    %v116 = vld [vmem:[#allocation3] sm:$0xff]
    %v117 = vld [vmem:[#allocation3 + $0x8] sm:$0xff]
    %v118 = vld [vmem:[#allocation3 + $0x10] sm:$0xff]
    %v119 = vld [vmem:[#allocation3 + $0x18] sm:$0xff]
    %v120 = vld [vmem:[#allocation3 + $0x20] sm:$0xff]
    %v121 = vld [vmem:[#allocation3 + $0x28] sm:$0xff]
    %v122 = vld [vmem:[#allocation3 + $0x30] sm:$0xff]
    %v123 = vld [vmem:[#allocation3 + $0x38] sm:$0xff]
    %v124 = vld [vmem:[#allocation3 + $0x40] sm:$0xff]
    %v125 = vld [vmem:[#allocation3 + $0x48] sm:$0xff]
    %v126 = vld [vmem:[#allocation3 + $0x50] sm:$0xff]
    %v127 = vld [vmem:[#allocation3 + $0x58] sm:$0xff]
    %v128 = vld [vmem:[#allocation3 + $0x60] sm:$0xff]
    %v129 = vld [vmem:[#allocation3 + $0x68] sm:$0xff]
    %v130 = vld [vmem:[#allocation3 + $0x70] sm:$0xff]
    %v131 = vld [vmem:[#allocation3 + $0x78] sm:$0xff]
    %v132 = vld [vmem:[#allocation3 + $0x80] sm:$0xff]
    %v133 = vld [vmem:[#allocation3 + $0x88] sm:$0xff]
    %v134 = vld [vmem:[#allocation3 + $0x90] sm:$0xff]
    %v135 = vld [vmem:[#allocation3 + $0x98] sm:$0xff]
    %v136 = vld [vmem:[#allocation3 + $0xa0] sm:$0xff]
    %v137 = vld [vmem:[#allocation3 + $0xa8] sm:$0xff]
    %v138 = vld [vmem:[#allocation3 + $0xb0] sm:$0xff]
    %v139 = vld [vmem:[#allocation3 + $0xb8] sm:$0xff]
    %v140 = vld [vmem:[#allocation3 + $0xc0] sm:$0xff]
    %v141 = vld [vmem:[#allocation3 + $0xc8] sm:$0xff]
    %v142 = vld [vmem:[#allocation3 + $0xd0] sm:$0xff]
    %v143 = vld [vmem:[#allocation3 + $0xd8] sm:$0xff]
    %v144 = vld [vmem:[#allocation3 + $0xe0] sm:$0xff]
    %v145 = vld [vmem:[#allocation3 + $0xe8] sm:$0xff]
    %v146 = vld [vmem:[#allocation3 + $0xf0] sm:$0xff]
    %v147 = vld [vmem:[#allocation3 + $0xf8] sm:$0xff]
    %v148 = vld [vmem:[%s2] sm:$0xff]
    %v150 = vperm.slane %v148, 0
    %v151 = vperm.slane %v148, 1
    %v152 = vperm.slane %v148, 2
    %v153 = vperm.slane %v148, 3
    %v154 = vperm.slane %v148, 4
    %v155 = vperm.slane %v148, 5
    %v156 = vperm.slane %v148, 6
    %v157 = vperm.slane %v148, 7
    %v198 = vunpack.c.l.b16 %v116
    %v199 = vunpack.c.h.b16 %v116
    %v200 = vunpack.c.l.b16 %v117
    %v201 = vunpack.c.h.b16 %v117
    %v202 = vunpack.c.l.b16 %v118
    %v203 = vunpack.c.h.b16 %v118
    %v204 = vunpack.c.l.b16 %v119
    %v205 = vunpack.c.h.b16 %v119
    %v206 = vunpack.c.l.b16 %v120
    %v207 = vunpack.c.h.b16 %v120
    %v208 = vunpack.c.l.b16 %v121
    %v209 = vunpack.c.h.b16 %v121
    %v210 = vunpack.c.l.b16 %v122
    %v211 = vunpack.c.h.b16 %v122
    %v212 = vunpack.c.l.b16 %v123
    %v213 = vunpack.c.h.b16 %v123
    %v214 = vunpack.c.l.b16 %v124
    %v215 = vunpack.c.h.b16 %v124
    %v216 = vunpack.c.l.b16 %v125
    %v217 = vunpack.c.h.b16 %v125
    %v218 = vunpack.c.l.b16 %v126
    %v219 = vunpack.c.h.b16 %v126
    %v220 = vunpack.c.l.b16 %v127
    %v221 = vunpack.c.h.b16 %v127
    %v222 = vunpack.c.l.b16 %v128
    %v223 = vunpack.c.h.b16 %v128
    %v224 = vunpack.c.l.b16 %v129
    %v225 = vunpack.c.h.b16 %v129
    %v226 = vunpack.c.l.b16 %v130
    %v227 = vunpack.c.h.b16 %v130
    %v228 = vunpack.c.l.b16 %v131
    %v229 = vunpack.c.h.b16 %v131
    %v230 = vunpack.c.l.b16 %v132
    %v231 = vunpack.c.h.b16 %v132
    %v232 = vunpack.c.l.b16 %v133
    %v233 = vunpack.c.h.b16 %v133
    %v234 = vunpack.c.l.b16 %v134
    %v235 = vunpack.c.h.b16 %v134
    %v236 = vunpack.c.l.b16 %v135
    %v237 = vunpack.c.h.b16 %v135
    %v238 = vunpack.c.l.b16 %v136
    %v239 = vunpack.c.h.b16 %v136
    %v240 = vunpack.c.l.b16 %v137
    %v241 = vunpack.c.h.b16 %v137
    %v242 = vunpack.c.l.b16 %v138
    %v243 = vunpack.c.h.b16 %v138
    %v244 = vunpack.c.l.b16 %v139
    %v245 = vunpack.c.h.b16 %v139
    %v246 = vunpack.c.l.b16 %v140
    %v247 = vunpack.c.h.b16 %v140
    %v248 = vunpack.c.l.b16 %v141
    %v249 = vunpack.c.h.b16 %v141
    %v250 = vunpack.c.l.b16 %v142
    %v251 = vunpack.c.h.b16 %v142
    %v252 = vunpack.c.l.b16 %v143
    %v253 = vunpack.c.h.b16 %v143
    %v254 = vunpack.c.l.b16 %v144
    %v255 = vunpack.c.h.b16 %v144
    %v256 = vunpack.c.l.b16 %v145
    %v257 = vunpack.c.h.b16 %v145
    %v258 = vunpack.c.l.b16 %v146
    %v259 = vunpack.c.h.b16 %v146
    %v260 = vunpack.c.l.b16 %v147
    %v261 = vunpack.c.h.b16 %v147
    %v262 = vpack.c.b16 %v206, %v198
    %v263 = vpack.c.b16 %v207, %v199
    %v264 = vpack.c.b16 %v208, %v200
    %v265 = vpack.c.b16 %v209, %v201
    %v266 = vpack.c.b16 %v210, %v202
    %v267 = vpack.c.b16 %v211, %v203
    %v268 = vpack.c.b16 %v212, %v204
    %v269 = vpack.c.b16 %v213, %v205
    %v270 = vpack.c.b16 %v222, %v214
    %v271 = vpack.c.b16 %v223, %v215
    %v272 = vpack.c.b16 %v224, %v216
    %v273 = vpack.c.b16 %v225, %v217
    %v274 = vpack.c.b16 %v226, %v218
    %v275 = vpack.c.b16 %v227, %v219
    %v276 = vpack.c.b16 %v228, %v220
    %v277 = vpack.c.b16 %v229, %v221
    %v278 = vpack.c.b16 %v238, %v230
    %v279 = vpack.c.b16 %v239, %v231
    %v280 = vpack.c.b16 %v240, %v232
    %v281 = vpack.c.b16 %v241, %v233
    %v282 = vpack.c.b16 %v242, %v234
    %v283 = vpack.c.b16 %v243, %v235
    %v284 = vpack.c.b16 %v244, %v236
    %v285 = vpack.c.b16 %v245, %v237
    %v286 = vpack.c.b16 %v254, %v246
    %v287 = vpack.c.b16 %v255, %v247
    %v288 = vpack.c.b16 %v256, %v248
    %v289 = vpack.c.b16 %v257, %v249
    %v290 = vpack.c.b16 %v258, %v250
    %v291 = vpack.c.b16 %v259, %v251
    %v292 = vpack.c.b16 %v260, %v252
    %v293 = vpack.c.b16 %v261, %v253
    %vm326 = vcmask 523264
    %v328 = vsel %vm326, %v115, 0
    %330 = vmatpush.bf16.msra.mxu0 0
    %331 = vmatpush.bf16.msra.mxu0 0
    %332 = vmatpush.bf16.msra.mxu0 0
    %333 = vmatpush.bf16.msra.mxu0 0
    %334 = vmatpush.bf16.msra.mxu0 %v286
    %335 = vmatpush.bf16.msra.mxu0 %v278
    %336 = vmatpush.bf16.msra.mxu0 %v270
    %337 = vmatpush.bf16.msra.mxu0 %v262
    %338 = vmatmul.bf16.gmra.mxu0 %v328
    %v339 = vpop.f32.mrf.mxu0
    %v340 = vadd.f32 %v150, %v339
    %v341 = vpop.f32.mrf.mxu0
    %342 = vdwg.mxu0
    %343 = vmatpush.bf16.msra.mxu0 0
    %344 = vmatpush.bf16.msra.mxu0 0
    %345 = vmatpush.bf16.msra.mxu0 0
    %346 = vmatpush.bf16.msra.mxu0 0
    %347 = vmatpush.bf16.msra.mxu0 %v287
    %348 = vmatpush.bf16.msra.mxu0 %v279
    %349 = vmatpush.bf16.msra.mxu0 %v271
    %350 = vmatpush.bf16.msra.mxu0 %v263
    %351 = vmatmul.bf16.gmra.mxu0 %v328
    %v352 = vpop.f32.mrf.mxu0
    %v353 = vadd.f32 %v151, %v352
    %v354 = vpop.f32.mrf.mxu0
    %355 = vdwg.mxu0
    %356 = vmatpush.bf16.msra.mxu0 0
    %357 = vmatpush.bf16.msra.mxu0 0
    %358 = vmatpush.bf16.msra.mxu0 0
    %359 = vmatpush.bf16.msra.mxu0 0
    %360 = vmatpush.bf16.msra.mxu0 %v288
    %361 = vmatpush.bf16.msra.mxu0 %v280
    %362 = vmatpush.bf16.msra.mxu0 %v272
    %363 = vmatpush.bf16.msra.mxu0 %v264
    %364 = vmatmul.bf16.gmra.mxu0 %v328
    %v365 = vpop.f32.mrf.mxu0
    %v366 = vadd.f32 %v152, %v365
    %v367 = vpop.f32.mrf.mxu0
    %368 = vdwg.mxu0
    %369 = vmatpush.bf16.msra.mxu0 0
    %370 = vmatpush.bf16.msra.mxu0 0
    %371 = vmatpush.bf16.msra.mxu0 0
    %372 = vmatpush.bf16.msra.mxu0 0
    %373 = vmatpush.bf16.msra.mxu0 %v289
    %374 = vmatpush.bf16.msra.mxu0 %v281
    %375 = vmatpush.bf16.msra.mxu0 %v273
    %376 = vmatpush.bf16.msra.mxu0 %v265
    %377 = vmatmul.bf16.gmra.mxu0 %v328
    %v378 = vpop.f32.mrf.mxu0
    %v379 = vadd.f32 %v153, %v378
    %v380 = vpop.f32.mrf.mxu0
    %381 = vdwg.mxu0
    %382 = vmatpush.bf16.msra.mxu0 0
    %383 = vmatpush.bf16.msra.mxu0 0
    %384 = vmatpush.bf16.msra.mxu0 0
    %385 = vmatpush.bf16.msra.mxu0 0
    %386 = vmatpush.bf16.msra.mxu0 %v290
    %387 = vmatpush.bf16.msra.mxu0 %v282
    %388 = vmatpush.bf16.msra.mxu0 %v274
    %389 = vmatpush.bf16.msra.mxu0 %v266
    %390 = vmatmul.bf16.gmra.mxu0 %v328
    %v391 = vpop.f32.mrf.mxu0
    %v392 = vadd.f32 %v154, %v391
    %v393 = vpop.f32.mrf.mxu0
    %394 = vdwg.mxu0
    %395 = vmatpush.bf16.msra.mxu0 0
    %396 = vmatpush.bf16.msra.mxu0 0
    %397 = vmatpush.bf16.msra.mxu0 0
    %398 = vmatpush.bf16.msra.mxu0 0
    %399 = vmatpush.bf16.msra.mxu0 %v291
    %400 = vmatpush.bf16.msra.mxu0 %v283
    %401 = vmatpush.bf16.msra.mxu0 %v275
    %402 = vmatpush.bf16.msra.mxu0 %v267
    %403 = vmatmul.bf16.gmra.mxu0 %v328
    %v404 = vpop.f32.mrf.mxu0
    %v405 = vadd.f32 %v155, %v404
    %v406 = vpop.f32.mrf.mxu0
    %407 = vdwg.mxu0
    %408 = vmatpush.bf16.msra.mxu0 0
    %409 = vmatpush.bf16.msra.mxu0 0
    %410 = vmatpush.bf16.msra.mxu0 0
    %411 = vmatpush.bf16.msra.mxu0 0
    %412 = vmatpush.bf16.msra.mxu0 %v292
    %413 = vmatpush.bf16.msra.mxu0 %v284
    %414 = vmatpush.bf16.msra.mxu0 %v276
    %415 = vmatpush.bf16.msra.mxu0 %v268
    %416 = vmatmul.bf16.gmra.mxu0 %v328
    %v417 = vpop.f32.mrf.mxu0
    %v418 = vadd.f32 %v156, %v417
    %v419 = vpop.f32.mrf.mxu0
    %420 = vdwg.mxu0
    %421 = vmatpush.bf16.msra.mxu0 0
    %422 = vmatpush.bf16.msra.mxu0 0
    %423 = vmatpush.bf16.msra.mxu0 0
    %424 = vmatpush.bf16.msra.mxu0 0
    %425 = vmatpush.bf16.msra.mxu0 %v293
    %426 = vmatpush.bf16.msra.mxu0 %v285
    %427 = vmatpush.bf16.msra.mxu0 %v277
    %428 = vmatpush.bf16.msra.mxu0 %v269
    %429 = vmatmul.bf16.gmra.mxu0 %v328
    %v430 = vpop.f32.mrf.mxu0
    %v431 = vadd.f32 %v157, %v430
    %v432 = vpop.f32.mrf.mxu0
    %433 = vdwg.mxu0
    %v434 = vmax.f32 %v340, 0.0
    %v435 = vmax.f32 %v353, 0.0
    %v436 = vmax.f32 %v366, 0.0
    %v437 = vmax.f32 %v379, 0.0
    %v438 = vmax.f32 %v392, 0.0
    %v439 = vmax.f32 %v405, 0.0
    %v440 = vmax.f32 %v418, 0.0
    %v441 = vmax.f32 %v431, 0.0
    %v442 = vmax.f32 %v434, %v436
    %v443 = vmax.f32 %v435, %v437
    %v444 = vmax.f32 %v438, %v440
    %v445 = vmax.f32 %v439, %v441
    %v446 = vmax.f32 %v442, %v444
    %v447 = vmax.f32 %v443, %v445
    %v448 = vpack.c.bf16 %v446, %v446
    %v449 = vpack.c.bf16 %v447, %v447
    %v450 = vld [vmem:[%s3] sm:$0xff]
    %v451 = vld [vmem:[%s3 + $0x8] sm:$0xff]
    %v452 = vld [vmem:[%s3 + $0x10] sm:$0xff]
    %v453 = vld [vmem:[%s3 + $0x18] sm:$0xff]
    %v454 = vld [vmem:[%s3 + $0x20] sm:$0xff]
    %v455 = vld [vmem:[%s3 + $0x28] sm:$0xff]
    %v456 = vld [vmem:[%s3 + $0x30] sm:$0xf]
    %v457 = vld [vmem:[%s3 + $0x34] sm:$0xff]
    %v458 = vld [vmem:[%s3 + $0x3c] sm:$0xff]
    %v459 = vld [vmem:[%s3 + $0x44] sm:$0xff]
    %v460 = vld [vmem:[%s3 + $0x4c] sm:$0xff]
    %v461 = vld [vmem:[%s3 + $0x54] sm:$0xff]
    %v462 = vld [vmem:[%s3 + $0x5c] sm:$0xff]
    %v463 = vld [vmem:[%s3 + $0x64] sm:$0xf]
    %v464 = vld [vmem:[%s3 + $0x68] sm:$0xff]
    %v465 = vld [vmem:[%s3 + $0x70] sm:$0xff]
    %v466 = vld [vmem:[%s3 + $0x78] sm:$0xff]
    %v467 = vld [vmem:[%s3 + $0x80] sm:$0xff]
    %v468 = vld [vmem:[%s3 + $0x88] sm:$0xff]
    %v469 = vld [vmem:[%s3 + $0x90] sm:$0xff]
    %v470 = vld [vmem:[%s3 + $0x98] sm:$0xf]
    %v471 = vld [vmem:[%s3 + $0x9c] sm:$0xff]
    %v472 = vld [vmem:[%s3 + $0xa4] sm:$0xff]
    %v473 = vld [vmem:[%s3 + $0xac] sm:$0xff]
    %v474 = vld [vmem:[%s3 + $0xb4] sm:$0xff]
    %v475 = vld [vmem:[%s3 + $0xbc] sm:$0xff]
    %v476 = vld [vmem:[%s3 + $0xc4] sm:$0xff]
    %v477 = vld [vmem:[%s3 + $0xcc] sm:$0xf]
    %v478 = vld [vmem:[%s3 + $0xd0] sm:$0xff]
    %v479 = vld [vmem:[%s3 + $0xd8] sm:$0xff]
    %v480 = vld [vmem:[%s3 + $0xe0] sm:$0xff]
    %v481 = vld [vmem:[%s3 + $0xe8] sm:$0xff]
    %v482 = vld [vmem:[%s3 + $0xf0] sm:$0xff]
    %v483 = vld [vmem:[%s3 + $0xf8] sm:$0xff]
    %v484 = vld [vmem:[%s3 + $0x100] sm:$0xf]
    %v485 = vld [vmem:[%s3 + $0x104] sm:$0xff]
    %v486 = vld [vmem:[%s3 + $0x10c] sm:$0xff]
    %v487 = vld [vmem:[%s3 + $0x114] sm:$0xff]
    %v488 = vld [vmem:[%s3 + $0x11c] sm:$0xff]
    %v489 = vld [vmem:[%s3 + $0x124] sm:$0xff]
    %v490 = vld [vmem:[%s3 + $0x12c] sm:$0xff]
    %v491 = vld [vmem:[%s3 + $0x134] sm:$0xf]
    %v492 = vld [vmem:[%s3 + $0x138] sm:$0xff]
    %v493 = vld [vmem:[%s3 + $0x140] sm:$0xff]
    %v494 = vld [vmem:[%s3 + $0x148] sm:$0xff]
    %v495 = vld [vmem:[%s3 + $0x150] sm:$0xff]
    %v496 = vld [vmem:[%s3 + $0x158] sm:$0xff]
    %v497 = vld [vmem:[%s3 + $0x160] sm:$0xff]
    %v498 = vld [vmem:[%s3 + $0x168] sm:$0xf]
    %v499 = vld [vmem:[%s3 + $0x16c] sm:$0xff]
    %v500 = vld [vmem:[%s3 + $0x174] sm:$0xff]
    %v501 = vld [vmem:[%s3 + $0x17c] sm:$0xff]
    %v502 = vld [vmem:[%s3 + $0x184] sm:$0xff]
    %v503 = vld [vmem:[%s3 + $0x18c] sm:$0xff]
    %v504 = vld [vmem:[%s3 + $0x194] sm:$0xff]
    %v505 = vld [vmem:[%s3 + $0x19c] sm:$0xf]
    %v506 = vld [vmem:[%s3 + $0x1a0] sm:$0xff]
    %v507 = vld [vmem:[%s3 + $0x1a8] sm:$0xff]
    %v508 = vld [vmem:[%s3 + $0x1b0] sm:$0xff]
    %v509 = vld [vmem:[%s3 + $0x1b8] sm:$0xff]
    %v510 = vld [vmem:[%s3 + $0x1c0] sm:$0xff]
    %v511 = vld [vmem:[%s3 + $0x1c8] sm:$0xff]
    %v512 = vld [vmem:[%s3 + $0x1d0] sm:$0xf]
    %v513 = vld [vmem:[%s3 + $0x1d4] sm:$0xff]
    %v514 = vld [vmem:[%s3 + $0x1dc] sm:$0xff]
    %v515 = vld [vmem:[%s3 + $0x1e4] sm:$0xff]
    %v516 = vld [vmem:[%s3 + $0x1ec] sm:$0xff]
    %v517 = vld [vmem:[%s3 + $0x1f4] sm:$0xff]
    %v518 = vld [vmem:[%s3 + $0x1fc] sm:$0xff]
    %v519 = vld [vmem:[%s3 + $0x204] sm:$0xf]
    %v520 = vld [vmem:[%s3 + $0x208] sm:$0xff]
    %v521 = vld [vmem:[%s3 + $0x210] sm:$0xff]
    %v522 = vld [vmem:[%s3 + $0x218] sm:$0xff]
    %v523 = vld [vmem:[%s3 + $0x220] sm:$0xff]
    %v524 = vld [vmem:[%s3 + $0x228] sm:$0xff]
    %v525 = vld [vmem:[%s3 + $0x230] sm:$0xff]
    %v526 = vld [vmem:[%s3 + $0x238] sm:$0xf]
    %v527 = vld [vmem:[%s3 + $0x23c] sm:$0xff]
    %v528 = vld [vmem:[%s3 + $0x244] sm:$0xff]
    %v529 = vld [vmem:[%s3 + $0x24c] sm:$0xff]
    %v530 = vld [vmem:[%s3 + $0x254] sm:$0xff]
    %v531 = vld [vmem:[%s3 + $0x25c] sm:$0xff]
    %v532 = vld [vmem:[%s3 + $0x264] sm:$0xff]
    %v533 = vld [vmem:[%s3 + $0x26c] sm:$0xf]
    %v534 = vld [vmem:[%s3 + $0x270] sm:$0xff]
    %v535 = vld [vmem:[%s3 + $0x278] sm:$0xff]
    %v536 = vld [vmem:[%s3 + $0x280] sm:$0xff]
    %v537 = vld [vmem:[%s3 + $0x288] sm:$0xff]
    %v538 = vld [vmem:[%s3 + $0x290] sm:$0xff]
    %v539 = vld [vmem:[%s3 + $0x298] sm:$0xff]
    %v540 = vld [vmem:[%s3 + $0x2a0] sm:$0xf]
    %v541 = vld [vmem:[%s3 + $0x2a4] sm:$0xff]
    %v542 = vld [vmem:[%s3 + $0x2ac] sm:$0xff]
    %v543 = vld [vmem:[%s3 + $0x2b4] sm:$0xff]
    %v544 = vld [vmem:[%s3 + $0x2bc] sm:$0xff]
    %v545 = vld [vmem:[%s3 + $0x2c4] sm:$0xff]
    %v546 = vld [vmem:[%s3 + $0x2cc] sm:$0xff]
    %v547 = vld [vmem:[%s3 + $0x2d4] sm:$0xf]
    %v548 = vld [vmem:[%s3 + $0x2d8] sm:$0xff]
    %v549 = vld [vmem:[%s3 + $0x2e0] sm:$0xff]
    %v550 = vld [vmem:[%s3 + $0x2e8] sm:$0xff]
    %v551 = vld [vmem:[%s3 + $0x2f0] sm:$0xff]
    %v552 = vld [vmem:[%s3 + $0x2f8] sm:$0xff]
    %v553 = vld [vmem:[%s3 + $0x300] sm:$0xff]
    %v554 = vld [vmem:[%s3 + $0x308] sm:$0xf]
    %v555 = vld [vmem:[%s3 + $0x30c] sm:$0xff]
    %v556 = vld [vmem:[%s3 + $0x314] sm:$0xff]
    %v557 = vld [vmem:[%s3 + $0x31c] sm:$0xff]
    %v558 = vld [vmem:[%s3 + $0x324] sm:$0xff]
    %v559 = vld [vmem:[%s3 + $0x32c] sm:$0xff]
    %v560 = vld [vmem:[%s3 + $0x334] sm:$0xff]
    %v561 = vld [vmem:[%s3 + $0x33c] sm:$0xf]
    %v562 = vld [vmem:[%s3 + $0x340] sm:$0xff]
    %v563 = vld [vmem:[%s3 + $0x348] sm:$0xff]
    %v564 = vld [vmem:[%s3 + $0x350] sm:$0xff]
    %v565 = vld [vmem:[%s3 + $0x358] sm:$0xff]
    %v566 = vld [vmem:[%s3 + $0x360] sm:$0xff]
    %v567 = vld [vmem:[%s3 + $0x368] sm:$0xff]
    %v568 = vld [vmem:[%s3 + $0x370] sm:$0xf]
    %v569 = vld [vmem:[%s3 + $0x374] sm:$0xff]
    %v570 = vld [vmem:[%s3 + $0x37c] sm:$0xff]
    %v571 = vld [vmem:[%s3 + $0x384] sm:$0xff]
    %v572 = vld [vmem:[%s3 + $0x38c] sm:$0xff]
    %v573 = vld [vmem:[%s3 + $0x394] sm:$0xff]
    %v574 = vld [vmem:[%s3 + $0x39c] sm:$0xff]
    %v575 = vld [vmem:[%s3 + $0x3a4] sm:$0xf]
    %v576 = vld [vmem:[%s3 + $0x3a8] sm:$0xff]
    %v577 = vld [vmem:[%s3 + $0x3b0] sm:$0xff]
    %v578 = vld [vmem:[%s3 + $0x3b8] sm:$0xff]
    %v579 = vld [vmem:[%s3 + $0x3c0] sm:$0xff]
    %v580 = vld [vmem:[%s3 + $0x3c8] sm:$0xff]
    %v581 = vld [vmem:[%s3 + $0x3d0] sm:$0xff]
    %v582 = vld [vmem:[%s3 + $0x3d8] sm:$0xf]
    %v583 = vld [vmem:[%s3 + $0x3dc] sm:$0xff]
    %v584 = vld [vmem:[%s3 + $0x3e4] sm:$0xff]
    %v585 = vld [vmem:[%s3 + $0x3ec] sm:$0xff]
    %v586 = vld [vmem:[%s3 + $0x3f4] sm:$0xff]
    %v587 = vld [vmem:[%s3 + $0x3fc] sm:$0xff]
    %v588 = vld [vmem:[%s3 + $0x404] sm:$0xff]
    %v589 = vld [vmem:[%s3 + $0x40c] sm:$0xf]
    %v590 = vld [vmem:[%s3 + $0x410] sm:$0xff]
    %v591 = vld [vmem:[%s3 + $0x418] sm:$0xff]
    %v592 = vld [vmem:[%s3 + $0x420] sm:$0xff]
    %v593 = vld [vmem:[%s3 + $0x428] sm:$0xff]
    %v594 = vld [vmem:[%s3 + $0x430] sm:$0xff]
    %v595 = vld [vmem:[%s3 + $0x438] sm:$0xff]
    %v596 = vld [vmem:[%s3 + $0x440] sm:$0xf]
    %v597 = vld [vmem:[%s3 + $0x444] sm:$0xff]
    %v598 = vld [vmem:[%s3 + $0x44c] sm:$0xff]
    %v599 = vld [vmem:[%s3 + $0x454] sm:$0xff]
    %v600 = vld [vmem:[%s3 + $0x45c] sm:$0xff]
    %v601 = vld [vmem:[%s3 + $0x464] sm:$0xff]
    %v602 = vld [vmem:[%s3 + $0x46c] sm:$0xff]
    %v603 = vld [vmem:[%s3 + $0x474] sm:$0xf]
    %v604 = vld [vmem:[%s3 + $0x478] sm:$0xff]
    %v605 = vld [vmem:[%s3 + $0x480] sm:$0xff]
    %v606 = vld [vmem:[%s3 + $0x488] sm:$0xff]
    %v607 = vld [vmem:[%s3 + $0x490] sm:$0xff]
    %v608 = vld [vmem:[%s3 + $0x498] sm:$0xff]
    %v609 = vld [vmem:[%s3 + $0x4a0] sm:$0xff]
    %v610 = vld [vmem:[%s3 + $0x4a8] sm:$0xf]
    %v611 = vld [vmem:[%s3 + $0x4ac] sm:$0xff]
    %v612 = vld [vmem:[%s3 + $0x4b4] sm:$0xff]
    %v613 = vld [vmem:[%s3 + $0x4bc] sm:$0xff]
    %v614 = vld [vmem:[%s3 + $0x4c4] sm:$0xff]
    %v615 = vld [vmem:[%s3 + $0x4cc] sm:$0xff]
    %v616 = vld [vmem:[%s3 + $0x4d4] sm:$0xff]
    %v617 = vld [vmem:[%s3 + $0x4dc] sm:$0xf]
    %v618 = vld [vmem:[%s3 + $0x4e0] sm:$0xff]
    %v619 = vld [vmem:[%s3 + $0x4e8] sm:$0xff]
    %v620 = vld [vmem:[%s3 + $0x4f0] sm:$0xff]
    %v621 = vld [vmem:[%s3 + $0x4f8] sm:$0xff]
    %v622 = vld [vmem:[%s3 + $0x500] sm:$0xff]
    %v623 = vld [vmem:[%s3 + $0x508] sm:$0xff]
    %v624 = vld [vmem:[%s3 + $0x510] sm:$0xf]
    %v625 = vld [vmem:[%s3 + $0x514] sm:$0xff]
    %v626 = vld [vmem:[%s3 + $0x51c] sm:$0xff]
    %v627 = vld [vmem:[%s3 + $0x524] sm:$0xff]
    %v628 = vld [vmem:[%s3 + $0x52c] sm:$0xff]
    %v629 = vld [vmem:[%s3 + $0x534] sm:$0xff]
    %v630 = vld [vmem:[%s3 + $0x53c] sm:$0xff]
    %v631 = vld [vmem:[%s3 + $0x544] sm:$0xf]
    %v632 = vld [vmem:[%s3 + $0x548] sm:$0xff]
    %v633 = vld [vmem:[%s3 + $0x550] sm:$0xff]
    %v634 = vld [vmem:[%s3 + $0x558] sm:$0xff]
    %v635 = vld [vmem:[%s3 + $0x560] sm:$0xff]
    %v636 = vld [vmem:[%s3 + $0x568] sm:$0xff]
    %v637 = vld [vmem:[%s3 + $0x570] sm:$0xff]
    %v638 = vld [vmem:[%s3 + $0x578] sm:$0xf]
    %v639 = vld [vmem:[%s3 + $0x57c] sm:$0xff]
    %v640 = vld [vmem:[%s3 + $0x584] sm:$0xff]
    %v641 = vld [vmem:[%s3 + $0x58c] sm:$0xff]
    %v642 = vld [vmem:[%s3 + $0x594] sm:$0xff]
    %v643 = vld [vmem:[%s3 + $0x59c] sm:$0xff]
    %v644 = vld [vmem:[%s3 + $0x5a4] sm:$0xff]
    %v645 = vld [vmem:[%s3 + $0x5ac] sm:$0xf]
    %v646 = vld [vmem:[%s3 + $0x5b0] sm:$0xff]
    %v647 = vld [vmem:[%s3 + $0x5b8] sm:$0xff]
    %v648 = vld [vmem:[%s3 + $0x5c0] sm:$0xff]
    %v649 = vld [vmem:[%s3 + $0x5c8] sm:$0xff]
    %v650 = vld [vmem:[%s3 + $0x5d0] sm:$0xff]
    %v651 = vld [vmem:[%s3 + $0x5d8] sm:$0xff]
    %v652 = vld [vmem:[%s3 + $0x5e0] sm:$0xf]
    %v653 = vld [vmem:[%s3 + $0x5e4] sm:$0xff]
    %v654 = vld [vmem:[%s3 + $0x5ec] sm:$0xff]
    %v655 = vld [vmem:[%s3 + $0x5f4] sm:$0xff]
    %v656 = vld [vmem:[%s3 + $0x5fc] sm:$0xff]
    %v657 = vld [vmem:[%s3 + $0x604] sm:$0xff]
    %v658 = vld [vmem:[%s3 + $0x60c] sm:$0xff]
    %v659 = vld [vmem:[%s3 + $0x614] sm:$0xf]
    %v660 = vld [vmem:[%s3 + $0x618] sm:$0xff]
    %v661 = vld [vmem:[%s3 + $0x620] sm:$0xff]
    %v662 = vld [vmem:[%s3 + $0x628] sm:$0xff]
    %v663 = vld [vmem:[%s3 + $0x630] sm:$0xff]
    %v664 = vld [vmem:[%s3 + $0x638] sm:$0xff]
    %v665 = vld [vmem:[%s3 + $0x640] sm:$0xff]
    %v666 = vld [vmem:[%s3 + $0x648] sm:$0xf]
    %v667 = vld [vmem:[%s3 + $0x64c] sm:$0xff]
    %v668 = vld [vmem:[%s3 + $0x654] sm:$0xff]
    %v669 = vld [vmem:[%s3 + $0x65c] sm:$0xff]
    %v670 = vld [vmem:[%s3 + $0x664] sm:$0xff]
    %v671 = vld [vmem:[%s3 + $0x66c] sm:$0xff]
    %v672 = vld [vmem:[%s3 + $0x674] sm:$0xff]
    %v673 = vld [vmem:[%s3 + $0x67c] sm:$0xf]
    %v674 = vld [vmem:[%s4] sm:$0xff]
    %v675 = vld [vmem:[%s4 + $0x8] sm:$0x1f]
    %v678 = vperm.slane %v674, 0
    %v679 = vperm.slane %v674, 1
    %v680 = vperm.slane %v674, 2
    %v681 = vperm.slane %v674, 3
    %v682 = vperm.slane %v674, 4
    %v683 = vperm.slane %v674, 5
    %v684 = vperm.slane %v674, 6
    %v685 = vperm.slane %v674, 7
    %v686 = vperm.slane %v675, 0
    %v687 = vperm.slane %v675, 1
    %v688 = vperm.slane %v675, 2
    %v689 = vperm.slane %v675, 3
    %v690 = vperm.slane %v675, 4
    %v928 = vunpack.c.l.b16 %v450
    %v929 = vunpack.c.h.b16 %v450
    %v930 = vunpack.c.l.b16 %v451
    %v931 = vunpack.c.h.b16 %v451
    %v932 = vunpack.c.l.b16 %v452
    %v933 = vunpack.c.h.b16 %v452
    %v934 = vunpack.c.l.b16 %v453
    %v935 = vunpack.c.h.b16 %v453
    %v936 = vunpack.c.l.b16 %v454
    %v937 = vunpack.c.h.b16 %v454
    %v938 = vunpack.c.l.b16 %v455
    %v939 = vunpack.c.h.b16 %v455
    %v940 = vunpack.c.l.b16 %v456
    %v941 = vunpack.c.l.b16 %v457
    %v942 = vunpack.c.h.b16 %v457
    %v943 = vunpack.c.l.b16 %v458
    %v944 = vunpack.c.h.b16 %v458
    %v945 = vunpack.c.l.b16 %v459
    %v946 = vunpack.c.h.b16 %v459
    %v947 = vunpack.c.l.b16 %v460
    %v948 = vunpack.c.h.b16 %v460
    %v949 = vunpack.c.l.b16 %v461
    %v950 = vunpack.c.h.b16 %v461
    %v951 = vunpack.c.l.b16 %v462
    %v952 = vunpack.c.h.b16 %v462
    %v953 = vunpack.c.l.b16 %v463
    %v954 = vunpack.c.l.b16 %v464
    %v955 = vunpack.c.h.b16 %v464
    %v956 = vunpack.c.l.b16 %v465
    %v957 = vunpack.c.h.b16 %v465
    %v958 = vunpack.c.l.b16 %v466
    %v959 = vunpack.c.h.b16 %v466
    %v960 = vunpack.c.l.b16 %v467
    %v961 = vunpack.c.h.b16 %v467
    %v962 = vunpack.c.l.b16 %v468
    %v963 = vunpack.c.h.b16 %v468
    %v964 = vunpack.c.l.b16 %v469
    %v965 = vunpack.c.h.b16 %v469
    %v966 = vunpack.c.l.b16 %v470
    %v967 = vunpack.c.l.b16 %v471
    %v968 = vunpack.c.h.b16 %v471
    %v969 = vunpack.c.l.b16 %v472
    %v970 = vunpack.c.h.b16 %v472
    %v971 = vunpack.c.l.b16 %v473
    %v972 = vunpack.c.h.b16 %v473
    %v973 = vunpack.c.l.b16 %v474
    %v974 = vunpack.c.h.b16 %v474
    %v975 = vunpack.c.l.b16 %v475
    %v976 = vunpack.c.h.b16 %v475
    %v977 = vunpack.c.l.b16 %v476
    %v978 = vunpack.c.h.b16 %v476
    %v979 = vunpack.c.l.b16 %v477
    %v980 = vunpack.c.l.b16 %v478
    %v981 = vunpack.c.h.b16 %v478
    %v982 = vunpack.c.l.b16 %v479
    %v983 = vunpack.c.h.b16 %v479
    %v984 = vunpack.c.l.b16 %v480
    %v985 = vunpack.c.h.b16 %v480
    %v986 = vunpack.c.l.b16 %v481
    %v987 = vunpack.c.h.b16 %v481
    %v988 = vunpack.c.l.b16 %v482
    %v989 = vunpack.c.h.b16 %v482
    %v990 = vunpack.c.l.b16 %v483
    %v991 = vunpack.c.h.b16 %v483
    %v992 = vunpack.c.l.b16 %v484
    %v993 = vunpack.c.l.b16 %v485
    %v994 = vunpack.c.h.b16 %v485
    %v995 = vunpack.c.l.b16 %v486
    %v996 = vunpack.c.h.b16 %v486
    %v997 = vunpack.c.l.b16 %v487
    %v998 = vunpack.c.h.b16 %v487
    %v999 = vunpack.c.l.b16 %v488
    %v1000 = vunpack.c.h.b16 %v488
    %v1001 = vunpack.c.l.b16 %v489
    %v1002 = vunpack.c.h.b16 %v489
    %v1003 = vunpack.c.l.b16 %v490
    %v1004 = vunpack.c.h.b16 %v490
    %v1005 = vunpack.c.l.b16 %v491
    %v1006 = vunpack.c.l.b16 %v492
    %v1007 = vunpack.c.h.b16 %v492
    %v1008 = vunpack.c.l.b16 %v493
    %v1009 = vunpack.c.h.b16 %v493
    %v1010 = vunpack.c.l.b16 %v494
    %v1011 = vunpack.c.h.b16 %v494
    %v1012 = vunpack.c.l.b16 %v495
    %v1013 = vunpack.c.h.b16 %v495
    %v1014 = vunpack.c.l.b16 %v496
    %v1015 = vunpack.c.h.b16 %v496
    %v1016 = vunpack.c.l.b16 %v497
    %v1017 = vunpack.c.h.b16 %v497
    %v1018 = vunpack.c.l.b16 %v498
    %v1019 = vunpack.c.l.b16 %v499
    %v1020 = vunpack.c.h.b16 %v499
    %v1021 = vunpack.c.l.b16 %v500
    %v1022 = vunpack.c.h.b16 %v500
    %v1023 = vunpack.c.l.b16 %v501
    %v1024 = vunpack.c.h.b16 %v501
    %v1025 = vunpack.c.l.b16 %v502
    %v1026 = vunpack.c.h.b16 %v502
    %v1027 = vunpack.c.l.b16 %v503
    %v1028 = vunpack.c.h.b16 %v503
    %v1029 = vunpack.c.l.b16 %v504
    %v1030 = vunpack.c.h.b16 %v504
    %v1031 = vunpack.c.l.b16 %v505
    %v1032 = vunpack.c.l.b16 %v506
    %v1033 = vunpack.c.h.b16 %v506
    %v1034 = vunpack.c.l.b16 %v507
    %v1035 = vunpack.c.h.b16 %v507
    %v1036 = vunpack.c.l.b16 %v508
    %v1037 = vunpack.c.h.b16 %v508
    %v1038 = vunpack.c.l.b16 %v509
    %v1039 = vunpack.c.h.b16 %v509
    %v1040 = vunpack.c.l.b16 %v510
    %v1041 = vunpack.c.h.b16 %v510
    %v1042 = vunpack.c.l.b16 %v511
    %v1043 = vunpack.c.h.b16 %v511
    %v1044 = vunpack.c.l.b16 %v512
    %v1045 = vunpack.c.l.b16 %v513
    %v1046 = vunpack.c.h.b16 %v513
    %v1047 = vunpack.c.l.b16 %v514
    %v1048 = vunpack.c.h.b16 %v514
    %v1049 = vunpack.c.l.b16 %v515
    %v1050 = vunpack.c.h.b16 %v515
    %v1051 = vunpack.c.l.b16 %v516
    %v1052 = vunpack.c.h.b16 %v516
    %v1053 = vunpack.c.l.b16 %v517
    %v1054 = vunpack.c.h.b16 %v517
    %v1055 = vunpack.c.l.b16 %v518
    %v1056 = vunpack.c.h.b16 %v518
    %v1057 = vunpack.c.l.b16 %v519
    %v1058 = vunpack.c.l.b16 %v520
    %v1059 = vunpack.c.h.b16 %v520
    %v1060 = vunpack.c.l.b16 %v521
    %v1061 = vunpack.c.h.b16 %v521
    %v1062 = vunpack.c.l.b16 %v522
    %v1063 = vunpack.c.h.b16 %v522
    %v1064 = vunpack.c.l.b16 %v523
    %v1065 = vunpack.c.h.b16 %v523
    %v1066 = vunpack.c.l.b16 %v524
    %v1067 = vunpack.c.h.b16 %v524
    %v1068 = vunpack.c.l.b16 %v525
    %v1069 = vunpack.c.h.b16 %v525
    %v1070 = vunpack.c.l.b16 %v526
    %v1071 = vunpack.c.l.b16 %v527
    %v1072 = vunpack.c.h.b16 %v527
    %v1073 = vunpack.c.l.b16 %v528
    %v1074 = vunpack.c.h.b16 %v528
    %v1075 = vunpack.c.l.b16 %v529
    %v1076 = vunpack.c.h.b16 %v529
    %v1077 = vunpack.c.l.b16 %v530
    %v1078 = vunpack.c.h.b16 %v530
    %v1079 = vunpack.c.l.b16 %v531
    %v1080 = vunpack.c.h.b16 %v531
    %v1081 = vunpack.c.l.b16 %v532
    %v1082 = vunpack.c.h.b16 %v532
    %v1083 = vunpack.c.l.b16 %v533
    %v1084 = vunpack.c.l.b16 %v534
    %v1085 = vunpack.c.h.b16 %v534
    %v1086 = vunpack.c.l.b16 %v535
    %v1087 = vunpack.c.h.b16 %v535
    %v1088 = vunpack.c.l.b16 %v536
    %v1089 = vunpack.c.h.b16 %v536
    %v1090 = vunpack.c.l.b16 %v537
    %v1091 = vunpack.c.h.b16 %v537
    %v1092 = vunpack.c.l.b16 %v538
    %v1093 = vunpack.c.h.b16 %v538
    %v1094 = vunpack.c.l.b16 %v539
    %v1095 = vunpack.c.h.b16 %v539
    %v1096 = vunpack.c.l.b16 %v540
    %v1097 = vunpack.c.l.b16 %v541
    %v1098 = vunpack.c.h.b16 %v541
    %v1099 = vunpack.c.l.b16 %v542
    %v1100 = vunpack.c.h.b16 %v542
    %v1101 = vunpack.c.l.b16 %v543
    %v1102 = vunpack.c.h.b16 %v543
    %v1103 = vunpack.c.l.b16 %v544
    %v1104 = vunpack.c.h.b16 %v544
    %v1105 = vunpack.c.l.b16 %v545
    %v1106 = vunpack.c.h.b16 %v545
    %v1107 = vunpack.c.l.b16 %v546
    %v1108 = vunpack.c.h.b16 %v546
    %v1109 = vunpack.c.l.b16 %v547
    %v1110 = vunpack.c.l.b16 %v548
    %v1111 = vunpack.c.h.b16 %v548
    %v1112 = vunpack.c.l.b16 %v549
    %v1113 = vunpack.c.h.b16 %v549
    %v1114 = vunpack.c.l.b16 %v550
    %v1115 = vunpack.c.h.b16 %v550
    %v1116 = vunpack.c.l.b16 %v551
    %v1117 = vunpack.c.h.b16 %v551
    %v1118 = vunpack.c.l.b16 %v552
    %v1119 = vunpack.c.h.b16 %v552
    %v1120 = vunpack.c.l.b16 %v553
    %v1121 = vunpack.c.h.b16 %v553
    %v1122 = vunpack.c.l.b16 %v554
    %v1123 = vunpack.c.l.b16 %v555
    %v1124 = vunpack.c.h.b16 %v555
    %v1125 = vunpack.c.l.b16 %v556
    %v1126 = vunpack.c.h.b16 %v556
    %v1127 = vunpack.c.l.b16 %v557
    %v1128 = vunpack.c.h.b16 %v557
    %v1129 = vunpack.c.l.b16 %v558
    %v1130 = vunpack.c.h.b16 %v558
    %v1131 = vunpack.c.l.b16 %v559
    %v1132 = vunpack.c.h.b16 %v559
    %v1133 = vunpack.c.l.b16 %v560
    %v1134 = vunpack.c.h.b16 %v560
    %v1135 = vunpack.c.l.b16 %v561
    %v1136 = vunpack.c.l.b16 %v562
    %v1137 = vunpack.c.h.b16 %v562
    %v1138 = vunpack.c.l.b16 %v563
    %v1139 = vunpack.c.h.b16 %v563
    %v1140 = vunpack.c.l.b16 %v564
    %v1141 = vunpack.c.h.b16 %v564
    %v1142 = vunpack.c.l.b16 %v565
    %v1143 = vunpack.c.h.b16 %v565
    %v1144 = vunpack.c.l.b16 %v566
    %v1145 = vunpack.c.h.b16 %v566
    %v1146 = vunpack.c.l.b16 %v567
    %v1147 = vunpack.c.h.b16 %v567
    %v1148 = vunpack.c.l.b16 %v568
    %v1149 = vunpack.c.l.b16 %v569
    %v1150 = vunpack.c.h.b16 %v569
    %v1151 = vunpack.c.l.b16 %v570
    %v1152 = vunpack.c.h.b16 %v570
    %v1153 = vunpack.c.l.b16 %v571
    %v1154 = vunpack.c.h.b16 %v571
    %v1155 = vunpack.c.l.b16 %v572
    %v1156 = vunpack.c.h.b16 %v572
    %v1157 = vunpack.c.l.b16 %v573
    %v1158 = vunpack.c.h.b16 %v573
    %v1159 = vunpack.c.l.b16 %v574
    %v1160 = vunpack.c.h.b16 %v574
    %v1161 = vunpack.c.l.b16 %v575
    %v1162 = vunpack.c.l.b16 %v576
    %v1163 = vunpack.c.h.b16 %v576
    %v1164 = vunpack.c.l.b16 %v577
    %v1165 = vunpack.c.h.b16 %v577
    %v1166 = vunpack.c.l.b16 %v578
    %v1167 = vunpack.c.h.b16 %v578
    %v1168 = vunpack.c.l.b16 %v579
    %v1169 = vunpack.c.h.b16 %v579
    %v1170 = vunpack.c.l.b16 %v580
    %v1171 = vunpack.c.h.b16 %v580
    %v1172 = vunpack.c.l.b16 %v581
    %v1173 = vunpack.c.h.b16 %v581
    %v1174 = vunpack.c.l.b16 %v582
    %v1175 = vunpack.c.l.b16 %v583
    %v1176 = vunpack.c.h.b16 %v583
    %v1177 = vunpack.c.l.b16 %v584
    %v1178 = vunpack.c.h.b16 %v584
    %v1179 = vunpack.c.l.b16 %v585
    %v1180 = vunpack.c.h.b16 %v585
    %v1181 = vunpack.c.l.b16 %v586
    %v1182 = vunpack.c.h.b16 %v586
    %v1183 = vunpack.c.l.b16 %v587
    %v1184 = vunpack.c.h.b16 %v587
    %v1185 = vunpack.c.l.b16 %v588
    %v1186 = vunpack.c.h.b16 %v588
    %v1187 = vunpack.c.l.b16 %v589
    %v1188 = vunpack.c.l.b16 %v590
    %v1189 = vunpack.c.h.b16 %v590
    %v1190 = vunpack.c.l.b16 %v591
    %v1191 = vunpack.c.h.b16 %v591
    %v1192 = vunpack.c.l.b16 %v592
    %v1193 = vunpack.c.h.b16 %v592
    %v1194 = vunpack.c.l.b16 %v593
    %v1195 = vunpack.c.h.b16 %v593
    %v1196 = vunpack.c.l.b16 %v594
    %v1197 = vunpack.c.h.b16 %v594
    %v1198 = vunpack.c.l.b16 %v595
    %v1199 = vunpack.c.h.b16 %v595
    %v1200 = vunpack.c.l.b16 %v596
    %v1201 = vunpack.c.l.b16 %v597
    %v1202 = vunpack.c.h.b16 %v597
    %v1203 = vunpack.c.l.b16 %v598
    %v1204 = vunpack.c.h.b16 %v598
    %v1205 = vunpack.c.l.b16 %v599
    %v1206 = vunpack.c.h.b16 %v599
    %v1207 = vunpack.c.l.b16 %v600
    %v1208 = vunpack.c.h.b16 %v600
    %v1209 = vunpack.c.l.b16 %v601
    %v1210 = vunpack.c.h.b16 %v601
    %v1211 = vunpack.c.l.b16 %v602
    %v1212 = vunpack.c.h.b16 %v602
    %v1213 = vunpack.c.l.b16 %v603
    %v1214 = vunpack.c.l.b16 %v604
    %v1215 = vunpack.c.h.b16 %v604
    %v1216 = vunpack.c.l.b16 %v605
    %v1217 = vunpack.c.h.b16 %v605
    %v1218 = vunpack.c.l.b16 %v606
    %v1219 = vunpack.c.h.b16 %v606
    %v1220 = vunpack.c.l.b16 %v607
    %v1221 = vunpack.c.h.b16 %v607
    %v1222 = vunpack.c.l.b16 %v608
    %v1223 = vunpack.c.h.b16 %v608
    %v1224 = vunpack.c.l.b16 %v609
    %v1225 = vunpack.c.h.b16 %v609
    %v1226 = vunpack.c.l.b16 %v610
    %v1227 = vunpack.c.l.b16 %v611
    %v1228 = vunpack.c.h.b16 %v611
    %v1229 = vunpack.c.l.b16 %v612
    %v1230 = vunpack.c.h.b16 %v612
    %v1231 = vunpack.c.l.b16 %v613
    %v1232 = vunpack.c.h.b16 %v613
    %v1233 = vunpack.c.l.b16 %v614
    %v1234 = vunpack.c.h.b16 %v614
    %v1235 = vunpack.c.l.b16 %v615
    %v1236 = vunpack.c.h.b16 %v615
    %v1237 = vunpack.c.l.b16 %v616
    %v1238 = vunpack.c.h.b16 %v616
    %v1239 = vunpack.c.l.b16 %v617
    %v1240 = vunpack.c.l.b16 %v618
    %v1241 = vunpack.c.h.b16 %v618
    %v1242 = vunpack.c.l.b16 %v619
    %v1243 = vunpack.c.h.b16 %v619
    %v1244 = vunpack.c.l.b16 %v620
    %v1245 = vunpack.c.h.b16 %v620
    %v1246 = vunpack.c.l.b16 %v621
    %v1247 = vunpack.c.h.b16 %v621
    %v1248 = vunpack.c.l.b16 %v622
    %v1249 = vunpack.c.h.b16 %v622
    %v1250 = vunpack.c.l.b16 %v623
    %v1251 = vunpack.c.h.b16 %v623
    %v1252 = vunpack.c.l.b16 %v624
    %v1253 = vunpack.c.l.b16 %v625
    %v1254 = vunpack.c.h.b16 %v625
    %v1255 = vunpack.c.l.b16 %v626
    %v1256 = vunpack.c.h.b16 %v626
    %v1257 = vunpack.c.l.b16 %v627
    %v1258 = vunpack.c.h.b16 %v627
    %v1259 = vunpack.c.l.b16 %v628
    %v1260 = vunpack.c.h.b16 %v628
    %v1261 = vunpack.c.l.b16 %v629
    %v1262 = vunpack.c.h.b16 %v629
    %v1263 = vunpack.c.l.b16 %v630
    %v1264 = vunpack.c.h.b16 %v630
    %v1265 = vunpack.c.l.b16 %v631
    %v1266 = vunpack.c.l.b16 %v632
    %v1267 = vunpack.c.h.b16 %v632
    %v1268 = vunpack.c.l.b16 %v633
    %v1269 = vunpack.c.h.b16 %v633
    %v1270 = vunpack.c.l.b16 %v634
    %v1271 = vunpack.c.h.b16 %v634
    %v1272 = vunpack.c.l.b16 %v635
    %v1273 = vunpack.c.h.b16 %v635
    %v1274 = vunpack.c.l.b16 %v636
    %v1275 = vunpack.c.h.b16 %v636
    %v1276 = vunpack.c.l.b16 %v637
    %v1277 = vunpack.c.h.b16 %v637
    %v1278 = vunpack.c.l.b16 %v638
    %v1279 = vunpack.c.l.b16 %v639
    %v1280 = vunpack.c.h.b16 %v639
    %v1281 = vunpack.c.l.b16 %v640
    %v1282 = vunpack.c.h.b16 %v640
    %v1283 = vunpack.c.l.b16 %v641
    %v1284 = vunpack.c.h.b16 %v641
    %v1285 = vunpack.c.l.b16 %v642
    %v1286 = vunpack.c.h.b16 %v642
    %v1287 = vunpack.c.l.b16 %v643
    %v1288 = vunpack.c.h.b16 %v643
    %v1289 = vunpack.c.l.b16 %v644
    %v1290 = vunpack.c.h.b16 %v644
    %v1291 = vunpack.c.l.b16 %v645
    %v1292 = vunpack.c.l.b16 %v646
    %v1293 = vunpack.c.h.b16 %v646
    %v1294 = vunpack.c.l.b16 %v647
    %v1295 = vunpack.c.h.b16 %v647
    %v1296 = vunpack.c.l.b16 %v648
    %v1297 = vunpack.c.h.b16 %v648
    %v1298 = vunpack.c.l.b16 %v649
    %v1299 = vunpack.c.h.b16 %v649
    %v1300 = vunpack.c.l.b16 %v650
    %v1301 = vunpack.c.h.b16 %v650
    %v1302 = vunpack.c.l.b16 %v651
    %v1303 = vunpack.c.h.b16 %v651
    %v1304 = vunpack.c.l.b16 %v652
    %v1305 = vunpack.c.l.b16 %v653
    %v1306 = vunpack.c.h.b16 %v653
    %v1307 = vunpack.c.l.b16 %v654
    %v1308 = vunpack.c.h.b16 %v654
    %v1309 = vunpack.c.l.b16 %v655
    %v1310 = vunpack.c.h.b16 %v655
    %v1311 = vunpack.c.l.b16 %v656
    %v1312 = vunpack.c.h.b16 %v656
    %v1313 = vunpack.c.l.b16 %v657
    %v1314 = vunpack.c.h.b16 %v657
    %v1315 = vunpack.c.l.b16 %v658
    %v1316 = vunpack.c.h.b16 %v658
    %v1317 = vunpack.c.l.b16 %v659
    %v1318 = vunpack.c.l.b16 %v660
    %v1319 = vunpack.c.h.b16 %v660
    %v1320 = vunpack.c.l.b16 %v661
    %v1321 = vunpack.c.h.b16 %v661
    %v1322 = vunpack.c.l.b16 %v662
    %v1323 = vunpack.c.h.b16 %v662
    %v1324 = vunpack.c.l.b16 %v663
    %v1325 = vunpack.c.h.b16 %v663
    %v1326 = vunpack.c.l.b16 %v664
    %v1327 = vunpack.c.h.b16 %v664
    %v1328 = vunpack.c.l.b16 %v665
    %v1329 = vunpack.c.h.b16 %v665
    %v1330 = vunpack.c.l.b16 %v666
    %v1331 = vunpack.c.l.b16 %v667
    %v1332 = vunpack.c.h.b16 %v667
    %v1333 = vunpack.c.l.b16 %v668
    %v1334 = vunpack.c.h.b16 %v668
    %v1335 = vunpack.c.l.b16 %v669
    %v1336 = vunpack.c.h.b16 %v669
    %v1337 = vunpack.c.l.b16 %v670
    %v1338 = vunpack.c.h.b16 %v670
    %v1339 = vunpack.c.l.b16 %v671
    %v1340 = vunpack.c.h.b16 %v671
    %v1341 = vunpack.c.l.b16 %v672
    %v1342 = vunpack.c.h.b16 %v672
    %v1343 = vunpack.c.l.b16 %v673
    %v1344 = vpack.c.b16 %v941, %v928
    %v1345 = vpack.c.b16 %v942, %v929
    %v1346 = vpack.c.b16 %v943, %v930
    %v1347 = vpack.c.b16 %v944, %v931
    %v1348 = vpack.c.b16 %v945, %v932
    %v1349 = vpack.c.b16 %v946, %v933
    %v1350 = vpack.c.b16 %v947, %v934
    %v1351 = vpack.c.b16 %v948, %v935
    %v1352 = vpack.c.b16 %v949, %v936
    %v1353 = vpack.c.b16 %v950, %v937
    %v1354 = vpack.c.b16 %v951, %v938
    %v1355 = vpack.c.b16 %v952, %v939
    %v1356 = vpack.c.b16 %v953, %v940
    %v1357 = vpack.c.b16 %v967, %v954
    %v1358 = vpack.c.b16 %v968, %v955
    %v1359 = vpack.c.b16 %v969, %v956
    %v1360 = vpack.c.b16 %v970, %v957
    %v1361 = vpack.c.b16 %v971, %v958
    %v1362 = vpack.c.b16 %v972, %v959
    %v1363 = vpack.c.b16 %v973, %v960
    %v1364 = vpack.c.b16 %v974, %v961
    %v1365 = vpack.c.b16 %v975, %v962
    %v1366 = vpack.c.b16 %v976, %v963
    %v1367 = vpack.c.b16 %v977, %v964
    %v1368 = vpack.c.b16 %v978, %v965
    %v1369 = vpack.c.b16 %v979, %v966
    %v1370 = vpack.c.b16 %v993, %v980
    %v1371 = vpack.c.b16 %v994, %v981
    %v1372 = vpack.c.b16 %v995, %v982
    %v1373 = vpack.c.b16 %v996, %v983
    %v1374 = vpack.c.b16 %v997, %v984
    %v1375 = vpack.c.b16 %v998, %v985
    %v1376 = vpack.c.b16 %v999, %v986
    %v1377 = vpack.c.b16 %v1000, %v987
    %v1378 = vpack.c.b16 %v1001, %v988
    %v1379 = vpack.c.b16 %v1002, %v989
    %v1380 = vpack.c.b16 %v1003, %v990
    %v1381 = vpack.c.b16 %v1004, %v991
    %v1382 = vpack.c.b16 %v1005, %v992
    %v1383 = vpack.c.b16 %v1019, %v1006
    %v1384 = vpack.c.b16 %v1020, %v1007
    %v1385 = vpack.c.b16 %v1021, %v1008
    %v1386 = vpack.c.b16 %v1022, %v1009
    %v1387 = vpack.c.b16 %v1023, %v1010
    %v1388 = vpack.c.b16 %v1024, %v1011
    %v1389 = vpack.c.b16 %v1025, %v1012
    %v1390 = vpack.c.b16 %v1026, %v1013
    %v1391 = vpack.c.b16 %v1027, %v1014
    %v1392 = vpack.c.b16 %v1028, %v1015
    %v1393 = vpack.c.b16 %v1029, %v1016
    %v1394 = vpack.c.b16 %v1030, %v1017
    %v1395 = vpack.c.b16 %v1031, %v1018
    %v1396 = vpack.c.b16 %v1045, %v1032
    %v1397 = vpack.c.b16 %v1046, %v1033
    %v1398 = vpack.c.b16 %v1047, %v1034
    %v1399 = vpack.c.b16 %v1048, %v1035
    %v1400 = vpack.c.b16 %v1049, %v1036
    %v1401 = vpack.c.b16 %v1050, %v1037
    %v1402 = vpack.c.b16 %v1051, %v1038
    %v1403 = vpack.c.b16 %v1052, %v1039
    %v1404 = vpack.c.b16 %v1053, %v1040
    %v1405 = vpack.c.b16 %v1054, %v1041
    %v1406 = vpack.c.b16 %v1055, %v1042
    %v1407 = vpack.c.b16 %v1056, %v1043
    %v1408 = vpack.c.b16 %v1057, %v1044
    %v1409 = vpack.c.b16 %v1071, %v1058
    %v1410 = vpack.c.b16 %v1072, %v1059
    %v1411 = vpack.c.b16 %v1073, %v1060
    %v1412 = vpack.c.b16 %v1074, %v1061
    %v1413 = vpack.c.b16 %v1075, %v1062
    %v1414 = vpack.c.b16 %v1076, %v1063
    %v1415 = vpack.c.b16 %v1077, %v1064
    %v1416 = vpack.c.b16 %v1078, %v1065
    %v1417 = vpack.c.b16 %v1079, %v1066
    %v1418 = vpack.c.b16 %v1080, %v1067
    %v1419 = vpack.c.b16 %v1081, %v1068
    %v1420 = vpack.c.b16 %v1082, %v1069
    %v1421 = vpack.c.b16 %v1083, %v1070
    %v1422 = vpack.c.b16 %v1097, %v1084
    %v1423 = vpack.c.b16 %v1098, %v1085
    %v1424 = vpack.c.b16 %v1099, %v1086
    %v1425 = vpack.c.b16 %v1100, %v1087
    %v1426 = vpack.c.b16 %v1101, %v1088
    %v1427 = vpack.c.b16 %v1102, %v1089
    %v1428 = vpack.c.b16 %v1103, %v1090
    %v1429 = vpack.c.b16 %v1104, %v1091
    %v1430 = vpack.c.b16 %v1105, %v1092
    %v1431 = vpack.c.b16 %v1106, %v1093
    %v1432 = vpack.c.b16 %v1107, %v1094
    %v1433 = vpack.c.b16 %v1108, %v1095
    %v1434 = vpack.c.b16 %v1109, %v1096
    %v1435 = vpack.c.b16 %v1123, %v1110
    %v1436 = vpack.c.b16 %v1124, %v1111
    %v1437 = vpack.c.b16 %v1125, %v1112
    %v1438 = vpack.c.b16 %v1126, %v1113
    %v1439 = vpack.c.b16 %v1127, %v1114
    %v1440 = vpack.c.b16 %v1128, %v1115
    %v1441 = vpack.c.b16 %v1129, %v1116
    %v1442 = vpack.c.b16 %v1130, %v1117
    %v1443 = vpack.c.b16 %v1131, %v1118
    %v1444 = vpack.c.b16 %v1132, %v1119
    %v1445 = vpack.c.b16 %v1133, %v1120
    %v1446 = vpack.c.b16 %v1134, %v1121
    %v1447 = vpack.c.b16 %v1135, %v1122
    %v1448 = vpack.c.b16 %v1149, %v1136
    %v1449 = vpack.c.b16 %v1150, %v1137
    %v1450 = vpack.c.b16 %v1151, %v1138
    %v1451 = vpack.c.b16 %v1152, %v1139
    %v1452 = vpack.c.b16 %v1153, %v1140
    %v1453 = vpack.c.b16 %v1154, %v1141
    %v1454 = vpack.c.b16 %v1155, %v1142
    %v1455 = vpack.c.b16 %v1156, %v1143
    %v1456 = vpack.c.b16 %v1157, %v1144
    %v1457 = vpack.c.b16 %v1158, %v1145
    %v1458 = vpack.c.b16 %v1159, %v1146
    %v1459 = vpack.c.b16 %v1160, %v1147
    %v1460 = vpack.c.b16 %v1161, %v1148
    %v1461 = vpack.c.b16 %v1175, %v1162
    %v1462 = vpack.c.b16 %v1176, %v1163
    %v1463 = vpack.c.b16 %v1177, %v1164
    %v1464 = vpack.c.b16 %v1178, %v1165
    %v1465 = vpack.c.b16 %v1179, %v1166
    %v1466 = vpack.c.b16 %v1180, %v1167
    %v1467 = vpack.c.b16 %v1181, %v1168
    %v1468 = vpack.c.b16 %v1182, %v1169
    %v1469 = vpack.c.b16 %v1183, %v1170
    %v1470 = vpack.c.b16 %v1184, %v1171
    %v1471 = vpack.c.b16 %v1185, %v1172
    %v1472 = vpack.c.b16 %v1186, %v1173
    %v1473 = vpack.c.b16 %v1187, %v1174
    %v1474 = vpack.c.b16 %v1201, %v1188
    %v1475 = vpack.c.b16 %v1202, %v1189
    %v1476 = vpack.c.b16 %v1203, %v1190
    %v1477 = vpack.c.b16 %v1204, %v1191
    %v1478 = vpack.c.b16 %v1205, %v1192
    %v1479 = vpack.c.b16 %v1206, %v1193
    %v1480 = vpack.c.b16 %v1207, %v1194
    %v1481 = vpack.c.b16 %v1208, %v1195
    %v1482 = vpack.c.b16 %v1209, %v1196
    %v1483 = vpack.c.b16 %v1210, %v1197
    %v1484 = vpack.c.b16 %v1211, %v1198
    %v1485 = vpack.c.b16 %v1212, %v1199
    %v1486 = vpack.c.b16 %v1213, %v1200
    %v1487 = vpack.c.b16 %v1227, %v1214
    %v1488 = vpack.c.b16 %v1228, %v1215
    %v1489 = vpack.c.b16 %v1229, %v1216
    %v1490 = vpack.c.b16 %v1230, %v1217
    %v1491 = vpack.c.b16 %v1231, %v1218
    %v1492 = vpack.c.b16 %v1232, %v1219
    %v1493 = vpack.c.b16 %v1233, %v1220
    %v1494 = vpack.c.b16 %v1234, %v1221
    %v1495 = vpack.c.b16 %v1235, %v1222
    %v1496 = vpack.c.b16 %v1236, %v1223
    %v1497 = vpack.c.b16 %v1237, %v1224
    %v1498 = vpack.c.b16 %v1238, %v1225
    %v1499 = vpack.c.b16 %v1239, %v1226
    %v1500 = vpack.c.b16 %v1253, %v1240
    %v1501 = vpack.c.b16 %v1254, %v1241
    %v1502 = vpack.c.b16 %v1255, %v1242
    %v1503 = vpack.c.b16 %v1256, %v1243
    %v1504 = vpack.c.b16 %v1257, %v1244
    %v1505 = vpack.c.b16 %v1258, %v1245
    %v1506 = vpack.c.b16 %v1259, %v1246
    %v1507 = vpack.c.b16 %v1260, %v1247
    %v1508 = vpack.c.b16 %v1261, %v1248
    %v1509 = vpack.c.b16 %v1262, %v1249
    %v1510 = vpack.c.b16 %v1263, %v1250
    %v1511 = vpack.c.b16 %v1264, %v1251
    %v1512 = vpack.c.b16 %v1265, %v1252
    %v1513 = vpack.c.b16 %v1279, %v1266
    %v1514 = vpack.c.b16 %v1280, %v1267
    %v1515 = vpack.c.b16 %v1281, %v1268
    %v1516 = vpack.c.b16 %v1282, %v1269
    %v1517 = vpack.c.b16 %v1283, %v1270
    %v1518 = vpack.c.b16 %v1284, %v1271
    %v1519 = vpack.c.b16 %v1285, %v1272
    %v1520 = vpack.c.b16 %v1286, %v1273
    %v1521 = vpack.c.b16 %v1287, %v1274
    %v1522 = vpack.c.b16 %v1288, %v1275
    %v1523 = vpack.c.b16 %v1289, %v1276
    %v1524 = vpack.c.b16 %v1290, %v1277
    %v1525 = vpack.c.b16 %v1291, %v1278
    %v1526 = vpack.c.b16 %v1305, %v1292
    %v1527 = vpack.c.b16 %v1306, %v1293
    %v1528 = vpack.c.b16 %v1307, %v1294
    %v1529 = vpack.c.b16 %v1308, %v1295
    %v1530 = vpack.c.b16 %v1309, %v1296
    %v1531 = vpack.c.b16 %v1310, %v1297
    %v1532 = vpack.c.b16 %v1311, %v1298
    %v1533 = vpack.c.b16 %v1312, %v1299
    %v1534 = vpack.c.b16 %v1313, %v1300
    %v1535 = vpack.c.b16 %v1314, %v1301
    %v1536 = vpack.c.b16 %v1315, %v1302
    %v1537 = vpack.c.b16 %v1316, %v1303
    %v1538 = vpack.c.b16 %v1317, %v1304
    %v1539 = vpack.c.b16 %v1331, %v1318
    %v1540 = vpack.c.b16 %v1332, %v1319
    %v1541 = vpack.c.b16 %v1333, %v1320
    %v1542 = vpack.c.b16 %v1334, %v1321
    %v1543 = vpack.c.b16 %v1335, %v1322
    %v1544 = vpack.c.b16 %v1336, %v1323
    %v1545 = vpack.c.b16 %v1337, %v1324
    %v1546 = vpack.c.b16 %v1338, %v1325
    %v1547 = vpack.c.b16 %v1339, %v1326
    %v1548 = vpack.c.b16 %v1340, %v1327
    %v1549 = vpack.c.b16 %v1341, %v1328
    %v1550 = vpack.c.b16 %v1342, %v1329
    %v1551 = vpack.c.b16 %v1343, %v1330
    %1760 = vmatpush.bf16.msra.mxu0 %v1435
    %1761 = vmatpush.bf16.msra.mxu0 %v1422
    %1762 = vmatpush.bf16.msra.mxu0 %v1409
    %1763 = vmatpush.bf16.msra.mxu0 %v1396
    %1764 = vmatpush.bf16.msra.mxu0 %v1383
    %1765 = vmatpush.bf16.msra.mxu0 %v1370
    %1766 = vmatpush.bf16.msra.mxu0 %v1357
    %1767 = vmatpush.bf16.msra.mxu0 %v1344
    %1768 = vmatmul.bf16.gmra.mxu0 %v448
    %v1769 = vpop.f32.mrf.mxu0
    %v1770 = vadd.f32 %v678, %v1769
    %v1771 = vpop.f32.mrf.mxu0
    %1772 = vdwg.mxu0
    %1773 = vmatpush.bf16.msra.mxu0 %v1539
    %1774 = vmatpush.bf16.msra.mxu0 %v1526
    %1775 = vmatpush.bf16.msra.mxu0 %v1513
    %1776 = vmatpush.bf16.msra.mxu0 %v1500
    %1777 = vmatpush.bf16.msra.mxu0 %v1487
    %1778 = vmatpush.bf16.msra.mxu0 %v1474
    %1779 = vmatpush.bf16.msra.mxu0 %v1461
    %1780 = vmatpush.bf16.msra.mxu0 %v1448
    %1781 = vmatmul.bf16.gmra.mxu0 %v449
    %v1782 = vpop.f32.mrf.mxu0
    %v1783 = vadd.f32 %v1770, %v1782
    %v1784 = vpop.f32.mrf.mxu0
    %1785 = vdwg.mxu0
    %1786 = vmatpush.bf16.msra.mxu0 %v1436
    %1787 = vmatpush.bf16.msra.mxu0 %v1423
    %1788 = vmatpush.bf16.msra.mxu0 %v1410
    %1789 = vmatpush.bf16.msra.mxu0 %v1397
    %1790 = vmatpush.bf16.msra.mxu0 %v1384
    %1791 = vmatpush.bf16.msra.mxu0 %v1371
    %1792 = vmatpush.bf16.msra.mxu0 %v1358
    %1793 = vmatpush.bf16.msra.mxu0 %v1345
    %1794 = vmatmul.bf16.gmra.mxu0 %v448
    %v1795 = vpop.f32.mrf.mxu0
    %v1796 = vadd.f32 %v679, %v1795
    %v1797 = vpop.f32.mrf.mxu0
    %1798 = vdwg.mxu0
    %1799 = vmatpush.bf16.msra.mxu0 %v1540
    %1800 = vmatpush.bf16.msra.mxu0 %v1527
    %1801 = vmatpush.bf16.msra.mxu0 %v1514
    %1802 = vmatpush.bf16.msra.mxu0 %v1501
    %1803 = vmatpush.bf16.msra.mxu0 %v1488
    %1804 = vmatpush.bf16.msra.mxu0 %v1475
    %1805 = vmatpush.bf16.msra.mxu0 %v1462
    %1806 = vmatpush.bf16.msra.mxu0 %v1449
    %1807 = vmatmul.bf16.gmra.mxu0 %v449
    %v1808 = vpop.f32.mrf.mxu0
    %v1809 = vadd.f32 %v1796, %v1808
    %v1810 = vpop.f32.mrf.mxu0
    %1811 = vdwg.mxu0
    %1812 = vmatpush.bf16.msra.mxu0 %v1437
    %1813 = vmatpush.bf16.msra.mxu0 %v1424
    %1814 = vmatpush.bf16.msra.mxu0 %v1411
    %1815 = vmatpush.bf16.msra.mxu0 %v1398
    %1816 = vmatpush.bf16.msra.mxu0 %v1385
    %1817 = vmatpush.bf16.msra.mxu0 %v1372
    %1818 = vmatpush.bf16.msra.mxu0 %v1359
    %1819 = vmatpush.bf16.msra.mxu0 %v1346
    %1820 = vmatmul.bf16.gmra.mxu0 %v448
    %v1821 = vpop.f32.mrf.mxu0
    %v1822 = vadd.f32 %v680, %v1821
    %v1823 = vpop.f32.mrf.mxu0
    %1824 = vdwg.mxu0
    %1825 = vmatpush.bf16.msra.mxu0 %v1541
    %1826 = vmatpush.bf16.msra.mxu0 %v1528
    %1827 = vmatpush.bf16.msra.mxu0 %v1515
    %1828 = vmatpush.bf16.msra.mxu0 %v1502
    %1829 = vmatpush.bf16.msra.mxu0 %v1489
    %1830 = vmatpush.bf16.msra.mxu0 %v1476
    %1831 = vmatpush.bf16.msra.mxu0 %v1463
    %1832 = vmatpush.bf16.msra.mxu0 %v1450
    %1833 = vmatmul.bf16.gmra.mxu0 %v449
    %v1834 = vpop.f32.mrf.mxu0
    %v1835 = vadd.f32 %v1822, %v1834
    %v1836 = vpop.f32.mrf.mxu0
    %1837 = vdwg.mxu0
    %1838 = vmatpush.bf16.msra.mxu0 %v1438
    %1839 = vmatpush.bf16.msra.mxu0 %v1425
    %1840 = vmatpush.bf16.msra.mxu0 %v1412
    %1841 = vmatpush.bf16.msra.mxu0 %v1399
    %1842 = vmatpush.bf16.msra.mxu0 %v1386
    %1843 = vmatpush.bf16.msra.mxu0 %v1373
    %1844 = vmatpush.bf16.msra.mxu0 %v1360
    %1845 = vmatpush.bf16.msra.mxu0 %v1347
    %1846 = vmatmul.bf16.gmra.mxu0 %v448
    %v1847 = vpop.f32.mrf.mxu0
    %v1848 = vadd.f32 %v681, %v1847
    %v1849 = vpop.f32.mrf.mxu0
    %1850 = vdwg.mxu0
    %1851 = vmatpush.bf16.msra.mxu0 %v1542
    %1852 = vmatpush.bf16.msra.mxu0 %v1529
    %1853 = vmatpush.bf16.msra.mxu0 %v1516
    %1854 = vmatpush.bf16.msra.mxu0 %v1503
    %1855 = vmatpush.bf16.msra.mxu0 %v1490
    %1856 = vmatpush.bf16.msra.mxu0 %v1477
    %1857 = vmatpush.bf16.msra.mxu0 %v1464
    %1858 = vmatpush.bf16.msra.mxu0 %v1451
    %1859 = vmatmul.bf16.gmra.mxu0 %v449
    %v1860 = vpop.f32.mrf.mxu0
    %v1861 = vadd.f32 %v1848, %v1860
    %v1862 = vpop.f32.mrf.mxu0
    %1863 = vdwg.mxu0
    %1864 = vmatpush.bf16.msra.mxu0 %v1439
    %1865 = vmatpush.bf16.msra.mxu0 %v1426
    %1866 = vmatpush.bf16.msra.mxu0 %v1413
    %1867 = vmatpush.bf16.msra.mxu0 %v1400
    %1868 = vmatpush.bf16.msra.mxu0 %v1387
    %1869 = vmatpush.bf16.msra.mxu0 %v1374
    %1870 = vmatpush.bf16.msra.mxu0 %v1361
    %1871 = vmatpush.bf16.msra.mxu0 %v1348
    %1872 = vmatmul.bf16.gmra.mxu0 %v448
    %v1873 = vpop.f32.mrf.mxu0
    %v1874 = vadd.f32 %v682, %v1873
    %v1875 = vpop.f32.mrf.mxu0
    %1876 = vdwg.mxu0
    %1877 = vmatpush.bf16.msra.mxu0 %v1543
    %1878 = vmatpush.bf16.msra.mxu0 %v1530
    %1879 = vmatpush.bf16.msra.mxu0 %v1517
    %1880 = vmatpush.bf16.msra.mxu0 %v1504
    %1881 = vmatpush.bf16.msra.mxu0 %v1491
    %1882 = vmatpush.bf16.msra.mxu0 %v1478
    %1883 = vmatpush.bf16.msra.mxu0 %v1465
    %1884 = vmatpush.bf16.msra.mxu0 %v1452
    %1885 = vmatmul.bf16.gmra.mxu0 %v449
    %v1886 = vpop.f32.mrf.mxu0
    %v1887 = vadd.f32 %v1874, %v1886
    %v1888 = vpop.f32.mrf.mxu0
    %1889 = vdwg.mxu0
    %1890 = vmatpush.bf16.msra.mxu0 %v1440
    %1891 = vmatpush.bf16.msra.mxu0 %v1427
    %1892 = vmatpush.bf16.msra.mxu0 %v1414
    %1893 = vmatpush.bf16.msra.mxu0 %v1401
    %1894 = vmatpush.bf16.msra.mxu0 %v1388
    %1895 = vmatpush.bf16.msra.mxu0 %v1375
    %1896 = vmatpush.bf16.msra.mxu0 %v1362
    %1897 = vmatpush.bf16.msra.mxu0 %v1349
    %1898 = vmatmul.bf16.gmra.mxu0 %v448
    %v1899 = vpop.f32.mrf.mxu0
    %v1900 = vadd.f32 %v683, %v1899
    %v1901 = vpop.f32.mrf.mxu0
    %1902 = vdwg.mxu0
    %1903 = vmatpush.bf16.msra.mxu0 %v1544
    %1904 = vmatpush.bf16.msra.mxu0 %v1531
    %1905 = vmatpush.bf16.msra.mxu0 %v1518
    %1906 = vmatpush.bf16.msra.mxu0 %v1505
    %1907 = vmatpush.bf16.msra.mxu0 %v1492
    %1908 = vmatpush.bf16.msra.mxu0 %v1479
    %1909 = vmatpush.bf16.msra.mxu0 %v1466
    %1910 = vmatpush.bf16.msra.mxu0 %v1453
    %1911 = vmatmul.bf16.gmra.mxu0 %v449
    %v1912 = vpop.f32.mrf.mxu0
    %v1913 = vadd.f32 %v1900, %v1912
    %v1914 = vpop.f32.mrf.mxu0
    %1915 = vdwg.mxu0
    %1916 = vmatpush.bf16.msra.mxu0 %v1441
    %1917 = vmatpush.bf16.msra.mxu0 %v1428
    %1918 = vmatpush.bf16.msra.mxu0 %v1415
    %1919 = vmatpush.bf16.msra.mxu0 %v1402
    %1920 = vmatpush.bf16.msra.mxu0 %v1389
    %1921 = vmatpush.bf16.msra.mxu0 %v1376
    %1922 = vmatpush.bf16.msra.mxu0 %v1363
    %1923 = vmatpush.bf16.msra.mxu0 %v1350
    %1924 = vmatmul.bf16.gmra.mxu0 %v448
    %v1925 = vpop.f32.mrf.mxu0
    %v1926 = vadd.f32 %v684, %v1925
    %v1927 = vpop.f32.mrf.mxu0
    %1928 = vdwg.mxu0
    %1929 = vmatpush.bf16.msra.mxu0 %v1545
    %1930 = vmatpush.bf16.msra.mxu0 %v1532
    %1931 = vmatpush.bf16.msra.mxu0 %v1519
    %1932 = vmatpush.bf16.msra.mxu0 %v1506
    %1933 = vmatpush.bf16.msra.mxu0 %v1493
    %1934 = vmatpush.bf16.msra.mxu0 %v1480
    %1935 = vmatpush.bf16.msra.mxu0 %v1467
    %1936 = vmatpush.bf16.msra.mxu0 %v1454
    %1937 = vmatmul.bf16.gmra.mxu0 %v449
    %v1938 = vpop.f32.mrf.mxu0
    %v1939 = vadd.f32 %v1926, %v1938
    %v1940 = vpop.f32.mrf.mxu0
    %1941 = vdwg.mxu0
    %1942 = vmatpush.bf16.msra.mxu0 %v1442
    %1943 = vmatpush.bf16.msra.mxu0 %v1429
    %1944 = vmatpush.bf16.msra.mxu0 %v1416
    %1945 = vmatpush.bf16.msra.mxu0 %v1403
    %1946 = vmatpush.bf16.msra.mxu0 %v1390
    %1947 = vmatpush.bf16.msra.mxu0 %v1377
    %1948 = vmatpush.bf16.msra.mxu0 %v1364
    %1949 = vmatpush.bf16.msra.mxu0 %v1351
    %1950 = vmatmul.bf16.gmra.mxu0 %v448
    %v1951 = vpop.f32.mrf.mxu0
    %v1952 = vadd.f32 %v685, %v1951
    %v1953 = vpop.f32.mrf.mxu0
    %1954 = vdwg.mxu0
    %1955 = vmatpush.bf16.msra.mxu0 %v1546
    %1956 = vmatpush.bf16.msra.mxu0 %v1533
    %1957 = vmatpush.bf16.msra.mxu0 %v1520
    %1958 = vmatpush.bf16.msra.mxu0 %v1507
    %1959 = vmatpush.bf16.msra.mxu0 %v1494
    %1960 = vmatpush.bf16.msra.mxu0 %v1481
    %1961 = vmatpush.bf16.msra.mxu0 %v1468
    %1962 = vmatpush.bf16.msra.mxu0 %v1455
    %1963 = vmatmul.bf16.gmra.mxu0 %v449
    %v1964 = vpop.f32.mrf.mxu0
    %v1965 = vadd.f32 %v1952, %v1964
    %v1966 = vpop.f32.mrf.mxu0
    %1967 = vdwg.mxu0
    %1968 = vmatpush.bf16.msra.mxu0 %v1443
    %1969 = vmatpush.bf16.msra.mxu0 %v1430
    %1970 = vmatpush.bf16.msra.mxu0 %v1417
    %1971 = vmatpush.bf16.msra.mxu0 %v1404
    %1972 = vmatpush.bf16.msra.mxu0 %v1391
    %1973 = vmatpush.bf16.msra.mxu0 %v1378
    %1974 = vmatpush.bf16.msra.mxu0 %v1365
    %1975 = vmatpush.bf16.msra.mxu0 %v1352
    %1976 = vmatmul.bf16.gmra.mxu0 %v448
    %v1977 = vpop.f32.mrf.mxu0
    %v1978 = vadd.f32 %v686, %v1977
    %v1979 = vpop.f32.mrf.mxu0
    %1980 = vdwg.mxu0
    %1981 = vmatpush.bf16.msra.mxu0 %v1547
    %1982 = vmatpush.bf16.msra.mxu0 %v1534
    %1983 = vmatpush.bf16.msra.mxu0 %v1521
    %1984 = vmatpush.bf16.msra.mxu0 %v1508
    %1985 = vmatpush.bf16.msra.mxu0 %v1495
    %1986 = vmatpush.bf16.msra.mxu0 %v1482
    %1987 = vmatpush.bf16.msra.mxu0 %v1469
    %1988 = vmatpush.bf16.msra.mxu0 %v1456
    %1989 = vmatmul.bf16.gmra.mxu0 %v449
    %v1990 = vpop.f32.mrf.mxu0
    %v1991 = vadd.f32 %v1978, %v1990
    %v1992 = vpop.f32.mrf.mxu0
    %1993 = vdwg.mxu0
    %1994 = vmatpush.bf16.msra.mxu0 %v1444
    %1995 = vmatpush.bf16.msra.mxu0 %v1431
    %1996 = vmatpush.bf16.msra.mxu0 %v1418
    %1997 = vmatpush.bf16.msra.mxu0 %v1405
    %1998 = vmatpush.bf16.msra.mxu0 %v1392
    %1999 = vmatpush.bf16.msra.mxu0 %v1379
    %2000 = vmatpush.bf16.msra.mxu0 %v1366
    %2001 = vmatpush.bf16.msra.mxu0 %v1353
    %2002 = vmatmul.bf16.gmra.mxu0 %v448
    %v2003 = vpop.f32.mrf.mxu0
    %v2004 = vadd.f32 %v687, %v2003
    %v2005 = vpop.f32.mrf.mxu0
    %2006 = vdwg.mxu0
    %2007 = vmatpush.bf16.msra.mxu0 %v1548
    %2008 = vmatpush.bf16.msra.mxu0 %v1535
    %2009 = vmatpush.bf16.msra.mxu0 %v1522
    %2010 = vmatpush.bf16.msra.mxu0 %v1509
    %2011 = vmatpush.bf16.msra.mxu0 %v1496
    %2012 = vmatpush.bf16.msra.mxu0 %v1483
    %2013 = vmatpush.bf16.msra.mxu0 %v1470
    %2014 = vmatpush.bf16.msra.mxu0 %v1457
    %2015 = vmatmul.bf16.gmra.mxu0 %v449
    %v2016 = vpop.f32.mrf.mxu0
    %v2017 = vadd.f32 %v2004, %v2016
    %v2018 = vpop.f32.mrf.mxu0
    %2019 = vdwg.mxu0
    %2020 = vmatpush.bf16.msra.mxu0 %v1445
    %2021 = vmatpush.bf16.msra.mxu0 %v1432
    %2022 = vmatpush.bf16.msra.mxu0 %v1419
    %2023 = vmatpush.bf16.msra.mxu0 %v1406
    %2024 = vmatpush.bf16.msra.mxu0 %v1393
    %2025 = vmatpush.bf16.msra.mxu0 %v1380
    %2026 = vmatpush.bf16.msra.mxu0 %v1367
    %2027 = vmatpush.bf16.msra.mxu0 %v1354
    %2028 = vmatmul.bf16.gmra.mxu0 %v448
    %v2029 = vpop.f32.mrf.mxu0
    %v2030 = vadd.f32 %v688, %v2029
    %v2031 = vpop.f32.mrf.mxu0
    %2032 = vdwg.mxu0
    %2033 = vmatpush.bf16.msra.mxu0 %v1549
    %2034 = vmatpush.bf16.msra.mxu0 %v1536
    %2035 = vmatpush.bf16.msra.mxu0 %v1523
    %2036 = vmatpush.bf16.msra.mxu0 %v1510
    %2037 = vmatpush.bf16.msra.mxu0 %v1497
    %2038 = vmatpush.bf16.msra.mxu0 %v1484
    %2039 = vmatpush.bf16.msra.mxu0 %v1471
    %2040 = vmatpush.bf16.msra.mxu0 %v1458
    %2041 = vmatmul.bf16.gmra.mxu0 %v449
    %v2042 = vpop.f32.mrf.mxu0
    %v2043 = vadd.f32 %v2030, %v2042
    %v2044 = vpop.f32.mrf.mxu0
    %2045 = vdwg.mxu0
    %2046 = vmatpush.bf16.msra.mxu0 %v1446
    %2047 = vmatpush.bf16.msra.mxu0 %v1433
    %2048 = vmatpush.bf16.msra.mxu0 %v1420
    %2049 = vmatpush.bf16.msra.mxu0 %v1407
    %2050 = vmatpush.bf16.msra.mxu0 %v1394
    %2051 = vmatpush.bf16.msra.mxu0 %v1381
    %2052 = vmatpush.bf16.msra.mxu0 %v1368
    %2053 = vmatpush.bf16.msra.mxu0 %v1355
    %2054 = vmatmul.bf16.gmra.mxu0 %v448
    %v2055 = vpop.f32.mrf.mxu0
    %v2056 = vadd.f32 %v689, %v2055
    %v2057 = vpop.f32.mrf.mxu0
    %2058 = vdwg.mxu0
    %2059 = vmatpush.bf16.msra.mxu0 %v1550
    %2060 = vmatpush.bf16.msra.mxu0 %v1537
    %2061 = vmatpush.bf16.msra.mxu0 %v1524
    %2062 = vmatpush.bf16.msra.mxu0 %v1511
    %2063 = vmatpush.bf16.msra.mxu0 %v1498
    %2064 = vmatpush.bf16.msra.mxu0 %v1485
    %2065 = vmatpush.bf16.msra.mxu0 %v1472
    %2066 = vmatpush.bf16.msra.mxu0 %v1459
    %2067 = vmatmul.bf16.gmra.mxu0 %v449
    %v2068 = vpop.f32.mrf.mxu0
    %v2069 = vadd.f32 %v2056, %v2068
    %v2070 = vpop.f32.mrf.mxu0
    %2071 = vdwg.mxu0
    %2072 = vmatpush.bf16.msra.mxu0 %v1447
    %2073 = vmatpush.bf16.msra.mxu0 %v1434
    %2074 = vmatpush.bf16.msra.mxu0 %v1421
    %2075 = vmatpush.bf16.msra.mxu0 %v1408
    %2076 = vmatpush.bf16.msra.mxu0 %v1395
    %2077 = vmatpush.bf16.msra.mxu0 %v1382
    %2078 = vmatpush.bf16.msra.mxu0 %v1369
    %2079 = vmatpush.bf16.msra.mxu0 %v1356
    %2080 = vmatmul.bf16.gmra.mxu0 %v448
    %v2081 = vpop.f32.mrf.mxu0
    %v2082 = vadd.f32 %v690, %v2081
    %v2083 = vpop.f32.mrf.mxu0
    %2084 = vdwg.mxu0
    %2085 = vmatpush.bf16.msra.mxu0 %v1551
    %2086 = vmatpush.bf16.msra.mxu0 %v1538
    %2087 = vmatpush.bf16.msra.mxu0 %v1525
    %2088 = vmatpush.bf16.msra.mxu0 %v1512
    %2089 = vmatpush.bf16.msra.mxu0 %v1499
    %2090 = vmatpush.bf16.msra.mxu0 %v1486
    %2091 = vmatpush.bf16.msra.mxu0 %v1473
    %2092 = vmatpush.bf16.msra.mxu0 %v1460
    %2093 = vmatmul.bf16.gmra.mxu0 %v449
    %v2094 = vpop.f32.mrf.mxu0
    %v2095 = vadd.f32 %v2082, %v2094
    %v2096 = vpop.f32.mrf.mxu0
    %2097 = vdwg.mxu0
    %v2098 = vmax.f32 %v1783, 0.0
    %v2099 = vmax.f32 %v1809, 0.0
    %v2100 = vmax.f32 %v1835, 0.0
    %v2101 = vmax.f32 %v1861, 0.0
    %v2102 = vmax.f32 %v1887, 0.0
    %v2103 = vmax.f32 %v1913, 0.0
    %v2104 = vmax.f32 %v1939, 0.0
    %v2105 = vmax.f32 %v1965, 0.0
    %v2106 = vmax.f32 %v1991, 0.0
    %v2107 = vmax.f32 %v2017, 0.0
    %v2108 = vmax.f32 %v2043, 0.0
    %v2109 = vmax.f32 %v2069, 0.0
    %v2110 = vmax.f32 %v2095, 0.0
    %v2111 = vpack.c.bf16 %v2098, %v2098
    %v2112 = vpack.c.bf16 %v2099, %v2099
    %v2113 = vpack.c.bf16 %v2100, %v2100
    %v2114 = vpack.c.bf16 %v2101, %v2101
    %v2115 = vpack.c.bf16 %v2102, %v2102
    %v2116 = vpack.c.bf16 %v2103, %v2103
    %v2117 = vpack.c.bf16 %v2104, %v2104
    %v2118 = vpack.c.bf16 %v2105, %v2105
    %v2119 = vpack.c.bf16 %v2106, %v2106
    %v2120 = vpack.c.bf16 %v2107, %v2107
    %v2121 = vpack.c.bf16 %v2108, %v2108
    %v2122 = vpack.c.bf16 %v2109, %v2109
    %v2123 = vpack.c.bf16 %v2110, %v2110
    %v2124 = vld [vmem:[%s5] sm:$0xff]
    %v2125 = vld [vmem:[%s5 + $0x8] sm:$0xff]
    %v2126 = vld [vmem:[%s5 + $0x10] sm:$0xff]
    %v2127 = vld [vmem:[%s5 + $0x18] sm:$0xff]
    %v2128 = vld [vmem:[%s5 + $0x20] sm:$0xff]
    %v2129 = vld [vmem:[%s5 + $0x28] sm:$0xff]
    %v2130 = vld [vmem:[%s5 + $0x30] sm:$0xff]
    %v2131 = vld [vmem:[%s5 + $0x38] sm:$0xff]
    %v2132 = vld [vmem:[%s5 + $0x40] sm:$0xff]
    %v2133 = vld [vmem:[%s5 + $0x48] sm:$0xff]
    %v2134 = vld [vmem:[%s5 + $0x50] sm:$0xff]
    %v2135 = vld [vmem:[%s5 + $0x58] sm:$0xff]
    %v2136 = vld [vmem:[%s5 + $0x60] sm:$0xff]
    %v2137 = vld [vmem:[%s5 + $0x68] sm:$0xff]
    %v2138 = vld [vmem:[%s5 + $0x70] sm:$0xff]
    %v2139 = vld [vmem:[%s5 + $0x78] sm:$0xff]
    %v2140 = vld [vmem:[%s5 + $0x80] sm:$0xff]
    %v2141 = vld [vmem:[%s5 + $0x88] sm:$0xff]
    %v2142 = vld [vmem:[%s5 + $0x90] sm:$0xff]
    %v2143 = vld [vmem:[%s5 + $0x98] sm:$0xff]
    %v2144 = vld [vmem:[%s5 + $0xa0] sm:$0xff]
    %v2145 = vld [vmem:[%s5 + $0xa8] sm:$0xff]
    %v2146 = vld [vmem:[%s5 + $0xb0] sm:$0xff]
    %v2147 = vld [vmem:[%s5 + $0xb8] sm:$0xff]
    %v2148 = vld [vmem:[%s5 + $0xc0] sm:$0xff]
    %v2149 = vld [vmem:[%s5 + $0xc8] sm:$0xff]
    %v2150 = vld [vmem:[%s5 + $0xd0] sm:$0xff]
    %v2151 = vld [vmem:[%s5 + $0xd8] sm:$0xff]
    %v2152 = vld [vmem:[%s5 + $0xe0] sm:$0xff]
    %v2153 = vld [vmem:[%s5 + $0xe8] sm:$0xff]
    %v2154 = vld [vmem:[%s5 + $0xf0] sm:$0xff]
    %v2155 = vld [vmem:[%s5 + $0xf8] sm:$0xff]
    %v2156 = vld [vmem:[%s5 + $0x100] sm:$0xff]
    %v2157 = vld [vmem:[%s5 + $0x108] sm:$0xff]
    %v2158 = vld [vmem:[%s5 + $0x110] sm:$0xff]
    %v2159 = vld [vmem:[%s5 + $0x118] sm:$0xff]
    %v2160 = vld [vmem:[%s5 + $0x120] sm:$0xff]
    %v2161 = vld [vmem:[%s5 + $0x128] sm:$0xff]
    %v2162 = vld [vmem:[%s5 + $0x130] sm:$0xff]
    %v2163 = vld [vmem:[%s5 + $0x138] sm:$0xff]
    %v2164 = vld [vmem:[%s5 + $0x140] sm:$0xff]
    %v2165 = vld [vmem:[%s5 + $0x148] sm:$0xff]
    %v2166 = vld [vmem:[%s5 + $0x150] sm:$0xff]
    %v2167 = vld [vmem:[%s5 + $0x158] sm:$0xff]
    %v2168 = vld [vmem:[%s5 + $0x160] sm:$0xff]
    %v2169 = vld [vmem:[%s5 + $0x168] sm:$0xff]
    %v2170 = vld [vmem:[%s5 + $0x170] sm:$0xff]
    %v2171 = vld [vmem:[%s5 + $0x178] sm:$0xff]
    %v2172 = vld [vmem:[%s5 + $0x180] sm:$0xff]
    %v2173 = vld [vmem:[%s5 + $0x188] sm:$0xff]
    %v2174 = vld [vmem:[%s5 + $0x190] sm:$0xff]
    %v2175 = vld [vmem:[%s5 + $0x198] sm:$0xff]
    %v2176 = vld [vmem:[%s5 + $0x1a0] sm:$0xff]
    %v2177 = vld [vmem:[%s5 + $0x1a8] sm:$0xff]
    %v2178 = vld [vmem:[%s5 + $0x1b0] sm:$0xff]
    %v2179 = vld [vmem:[%s5 + $0x1b8] sm:$0xff]
    %v2180 = vld [vmem:[%s5 + $0x1c0] sm:$0xff]
    %v2181 = vld [vmem:[%s5 + $0x1c8] sm:$0xff]
    %v2182 = vld [vmem:[%s5 + $0x1d0] sm:$0xff]
    %v2183 = vld [vmem:[%s5 + $0x1d8] sm:$0xff]
    %v2184 = vld [vmem:[%s5 + $0x1e0] sm:$0xff]
    %v2185 = vld [vmem:[%s5 + $0x1e8] sm:$0xff]
    %v2186 = vld [vmem:[%s5 + $0x1f0] sm:$0xff]
    %v2187 = vld [vmem:[%s5 + $0x1f8] sm:$0xff]
    %v2188 = vld [vmem:[%s5 + $0x200] sm:$0xff]
    %v2189 = vld [vmem:[%s5 + $0x208] sm:$0xff]
    %v2190 = vld [vmem:[%s5 + $0x210] sm:$0xff]
    %v2191 = vld [vmem:[%s5 + $0x218] sm:$0xff]
    %v2192 = vld [vmem:[%s5 + $0x220] sm:$0xff]
    %v2193 = vld [vmem:[%s5 + $0x228] sm:$0xff]
    %v2194 = vld [vmem:[%s5 + $0x230] sm:$0xff]
    %v2195 = vld [vmem:[%s5 + $0x238] sm:$0xff]
    %v2196 = vld [vmem:[%s5 + $0x240] sm:$0xff]
    %v2197 = vld [vmem:[%s5 + $0x248] sm:$0xff]
    %v2198 = vld [vmem:[%s5 + $0x250] sm:$0xff]
    %v2199 = vld [vmem:[%s5 + $0x258] sm:$0xff]
    %v2200 = vld [vmem:[%s5 + $0x260] sm:$0xff]
    %v2201 = vld [vmem:[%s5 + $0x268] sm:$0xff]
    %v2202 = vld [vmem:[%s5 + $0x270] sm:$0xff]
    %v2203 = vld [vmem:[%s5 + $0x278] sm:$0xff]
    %v2204 = vld [vmem:[%s5 + $0x280] sm:$0xff]
    %v2205 = vld [vmem:[%s5 + $0x288] sm:$0xff]
    %v2206 = vld [vmem:[%s5 + $0x290] sm:$0xff]
    %v2207 = vld [vmem:[%s5 + $0x298] sm:$0xff]
    %v2208 = vld [vmem:[%s5 + $0x2a0] sm:$0xff]
    %v2209 = vld [vmem:[%s5 + $0x2a8] sm:$0xff]
    %v2210 = vld [vmem:[%s5 + $0x2b0] sm:$0xff]
    %v2211 = vld [vmem:[%s5 + $0x2b8] sm:$0xff]
    %v2212 = vld [vmem:[%s5 + $0x2c0] sm:$0xff]
    %v2213 = vld [vmem:[%s5 + $0x2c8] sm:$0xff]
    %v2214 = vld [vmem:[%s5 + $0x2d0] sm:$0xff]
    %v2215 = vld [vmem:[%s5 + $0x2d8] sm:$0xff]
    %v2216 = vld [vmem:[%s5 + $0x2e0] sm:$0xff]
    %v2217 = vld [vmem:[%s5 + $0x2e8] sm:$0xff]
    %v2218 = vld [vmem:[%s5 + $0x2f0] sm:$0xff]
    %v2219 = vld [vmem:[%s5 + $0x2f8] sm:$0xff]
    %v2220 = vld [vmem:[%s5 + $0x300] sm:$0xff]
    %v2221 = vld [vmem:[%s5 + $0x308] sm:$0xff]
    %v2222 = vld [vmem:[%s5 + $0x310] sm:$0xff]
    %v2223 = vld [vmem:[%s5 + $0x318] sm:$0xff]
    %v2224 = vld [vmem:[%s5 + $0x320] sm:$0xff]
    %v2225 = vld [vmem:[%s5 + $0x328] sm:$0xff]
    %v2226 = vld [vmem:[%s5 + $0x330] sm:$0xff]
    %v2227 = vld [vmem:[%s5 + $0x338] sm:$0xff]
    %v2228 = vld [vmem:[%s5 + $0x340] sm:$0xff]
    %v2229 = vld [vmem:[%s5 + $0x348] sm:$0xff]
    %v2230 = vld [vmem:[%s5 + $0x350] sm:$0xff]
    %v2231 = vld [vmem:[%s5 + $0x358] sm:$0xff]
    %v2232 = vld [vmem:[%s5 + $0x360] sm:$0xff]
    %v2233 = vld [vmem:[%s5 + $0x368] sm:$0xff]
    %v2234 = vld [vmem:[%s5 + $0x370] sm:$0xff]
    %v2235 = vld [vmem:[%s5 + $0x378] sm:$0xff]
    %v2236 = vld [vmem:[%s5 + $0x380] sm:$0xff]
    %v2237 = vld [vmem:[%s5 + $0x388] sm:$0xff]
    %v2238 = vld [vmem:[%s5 + $0x390] sm:$0xff]
    %v2239 = vld [vmem:[%s5 + $0x398] sm:$0xff]
    %v2240 = vld [vmem:[%s5 + $0x3a0] sm:$0xff]
    %v2241 = vld [vmem:[%s5 + $0x3a8] sm:$0xff]
    %v2242 = vld [vmem:[%s5 + $0x3b0] sm:$0xff]
    %v2243 = vld [vmem:[%s5 + $0x3b8] sm:$0xff]
    %v2244 = vld [vmem:[%s5 + $0x3c0] sm:$0xff]
    %v2245 = vld [vmem:[%s5 + $0x3c8] sm:$0xff]
    %v2246 = vld [vmem:[%s5 + $0x3d0] sm:$0xff]
    %v2247 = vld [vmem:[%s5 + $0x3d8] sm:$0xff]
    %v2248 = vld [vmem:[%s5 + $0x3e0] sm:$0xff]
    %v2249 = vld [vmem:[%s5 + $0x3e8] sm:$0xff]
    %v2250 = vld [vmem:[%s5 + $0x3f0] sm:$0xff]
    %v2251 = vld [vmem:[%s5 + $0x3f8] sm:$0xff]
    %v2252 = vld [vmem:[%s5 + $0x400] sm:$0xff]
    %v2253 = vld [vmem:[%s5 + $0x408] sm:$0xff]
    %v2254 = vld [vmem:[%s5 + $0x410] sm:$0xff]
    %v2255 = vld [vmem:[%s5 + $0x418] sm:$0xff]
    %v2256 = vld [vmem:[%s5 + $0x420] sm:$0xff]
    %v2257 = vld [vmem:[%s5 + $0x428] sm:$0xff]
    %v2258 = vld [vmem:[%s5 + $0x430] sm:$0xff]
    %v2259 = vld [vmem:[%s5 + $0x438] sm:$0xff]
    %v2260 = vld [vmem:[%s5 + $0x440] sm:$0xff]
    %v2261 = vld [vmem:[%s5 + $0x448] sm:$0xff]
    %v2262 = vld [vmem:[%s5 + $0x450] sm:$0xff]
    %v2263 = vld [vmem:[%s5 + $0x458] sm:$0xff]
    %v2264 = vld [vmem:[%s5 + $0x460] sm:$0xff]
    %v2265 = vld [vmem:[%s5 + $0x468] sm:$0xff]
    %v2266 = vld [vmem:[%s5 + $0x470] sm:$0xff]
    %v2267 = vld [vmem:[%s5 + $0x478] sm:$0xff]
    %v2268 = vld [vmem:[%s5 + $0x480] sm:$0xff]
    %v2269 = vld [vmem:[%s5 + $0x488] sm:$0xff]
    %v2270 = vld [vmem:[%s5 + $0x490] sm:$0xff]
    %v2271 = vld [vmem:[%s5 + $0x498] sm:$0xff]
    %v2272 = vld [vmem:[%s5 + $0x4a0] sm:$0xff]
    %v2273 = vld [vmem:[%s5 + $0x4a8] sm:$0xff]
    %v2274 = vld [vmem:[%s5 + $0x4b0] sm:$0xff]
    %v2275 = vld [vmem:[%s5 + $0x4b8] sm:$0xff]
    %v2276 = vld [vmem:[%s5 + $0x4c0] sm:$0xff]
    %v2277 = vld [vmem:[%s5 + $0x4c8] sm:$0xff]
    %v2278 = vld [vmem:[%s5 + $0x4d0] sm:$0xff]
    %v2279 = vld [vmem:[%s5 + $0x4d8] sm:$0xff]
    %v2280 = vld [vmem:[%s5 + $0x4e0] sm:$0xff]
    %v2281 = vld [vmem:[%s5 + $0x4e8] sm:$0xff]
    %v2282 = vld [vmem:[%s5 + $0x4f0] sm:$0xff]
    %v2283 = vld [vmem:[%s5 + $0x4f8] sm:$0xff]
    %v2284 = vld [vmem:[%s5 + $0x500] sm:$0xff]
    %v2285 = vld [vmem:[%s5 + $0x508] sm:$0xff]
    %v2286 = vld [vmem:[%s5 + $0x510] sm:$0xff]
    %v2287 = vld [vmem:[%s5 + $0x518] sm:$0xff]
    %v2288 = vld [vmem:[%s5 + $0x520] sm:$0xff]
    %v2289 = vld [vmem:[%s5 + $0x528] sm:$0xff]
    %v2290 = vld [vmem:[%s5 + $0x530] sm:$0xff]
    %v2291 = vld [vmem:[%s5 + $0x538] sm:$0xff]
    %v2292 = vld [vmem:[%s5 + $0x540] sm:$0xff]
    %v2293 = vld [vmem:[%s5 + $0x548] sm:$0xff]
    %v2294 = vld [vmem:[%s5 + $0x550] sm:$0xff]
    %v2295 = vld [vmem:[%s5 + $0x558] sm:$0xff]
    %v2296 = vld [vmem:[%s5 + $0x560] sm:$0xff]
    %v2297 = vld [vmem:[%s5 + $0x568] sm:$0xff]
    %v2298 = vld [vmem:[%s5 + $0x570] sm:$0xff]
    %v2299 = vld [vmem:[%s5 + $0x578] sm:$0xff]
    %v2300 = vld [vmem:[%s5 + $0x580] sm:$0xff]
    %v2301 = vld [vmem:[%s5 + $0x588] sm:$0xff]
    %v2302 = vld [vmem:[%s5 + $0x590] sm:$0xff]
    %v2303 = vld [vmem:[%s5 + $0x598] sm:$0xff]
    %v2304 = vld [vmem:[%s5 + $0x5a0] sm:$0xff]
    %v2305 = vld [vmem:[%s5 + $0x5a8] sm:$0xff]
    %v2306 = vld [vmem:[%s5 + $0x5b0] sm:$0xff]
    %v2307 = vld [vmem:[%s5 + $0x5b8] sm:$0xff]
    %v2308 = vld [vmem:[%s5 + $0x5c0] sm:$0xff]
    %v2309 = vld [vmem:[%s5 + $0x5c8] sm:$0xff]
    %v2310 = vld [vmem:[%s5 + $0x5d0] sm:$0xff]
    %v2311 = vld [vmem:[%s5 + $0x5d8] sm:$0xff]
    %v2312 = vld [vmem:[%s5 + $0x5e0] sm:$0xff]
    %v2313 = vld [vmem:[%s5 + $0x5e8] sm:$0xff]
    %v2314 = vld [vmem:[%s5 + $0x5f0] sm:$0xff]
    %v2315 = vld [vmem:[%s5 + $0x5f8] sm:$0xff]
    %v2316 = vld [vmem:[%s5 + $0x600] sm:$0xff]
    %v2317 = vld [vmem:[%s5 + $0x608] sm:$0xff]
    %v2318 = vld [vmem:[%s5 + $0x610] sm:$0xff]
    %v2319 = vld [vmem:[%s5 + $0x618] sm:$0xff]
    %v2320 = vld [vmem:[%s5 + $0x620] sm:$0xff]
    %v2321 = vld [vmem:[%s5 + $0x628] sm:$0xff]
    %v2322 = vld [vmem:[%s5 + $0x630] sm:$0xff]
    %v2323 = vld [vmem:[%s5 + $0x638] sm:$0xff]
    %v2324 = vld [vmem:[%s5 + $0x640] sm:$0xff]
    %v2325 = vld [vmem:[%s5 + $0x648] sm:$0xff]
    %v2326 = vld [vmem:[%s5 + $0x650] sm:$0xff]
    %v2327 = vld [vmem:[%s5 + $0x658] sm:$0xff]
    %v2328 = vld [vmem:[%s5 + $0x660] sm:$0xff]
    %v2329 = vld [vmem:[%s5 + $0x668] sm:$0xff]
    %v2330 = vld [vmem:[%s5 + $0x670] sm:$0xff]
    %v2331 = vld [vmem:[%s5 + $0x678] sm:$0xff]
    %v2332 = vld [vmem:[%s5 + $0x680] sm:$0xff]
    %v2333 = vld [vmem:[%s5 + $0x688] sm:$0xff]
    %v2334 = vld [vmem:[%s5 + $0x690] sm:$0xff]
    %v2335 = vld [vmem:[%s5 + $0x698] sm:$0xff]
    %v2336 = vld [vmem:[%s5 + $0x6a0] sm:$0xff]
    %v2337 = vld [vmem:[%s5 + $0x6a8] sm:$0xff]
    %v2338 = vld [vmem:[%s5 + $0x6b0] sm:$0xff]
    %v2339 = vld [vmem:[%s5 + $0x6b8] sm:$0xff]
    %v2340 = vld [vmem:[%s5 + $0x6c0] sm:$0xff]
    %v2341 = vld [vmem:[%s5 + $0x6c8] sm:$0xff]
    %v2342 = vld [vmem:[%s5 + $0x6d0] sm:$0xff]
    %v2343 = vld [vmem:[%s5 + $0x6d8] sm:$0xff]
    %v2344 = vld [vmem:[%s5 + $0x6e0] sm:$0xff]
    %v2345 = vld [vmem:[%s5 + $0x6e8] sm:$0xff]
    %v2346 = vld [vmem:[%s5 + $0x6f0] sm:$0xff]
    %v2347 = vld [vmem:[%s5 + $0x6f8] sm:$0xff]
    %v2348 = vld [vmem:[%s5 + $0x700] sm:$0xff]
    %v2349 = vld [vmem:[%s5 + $0x708] sm:$0xff]
    %v2350 = vld [vmem:[%s5 + $0x710] sm:$0xff]
    %v2351 = vld [vmem:[%s5 + $0x718] sm:$0xff]
    %v2352 = vld [vmem:[%s5 + $0x720] sm:$0xff]
    %v2353 = vld [vmem:[%s5 + $0x728] sm:$0xff]
    %v2354 = vld [vmem:[%s5 + $0x730] sm:$0xff]
    %v2355 = vld [vmem:[%s5 + $0x738] sm:$0xff]
    %v2356 = vld [vmem:[%s5 + $0x740] sm:$0xff]
    %v2357 = vld [vmem:[%s5 + $0x748] sm:$0xff]
    %v2358 = vld [vmem:[%s5 + $0x750] sm:$0xff]
    %v2359 = vld [vmem:[%s5 + $0x758] sm:$0xff]
    %v2360 = vld [vmem:[%s5 + $0x760] sm:$0xff]
    %v2361 = vld [vmem:[%s5 + $0x768] sm:$0xff]
    %v2362 = vld [vmem:[%s5 + $0x770] sm:$0xff]
    %v2363 = vld [vmem:[%s5 + $0x778] sm:$0xff]
    %v2364 = vld [vmem:[%s5 + $0x780] sm:$0xff]
    %v2365 = vld [vmem:[%s5 + $0x788] sm:$0xff]
    %v2366 = vld [vmem:[%s5 + $0x790] sm:$0xff]
    %v2367 = vld [vmem:[%s5 + $0x798] sm:$0xff]
    %v2368 = vld [vmem:[%s5 + $0x7a0] sm:$0xff]
    %v2369 = vld [vmem:[%s5 + $0x7a8] sm:$0xff]
    %v2370 = vld [vmem:[%s5 + $0x7b0] sm:$0xff]
    %v2371 = vld [vmem:[%s5 + $0x7b8] sm:$0xff]
    %v2372 = vld [vmem:[%s5 + $0x7c0] sm:$0xff]
    %v2373 = vld [vmem:[%s5 + $0x7c8] sm:$0xff]
    %v2374 = vld [vmem:[%s5 + $0x7d0] sm:$0xff]
    %v2375 = vld [vmem:[%s5 + $0x7d8] sm:$0xff]
    %v2376 = vld [vmem:[%s5 + $0x7e0] sm:$0xff]
    %v2377 = vld [vmem:[%s5 + $0x7e8] sm:$0xff]
    %v2378 = vld [vmem:[%s5 + $0x7f0] sm:$0xff]
    %v2379 = vld [vmem:[%s5 + $0x7f8] sm:$0xff]
    %v2380 = vld [vmem:[%s5 + $0x800] sm:$0xff]
    %v2381 = vld [vmem:[%s5 + $0x808] sm:$0xff]
    %v2382 = vld [vmem:[%s5 + $0x810] sm:$0xff]
    %v2383 = vld [vmem:[%s5 + $0x818] sm:$0xff]
    %v2384 = vld [vmem:[%s5 + $0x820] sm:$0xff]
    %v2385 = vld [vmem:[%s5 + $0x828] sm:$0xff]
    %v2386 = vld [vmem:[%s5 + $0x830] sm:$0xff]
    %v2387 = vld [vmem:[%s5 + $0x838] sm:$0xff]
    %v2388 = vld [vmem:[%s5 + $0x840] sm:$0xff]
    %v2389 = vld [vmem:[%s5 + $0x848] sm:$0xff]
    %v2390 = vld [vmem:[%s5 + $0x850] sm:$0xff]
    %v2391 = vld [vmem:[%s5 + $0x858] sm:$0xff]
    %v2392 = vld [vmem:[%s5 + $0x860] sm:$0xff]
    %v2393 = vld [vmem:[%s5 + $0x868] sm:$0xff]
    %v2394 = vld [vmem:[%s5 + $0x870] sm:$0xff]
    %v2395 = vld [vmem:[%s5 + $0x878] sm:$0xff]
    %v2396 = vld [vmem:[%s5 + $0x880] sm:$0xff]
    %v2397 = vld [vmem:[%s5 + $0x888] sm:$0xff]
    %v2398 = vld [vmem:[%s5 + $0x890] sm:$0xff]
    %v2399 = vld [vmem:[%s5 + $0x898] sm:$0xff]
    %v2400 = vld [vmem:[%s5 + $0x8a0] sm:$0xff]
    %v2401 = vld [vmem:[%s5 + $0x8a8] sm:$0xff]
    %v2402 = vld [vmem:[%s5 + $0x8b0] sm:$0xff]
    %v2403 = vld [vmem:[%s5 + $0x8b8] sm:$0xff]
    %v2404 = vld [vmem:[%s5 + $0x8c0] sm:$0xff]
    %v2405 = vld [vmem:[%s5 + $0x8c8] sm:$0xff]
    %v2406 = vld [vmem:[%s5 + $0x8d0] sm:$0xff]
    %v2407 = vld [vmem:[%s5 + $0x8d8] sm:$0xff]
    %v2408 = vld [vmem:[%s5 + $0x8e0] sm:$0xff]
    %v2409 = vld [vmem:[%s5 + $0x8e8] sm:$0xff]
    %v2410 = vld [vmem:[%s5 + $0x8f0] sm:$0xff]
    %v2411 = vld [vmem:[%s5 + $0x8f8] sm:$0xff]
    %v2412 = vld [vmem:[%s5 + $0x900] sm:$0xff]
    %v2413 = vld [vmem:[%s5 + $0x908] sm:$0xff]
    %v2414 = vld [vmem:[%s5 + $0x910] sm:$0xff]
    %v2415 = vld [vmem:[%s5 + $0x918] sm:$0xff]
    %v2416 = vld [vmem:[%s5 + $0x920] sm:$0xff]
    %v2417 = vld [vmem:[%s5 + $0x928] sm:$0xff]
    %v2418 = vld [vmem:[%s5 + $0x930] sm:$0xff]
    %v2419 = vld [vmem:[%s5 + $0x938] sm:$0xff]
    %v2420 = vld [vmem:[%s5 + $0x940] sm:$0xff]
    %v2421 = vld [vmem:[%s5 + $0x948] sm:$0xff]
    %v2422 = vld [vmem:[%s5 + $0x950] sm:$0xff]
    %v2423 = vld [vmem:[%s5 + $0x958] sm:$0xff]
    %v2424 = vld [vmem:[%s5 + $0x960] sm:$0xff]
    %v2425 = vld [vmem:[%s5 + $0x968] sm:$0xff]
    %v2426 = vld [vmem:[%s5 + $0x970] sm:$0xff]
    %v2427 = vld [vmem:[%s5 + $0x978] sm:$0xff]
    %v2428 = vld [vmem:[%s5 + $0x980] sm:$0xff]
    %v2429 = vld [vmem:[%s5 + $0x988] sm:$0xff]
    %v2430 = vld [vmem:[%s5 + $0x990] sm:$0xff]
    %v2431 = vld [vmem:[%s5 + $0x998] sm:$0xff]
    %v2432 = vld [vmem:[%s5 + $0x9a0] sm:$0xff]
    %v2433 = vld [vmem:[%s5 + $0x9a8] sm:$0xff]
    %v2434 = vld [vmem:[%s5 + $0x9b0] sm:$0xff]
    %v2435 = vld [vmem:[%s5 + $0x9b8] sm:$0xff]
    %v2436 = vld [vmem:[%s5 + $0x9c0] sm:$0xff]
    %v2437 = vld [vmem:[%s5 + $0x9c8] sm:$0xff]
    %v2438 = vld [vmem:[%s5 + $0x9d0] sm:$0xff]
    %v2439 = vld [vmem:[%s5 + $0x9d8] sm:$0xff]
    %v2440 = vld [vmem:[%s5 + $0x9e0] sm:$0xff]
    %v2441 = vld [vmem:[%s5 + $0x9e8] sm:$0xff]
    %v2442 = vld [vmem:[%s5 + $0x9f0] sm:$0xff]
    %v2443 = vld [vmem:[%s5 + $0x9f8] sm:$0xff]
    %v2444 = vld [vmem:[%s5 + $0xa00] sm:$0xff]
    %v2445 = vld [vmem:[%s5 + $0xa08] sm:$0xff]
    %v2446 = vld [vmem:[%s5 + $0xa10] sm:$0xff]
    %v2447 = vld [vmem:[%s5 + $0xa18] sm:$0xff]
    %v2448 = vld [vmem:[%s5 + $0xa20] sm:$0xff]
    %v2449 = vld [vmem:[%s5 + $0xa28] sm:$0xff]
    %v2450 = vld [vmem:[%s5 + $0xa30] sm:$0xff]
    %v2451 = vld [vmem:[%s5 + $0xa38] sm:$0xff]
    %v2452 = vld [vmem:[%s5 + $0xa40] sm:$0xff]
    %v2453 = vld [vmem:[%s5 + $0xa48] sm:$0xff]
    %v2454 = vld [vmem:[%s5 + $0xa50] sm:$0xff]
    %v2455 = vld [vmem:[%s5 + $0xa58] sm:$0xff]
    %v2456 = vld [vmem:[%s5 + $0xa60] sm:$0xff]
    %v2457 = vld [vmem:[%s5 + $0xa68] sm:$0xff]
    %v2458 = vld [vmem:[%s5 + $0xa70] sm:$0xff]
    %v2459 = vld [vmem:[%s5 + $0xa78] sm:$0xff]
    %v2460 = vld [vmem:[%s5 + $0xa80] sm:$0xff]
    %v2461 = vld [vmem:[%s5 + $0xa88] sm:$0xff]
    %v2462 = vld [vmem:[%s5 + $0xa90] sm:$0xff]
    %v2463 = vld [vmem:[%s5 + $0xa98] sm:$0xff]
    %v2464 = vld [vmem:[%s5 + $0xaa0] sm:$0xff]
    %v2465 = vld [vmem:[%s5 + $0xaa8] sm:$0xff]
    %v2466 = vld [vmem:[%s5 + $0xab0] sm:$0xff]
    %v2467 = vld [vmem:[%s5 + $0xab8] sm:$0xff]
    %v2468 = vld [vmem:[%s5 + $0xac0] sm:$0xff]
    %v2469 = vld [vmem:[%s5 + $0xac8] sm:$0xff]
    %v2470 = vld [vmem:[%s5 + $0xad0] sm:$0xff]
    %v2471 = vld [vmem:[%s5 + $0xad8] sm:$0xff]
    %v2472 = vld [vmem:[%s5 + $0xae0] sm:$0xff]
    %v2473 = vld [vmem:[%s5 + $0xae8] sm:$0xff]
    %v2474 = vld [vmem:[%s5 + $0xaf0] sm:$0xff]
    %v2475 = vld [vmem:[%s5 + $0xaf8] sm:$0xff]
    %v2476 = vld [vmem:[%s5 + $0xb00] sm:$0xff]
    %v2477 = vld [vmem:[%s5 + $0xb08] sm:$0xff]
    %v2478 = vld [vmem:[%s5 + $0xb10] sm:$0xff]
    %v2479 = vld [vmem:[%s5 + $0xb18] sm:$0xff]
    %v2480 = vld [vmem:[%s5 + $0xb20] sm:$0xff]
    %v2481 = vld [vmem:[%s5 + $0xb28] sm:$0xff]
    %v2482 = vld [vmem:[%s5 + $0xb30] sm:$0xff]
    %v2483 = vld [vmem:[%s5 + $0xb38] sm:$0xff]
    %v2484 = vld [vmem:[%s5 + $0xb40] sm:$0xff]
    %v2485 = vld [vmem:[%s5 + $0xb48] sm:$0xff]
    %v2486 = vld [vmem:[%s5 + $0xb50] sm:$0xff]
    %v2487 = vld [vmem:[%s5 + $0xb58] sm:$0xff]
    %v2488 = vld [vmem:[%s5 + $0xb60] sm:$0xff]
    %v2489 = vld [vmem:[%s5 + $0xb68] sm:$0xff]
    %v2490 = vld [vmem:[%s5 + $0xb70] sm:$0xff]
    %v2491 = vld [vmem:[%s5 + $0xb78] sm:$0xff]
    %v2492 = vld [vmem:[%s5 + $0xb80] sm:$0xff]
    %v2493 = vld [vmem:[%s5 + $0xb88] sm:$0xff]
    %v2494 = vld [vmem:[%s5 + $0xb90] sm:$0xff]
    %v2495 = vld [vmem:[%s5 + $0xb98] sm:$0xff]
    %v2496 = vld [vmem:[%s5 + $0xba0] sm:$0xff]
    %v2497 = vld [vmem:[%s5 + $0xba8] sm:$0xff]
    %v2498 = vld [vmem:[%s5 + $0xbb0] sm:$0xff]
    %v2499 = vld [vmem:[%s5 + $0xbb8] sm:$0xff]
    %v2500 = vld [vmem:[%s5 + $0xbc0] sm:$0xff]
    %v2501 = vld [vmem:[%s5 + $0xbc8] sm:$0xff]
    %v2502 = vld [vmem:[%s5 + $0xbd0] sm:$0xff]
    %v2503 = vld [vmem:[%s5 + $0xbd8] sm:$0xff]
    %v2504 = vld [vmem:[%s5 + $0xbe0] sm:$0xff]
    %v2505 = vld [vmem:[%s5 + $0xbe8] sm:$0xff]
    %v2506 = vld [vmem:[%s5 + $0xbf0] sm:$0xff]
    %v2507 = vld [vmem:[%s5 + $0xbf8] sm:$0xff]
    %v2508 = vld [vmem:[%s5 + $0xc00] sm:$0xff]
    %v2509 = vld [vmem:[%s5 + $0xc08] sm:$0xff]
    %v2510 = vld [vmem:[%s5 + $0xc10] sm:$0xff]
    %v2511 = vld [vmem:[%s5 + $0xc18] sm:$0xff]
    %v2512 = vld [vmem:[%s5 + $0xc20] sm:$0xff]
    %v2513 = vld [vmem:[%s5 + $0xc28] sm:$0xff]
    %v2514 = vld [vmem:[%s5 + $0xc30] sm:$0xff]
    %v2515 = vld [vmem:[%s5 + $0xc38] sm:$0xff]
    %v2516 = vld [vmem:[%s5 + $0xc40] sm:$0xff]
    %v2517 = vld [vmem:[%s5 + $0xc48] sm:$0xff]
    %v2518 = vld [vmem:[%s5 + $0xc50] sm:$0xff]
    %v2519 = vld [vmem:[%s5 + $0xc58] sm:$0xff]
    %v2520 = vld [vmem:[%s5 + $0xc60] sm:$0xff]
    %v2521 = vld [vmem:[%s5 + $0xc68] sm:$0xff]
    %v2522 = vld [vmem:[%s5 + $0xc70] sm:$0xff]
    %v2523 = vld [vmem:[%s5 + $0xc78] sm:$0xff]
    %v2524 = vld [vmem:[%s6] sm:$0xf]
    %v2526 = vperm.slane %v2524, 0
    %v2527 = vperm.slane %v2524, 1
    %v2528 = vperm.slane %v2524, 2
    %v2529 = vperm.slane %v2524, 3
    %v2934 = vunpack.c.l.b16 %v2124
    %v2935 = vunpack.c.h.b16 %v2124
    %v2936 = vunpack.c.l.b16 %v2125
    %v2937 = vunpack.c.h.b16 %v2125
    %v2938 = vunpack.c.l.b16 %v2126
    %v2939 = vunpack.c.h.b16 %v2126
    %v2940 = vunpack.c.l.b16 %v2127
    %v2941 = vunpack.c.h.b16 %v2127
    %v2942 = vunpack.c.l.b16 %v2128
    %v2943 = vunpack.c.h.b16 %v2128
    %v2944 = vunpack.c.l.b16 %v2129
    %v2945 = vunpack.c.h.b16 %v2129
    %v2946 = vunpack.c.l.b16 %v2130
    %v2947 = vunpack.c.h.b16 %v2130
    %v2948 = vunpack.c.l.b16 %v2131
    %v2949 = vunpack.c.h.b16 %v2131
    %v2950 = vunpack.c.l.b16 %v2132
    %v2951 = vunpack.c.h.b16 %v2132
    %v2952 = vunpack.c.l.b16 %v2133
    %v2953 = vunpack.c.h.b16 %v2133
    %v2954 = vunpack.c.l.b16 %v2134
    %v2955 = vunpack.c.h.b16 %v2134
    %v2956 = vunpack.c.l.b16 %v2135
    %v2957 = vunpack.c.h.b16 %v2135
    %v2958 = vunpack.c.l.b16 %v2136
    %v2959 = vunpack.c.h.b16 %v2136
    %v2960 = vunpack.c.l.b16 %v2137
    %v2961 = vunpack.c.h.b16 %v2137
    %v2962 = vunpack.c.l.b16 %v2138
    %v2963 = vunpack.c.h.b16 %v2138
    %v2964 = vunpack.c.l.b16 %v2139
    %v2965 = vunpack.c.h.b16 %v2139
    %v2966 = vunpack.c.l.b16 %v2140
    %v2967 = vunpack.c.h.b16 %v2140
    %v2968 = vunpack.c.l.b16 %v2141
    %v2969 = vunpack.c.h.b16 %v2141
    %v2970 = vunpack.c.l.b16 %v2142
    %v2971 = vunpack.c.h.b16 %v2142
    %v2972 = vunpack.c.l.b16 %v2143
    %v2973 = vunpack.c.h.b16 %v2143
    %v2974 = vunpack.c.l.b16 %v2144
    %v2975 = vunpack.c.h.b16 %v2144
    %v2976 = vunpack.c.l.b16 %v2145
    %v2977 = vunpack.c.h.b16 %v2145
    %v2978 = vunpack.c.l.b16 %v2146
    %v2979 = vunpack.c.h.b16 %v2146
    %v2980 = vunpack.c.l.b16 %v2147
    %v2981 = vunpack.c.h.b16 %v2147
    %v2982 = vunpack.c.l.b16 %v2148
    %v2983 = vunpack.c.h.b16 %v2148
    %v2984 = vunpack.c.l.b16 %v2149
    %v2985 = vunpack.c.h.b16 %v2149
    %v2986 = vunpack.c.l.b16 %v2150
    %v2987 = vunpack.c.h.b16 %v2150
    %v2988 = vunpack.c.l.b16 %v2151
    %v2989 = vunpack.c.h.b16 %v2151
    %v2990 = vunpack.c.l.b16 %v2152
    %v2991 = vunpack.c.h.b16 %v2152
    %v2992 = vunpack.c.l.b16 %v2153
    %v2993 = vunpack.c.h.b16 %v2153
    %v2994 = vunpack.c.l.b16 %v2154
    %v2995 = vunpack.c.h.b16 %v2154
    %v2996 = vunpack.c.l.b16 %v2155
    %v2997 = vunpack.c.h.b16 %v2155
    %v2998 = vunpack.c.l.b16 %v2156
    %v2999 = vunpack.c.h.b16 %v2156
    %v3000 = vunpack.c.l.b16 %v2157
    %v3001 = vunpack.c.h.b16 %v2157
    %v3002 = vunpack.c.l.b16 %v2158
    %v3003 = vunpack.c.h.b16 %v2158
    %v3004 = vunpack.c.l.b16 %v2159
    %v3005 = vunpack.c.h.b16 %v2159
    %v3006 = vunpack.c.l.b16 %v2160
    %v3007 = vunpack.c.h.b16 %v2160
    %v3008 = vunpack.c.l.b16 %v2161
    %v3009 = vunpack.c.h.b16 %v2161
    %v3010 = vunpack.c.l.b16 %v2162
    %v3011 = vunpack.c.h.b16 %v2162
    %v3012 = vunpack.c.l.b16 %v2163
    %v3013 = vunpack.c.h.b16 %v2163
    %v3014 = vunpack.c.l.b16 %v2164
    %v3015 = vunpack.c.h.b16 %v2164
    %v3016 = vunpack.c.l.b16 %v2165
    %v3017 = vunpack.c.h.b16 %v2165
    %v3018 = vunpack.c.l.b16 %v2166
    %v3019 = vunpack.c.h.b16 %v2166
    %v3020 = vunpack.c.l.b16 %v2167
    %v3021 = vunpack.c.h.b16 %v2167
    %v3022 = vunpack.c.l.b16 %v2168
    %v3023 = vunpack.c.h.b16 %v2168
    %v3024 = vunpack.c.l.b16 %v2169
    %v3025 = vunpack.c.h.b16 %v2169
    %v3026 = vunpack.c.l.b16 %v2170
    %v3027 = vunpack.c.h.b16 %v2170
    %v3028 = vunpack.c.l.b16 %v2171
    %v3029 = vunpack.c.h.b16 %v2171
    %v3030 = vunpack.c.l.b16 %v2172
    %v3031 = vunpack.c.h.b16 %v2172
    %v3032 = vunpack.c.l.b16 %v2173
    %v3033 = vunpack.c.h.b16 %v2173
    %v3034 = vunpack.c.l.b16 %v2174
    %v3035 = vunpack.c.h.b16 %v2174
    %v3036 = vunpack.c.l.b16 %v2175
    %v3037 = vunpack.c.h.b16 %v2175
    %v3038 = vunpack.c.l.b16 %v2176
    %v3039 = vunpack.c.h.b16 %v2176
    %v3040 = vunpack.c.l.b16 %v2177
    %v3041 = vunpack.c.h.b16 %v2177
    %v3042 = vunpack.c.l.b16 %v2178
    %v3043 = vunpack.c.h.b16 %v2178
    %v3044 = vunpack.c.l.b16 %v2179
    %v3045 = vunpack.c.h.b16 %v2179
    %v3046 = vunpack.c.l.b16 %v2180
    %v3047 = vunpack.c.h.b16 %v2180
    %v3048 = vunpack.c.l.b16 %v2181
    %v3049 = vunpack.c.h.b16 %v2181
    %v3050 = vunpack.c.l.b16 %v2182
    %v3051 = vunpack.c.h.b16 %v2182
    %v3052 = vunpack.c.l.b16 %v2183
    %v3053 = vunpack.c.h.b16 %v2183
    %v3054 = vunpack.c.l.b16 %v2184
    %v3055 = vunpack.c.h.b16 %v2184
    %v3056 = vunpack.c.l.b16 %v2185
    %v3057 = vunpack.c.h.b16 %v2185
    %v3058 = vunpack.c.l.b16 %v2186
    %v3059 = vunpack.c.h.b16 %v2186
    %v3060 = vunpack.c.l.b16 %v2187
    %v3061 = vunpack.c.h.b16 %v2187
    %v3062 = vunpack.c.l.b16 %v2188
    %v3063 = vunpack.c.h.b16 %v2188
    %v3064 = vunpack.c.l.b16 %v2189
    %v3065 = vunpack.c.h.b16 %v2189
    %v3066 = vunpack.c.l.b16 %v2190
    %v3067 = vunpack.c.h.b16 %v2190
    %v3068 = vunpack.c.l.b16 %v2191
    %v3069 = vunpack.c.h.b16 %v2191
    %v3070 = vunpack.c.l.b16 %v2192
    %v3071 = vunpack.c.h.b16 %v2192
    %v3072 = vunpack.c.l.b16 %v2193
    %v3073 = vunpack.c.h.b16 %v2193
    %v3074 = vunpack.c.l.b16 %v2194
    %v3075 = vunpack.c.h.b16 %v2194
    %v3076 = vunpack.c.l.b16 %v2195
    %v3077 = vunpack.c.h.b16 %v2195
    %v3078 = vunpack.c.l.b16 %v2196
    %v3079 = vunpack.c.h.b16 %v2196
    %v3080 = vunpack.c.l.b16 %v2197
    %v3081 = vunpack.c.h.b16 %v2197
    %v3082 = vunpack.c.l.b16 %v2198
    %v3083 = vunpack.c.h.b16 %v2198
    %v3084 = vunpack.c.l.b16 %v2199
    %v3085 = vunpack.c.h.b16 %v2199
    %v3086 = vunpack.c.l.b16 %v2200
    %v3087 = vunpack.c.h.b16 %v2200
    %v3088 = vunpack.c.l.b16 %v2201
    %v3089 = vunpack.c.h.b16 %v2201
    %v3090 = vunpack.c.l.b16 %v2202
    %v3091 = vunpack.c.h.b16 %v2202
    %v3092 = vunpack.c.l.b16 %v2203
    %v3093 = vunpack.c.h.b16 %v2203
    %v3094 = vunpack.c.l.b16 %v2204
    %v3095 = vunpack.c.h.b16 %v2204
    %v3096 = vunpack.c.l.b16 %v2205
    %v3097 = vunpack.c.h.b16 %v2205
    %v3098 = vunpack.c.l.b16 %v2206
    %v3099 = vunpack.c.h.b16 %v2206
    %v3100 = vunpack.c.l.b16 %v2207
    %v3101 = vunpack.c.h.b16 %v2207
    %v3102 = vunpack.c.l.b16 %v2208
    %v3103 = vunpack.c.h.b16 %v2208
    %v3104 = vunpack.c.l.b16 %v2209
    %v3105 = vunpack.c.h.b16 %v2209
    %v3106 = vunpack.c.l.b16 %v2210
    %v3107 = vunpack.c.h.b16 %v2210
    %v3108 = vunpack.c.l.b16 %v2211
    %v3109 = vunpack.c.h.b16 %v2211
    %v3110 = vunpack.c.l.b16 %v2212
    %v3111 = vunpack.c.h.b16 %v2212
    %v3112 = vunpack.c.l.b16 %v2213
    %v3113 = vunpack.c.h.b16 %v2213
    %v3114 = vunpack.c.l.b16 %v2214
    %v3115 = vunpack.c.h.b16 %v2214
    %v3116 = vunpack.c.l.b16 %v2215
    %v3117 = vunpack.c.h.b16 %v2215
    %v3118 = vunpack.c.l.b16 %v2216
    %v3119 = vunpack.c.h.b16 %v2216
    %v3120 = vunpack.c.l.b16 %v2217
    %v3121 = vunpack.c.h.b16 %v2217
    %v3122 = vunpack.c.l.b16 %v2218
    %v3123 = vunpack.c.h.b16 %v2218
    %v3124 = vunpack.c.l.b16 %v2219
    %v3125 = vunpack.c.h.b16 %v2219
    %v3126 = vunpack.c.l.b16 %v2220
    %v3127 = vunpack.c.h.b16 %v2220
    %v3128 = vunpack.c.l.b16 %v2221
    %v3129 = vunpack.c.h.b16 %v2221
    %v3130 = vunpack.c.l.b16 %v2222
    %v3131 = vunpack.c.h.b16 %v2222
    %v3132 = vunpack.c.l.b16 %v2223
    %v3133 = vunpack.c.h.b16 %v2223
    %v3134 = vunpack.c.l.b16 %v2224
    %v3135 = vunpack.c.h.b16 %v2224
    %v3136 = vunpack.c.l.b16 %v2225
    %v3137 = vunpack.c.h.b16 %v2225
    %v3138 = vunpack.c.l.b16 %v2226
    %v3139 = vunpack.c.h.b16 %v2226
    %v3140 = vunpack.c.l.b16 %v2227
    %v3141 = vunpack.c.h.b16 %v2227
    %v3142 = vunpack.c.l.b16 %v2228
    %v3143 = vunpack.c.h.b16 %v2228
    %v3144 = vunpack.c.l.b16 %v2229
    %v3145 = vunpack.c.h.b16 %v2229
    %v3146 = vunpack.c.l.b16 %v2230
    %v3147 = vunpack.c.h.b16 %v2230
    %v3148 = vunpack.c.l.b16 %v2231
    %v3149 = vunpack.c.h.b16 %v2231
    %v3150 = vunpack.c.l.b16 %v2232
    %v3151 = vunpack.c.h.b16 %v2232
    %v3152 = vunpack.c.l.b16 %v2233
    %v3153 = vunpack.c.h.b16 %v2233
    %v3154 = vunpack.c.l.b16 %v2234
    %v3155 = vunpack.c.h.b16 %v2234
    %v3156 = vunpack.c.l.b16 %v2235
    %v3157 = vunpack.c.h.b16 %v2235
    %v3158 = vunpack.c.l.b16 %v2236
    %v3159 = vunpack.c.h.b16 %v2236
    %v3160 = vunpack.c.l.b16 %v2237
    %v3161 = vunpack.c.h.b16 %v2237
    %v3162 = vunpack.c.l.b16 %v2238
    %v3163 = vunpack.c.h.b16 %v2238
    %v3164 = vunpack.c.l.b16 %v2239
    %v3165 = vunpack.c.h.b16 %v2239
    %v3166 = vunpack.c.l.b16 %v2240
    %v3167 = vunpack.c.h.b16 %v2240
    %v3168 = vunpack.c.l.b16 %v2241
    %v3169 = vunpack.c.h.b16 %v2241
    %v3170 = vunpack.c.l.b16 %v2242
    %v3171 = vunpack.c.h.b16 %v2242
    %v3172 = vunpack.c.l.b16 %v2243
    %v3173 = vunpack.c.h.b16 %v2243
    %v3174 = vunpack.c.l.b16 %v2244
    %v3175 = vunpack.c.h.b16 %v2244
    %v3176 = vunpack.c.l.b16 %v2245
    %v3177 = vunpack.c.h.b16 %v2245
    %v3178 = vunpack.c.l.b16 %v2246
    %v3179 = vunpack.c.h.b16 %v2246
    %v3180 = vunpack.c.l.b16 %v2247
    %v3181 = vunpack.c.h.b16 %v2247
    %v3182 = vunpack.c.l.b16 %v2248
    %v3183 = vunpack.c.h.b16 %v2248
    %v3184 = vunpack.c.l.b16 %v2249
    %v3185 = vunpack.c.h.b16 %v2249
    %v3186 = vunpack.c.l.b16 %v2250
    %v3187 = vunpack.c.h.b16 %v2250
    %v3188 = vunpack.c.l.b16 %v2251
    %v3189 = vunpack.c.h.b16 %v2251
    %v3190 = vunpack.c.l.b16 %v2252
    %v3191 = vunpack.c.h.b16 %v2252
    %v3192 = vunpack.c.l.b16 %v2253
    %v3193 = vunpack.c.h.b16 %v2253
    %v3194 = vunpack.c.l.b16 %v2254
    %v3195 = vunpack.c.h.b16 %v2254
    %v3196 = vunpack.c.l.b16 %v2255
    %v3197 = vunpack.c.h.b16 %v2255
    %v3198 = vunpack.c.l.b16 %v2256
    %v3199 = vunpack.c.h.b16 %v2256
    %v3200 = vunpack.c.l.b16 %v2257
    %v3201 = vunpack.c.h.b16 %v2257
    %v3202 = vunpack.c.l.b16 %v2258
    %v3203 = vunpack.c.h.b16 %v2258
    %v3204 = vunpack.c.l.b16 %v2259
    %v3205 = vunpack.c.h.b16 %v2259
    %v3206 = vunpack.c.l.b16 %v2260
    %v3207 = vunpack.c.h.b16 %v2260
    %v3208 = vunpack.c.l.b16 %v2261
    %v3209 = vunpack.c.h.b16 %v2261
    %v3210 = vunpack.c.l.b16 %v2262
    %v3211 = vunpack.c.h.b16 %v2262
    %v3212 = vunpack.c.l.b16 %v2263
    %v3213 = vunpack.c.h.b16 %v2263
    %v3214 = vunpack.c.l.b16 %v2264
    %v3215 = vunpack.c.h.b16 %v2264
    %v3216 = vunpack.c.l.b16 %v2265
    %v3217 = vunpack.c.h.b16 %v2265
    %v3218 = vunpack.c.l.b16 %v2266
    %v3219 = vunpack.c.h.b16 %v2266
    %v3220 = vunpack.c.l.b16 %v2267
    %v3221 = vunpack.c.h.b16 %v2267
    %v3222 = vunpack.c.l.b16 %v2268
    %v3223 = vunpack.c.h.b16 %v2268
    %v3224 = vunpack.c.l.b16 %v2269
    %v3225 = vunpack.c.h.b16 %v2269
    %v3226 = vunpack.c.l.b16 %v2270
    %v3227 = vunpack.c.h.b16 %v2270
    %v3228 = vunpack.c.l.b16 %v2271
    %v3229 = vunpack.c.h.b16 %v2271
    %v3230 = vunpack.c.l.b16 %v2272
    %v3231 = vunpack.c.h.b16 %v2272
    %v3232 = vunpack.c.l.b16 %v2273
    %v3233 = vunpack.c.h.b16 %v2273
    %v3234 = vunpack.c.l.b16 %v2274
    %v3235 = vunpack.c.h.b16 %v2274
    %v3236 = vunpack.c.l.b16 %v2275
    %v3237 = vunpack.c.h.b16 %v2275
    %v3238 = vunpack.c.l.b16 %v2276
    %v3239 = vunpack.c.h.b16 %v2276
    %v3240 = vunpack.c.l.b16 %v2277
    %v3241 = vunpack.c.h.b16 %v2277
    %v3242 = vunpack.c.l.b16 %v2278
    %v3243 = vunpack.c.h.b16 %v2278
    %v3244 = vunpack.c.l.b16 %v2279
    %v3245 = vunpack.c.h.b16 %v2279
    %v3246 = vunpack.c.l.b16 %v2280
    %v3247 = vunpack.c.h.b16 %v2280
    %v3248 = vunpack.c.l.b16 %v2281
    %v3249 = vunpack.c.h.b16 %v2281
    %v3250 = vunpack.c.l.b16 %v2282
    %v3251 = vunpack.c.h.b16 %v2282
    %v3252 = vunpack.c.l.b16 %v2283
    %v3253 = vunpack.c.h.b16 %v2283
    %v3254 = vunpack.c.l.b16 %v2284
    %v3255 = vunpack.c.h.b16 %v2284
    %v3256 = vunpack.c.l.b16 %v2285
    %v3257 = vunpack.c.h.b16 %v2285
    %v3258 = vunpack.c.l.b16 %v2286
    %v3259 = vunpack.c.h.b16 %v2286
    %v3260 = vunpack.c.l.b16 %v2287
    %v3261 = vunpack.c.h.b16 %v2287
    %v3262 = vunpack.c.l.b16 %v2288
    %v3263 = vunpack.c.h.b16 %v2288
    %v3264 = vunpack.c.l.b16 %v2289
    %v3265 = vunpack.c.h.b16 %v2289
    %v3266 = vunpack.c.l.b16 %v2290
    %v3267 = vunpack.c.h.b16 %v2290
    %v3268 = vunpack.c.l.b16 %v2291
    %v3269 = vunpack.c.h.b16 %v2291
    %v3270 = vunpack.c.l.b16 %v2292
    %v3271 = vunpack.c.h.b16 %v2292
    %v3272 = vunpack.c.l.b16 %v2293
    %v3273 = vunpack.c.h.b16 %v2293
    %v3274 = vunpack.c.l.b16 %v2294
    %v3275 = vunpack.c.h.b16 %v2294
    %v3276 = vunpack.c.l.b16 %v2295
    %v3277 = vunpack.c.h.b16 %v2295
    %v3278 = vunpack.c.l.b16 %v2296
    %v3279 = vunpack.c.h.b16 %v2296
    %v3280 = vunpack.c.l.b16 %v2297
    %v3281 = vunpack.c.h.b16 %v2297
    %v3282 = vunpack.c.l.b16 %v2298
    %v3283 = vunpack.c.h.b16 %v2298
    %v3284 = vunpack.c.l.b16 %v2299
    %v3285 = vunpack.c.h.b16 %v2299
    %v3286 = vunpack.c.l.b16 %v2300
    %v3287 = vunpack.c.h.b16 %v2300
    %v3288 = vunpack.c.l.b16 %v2301
    %v3289 = vunpack.c.h.b16 %v2301
    %v3290 = vunpack.c.l.b16 %v2302
    %v3291 = vunpack.c.h.b16 %v2302
    %v3292 = vunpack.c.l.b16 %v2303
    %v3293 = vunpack.c.h.b16 %v2303
    %v3294 = vunpack.c.l.b16 %v2304
    %v3295 = vunpack.c.h.b16 %v2304
    %v3296 = vunpack.c.l.b16 %v2305
    %v3297 = vunpack.c.h.b16 %v2305
    %v3298 = vunpack.c.l.b16 %v2306
    %v3299 = vunpack.c.h.b16 %v2306
    %v3300 = vunpack.c.l.b16 %v2307
    %v3301 = vunpack.c.h.b16 %v2307
    %v3302 = vunpack.c.l.b16 %v2308
    %v3303 = vunpack.c.h.b16 %v2308
    %v3304 = vunpack.c.l.b16 %v2309
    %v3305 = vunpack.c.h.b16 %v2309
    %v3306 = vunpack.c.l.b16 %v2310
    %v3307 = vunpack.c.h.b16 %v2310
    %v3308 = vunpack.c.l.b16 %v2311
    %v3309 = vunpack.c.h.b16 %v2311
    %v3310 = vunpack.c.l.b16 %v2312
    %v3311 = vunpack.c.h.b16 %v2312
    %v3312 = vunpack.c.l.b16 %v2313
    %v3313 = vunpack.c.h.b16 %v2313
    %v3314 = vunpack.c.l.b16 %v2314
    %v3315 = vunpack.c.h.b16 %v2314
    %v3316 = vunpack.c.l.b16 %v2315
    %v3317 = vunpack.c.h.b16 %v2315
    %v3318 = vunpack.c.l.b16 %v2316
    %v3319 = vunpack.c.h.b16 %v2316
    %v3320 = vunpack.c.l.b16 %v2317
    %v3321 = vunpack.c.h.b16 %v2317
    %v3322 = vunpack.c.l.b16 %v2318
    %v3323 = vunpack.c.h.b16 %v2318
    %v3324 = vunpack.c.l.b16 %v2319
    %v3325 = vunpack.c.h.b16 %v2319
    %v3326 = vunpack.c.l.b16 %v2320
    %v3327 = vunpack.c.h.b16 %v2320
    %v3328 = vunpack.c.l.b16 %v2321
    %v3329 = vunpack.c.h.b16 %v2321
    %v3330 = vunpack.c.l.b16 %v2322
    %v3331 = vunpack.c.h.b16 %v2322
    %v3332 = vunpack.c.l.b16 %v2323
    %v3333 = vunpack.c.h.b16 %v2323
    %v3334 = vunpack.c.l.b16 %v2324
    %v3335 = vunpack.c.h.b16 %v2324
    %v3336 = vunpack.c.l.b16 %v2325
    %v3337 = vunpack.c.h.b16 %v2325
    %v3338 = vunpack.c.l.b16 %v2326
    %v3339 = vunpack.c.h.b16 %v2326
    %v3340 = vunpack.c.l.b16 %v2327
    %v3341 = vunpack.c.h.b16 %v2327
    %v3342 = vunpack.c.l.b16 %v2328
    %v3343 = vunpack.c.h.b16 %v2328
    %v3344 = vunpack.c.l.b16 %v2329
    %v3345 = vunpack.c.h.b16 %v2329
    %v3346 = vunpack.c.l.b16 %v2330
    %v3347 = vunpack.c.h.b16 %v2330
    %v3348 = vunpack.c.l.b16 %v2331
    %v3349 = vunpack.c.h.b16 %v2331
    %v3350 = vunpack.c.l.b16 %v2332
    %v3351 = vunpack.c.h.b16 %v2332
    %v3352 = vunpack.c.l.b16 %v2333
    %v3353 = vunpack.c.h.b16 %v2333
    %v3354 = vunpack.c.l.b16 %v2334
    %v3355 = vunpack.c.h.b16 %v2334
    %v3356 = vunpack.c.l.b16 %v2335
    %v3357 = vunpack.c.h.b16 %v2335
    %v3358 = vunpack.c.l.b16 %v2336
    %v3359 = vunpack.c.h.b16 %v2336
    %v3360 = vunpack.c.l.b16 %v2337
    %v3361 = vunpack.c.h.b16 %v2337
    %v3362 = vunpack.c.l.b16 %v2338
    %v3363 = vunpack.c.h.b16 %v2338
    %v3364 = vunpack.c.l.b16 %v2339
    %v3365 = vunpack.c.h.b16 %v2339
    %v3366 = vunpack.c.l.b16 %v2340
    %v3367 = vunpack.c.h.b16 %v2340
    %v3368 = vunpack.c.l.b16 %v2341
    %v3369 = vunpack.c.h.b16 %v2341
    %v3370 = vunpack.c.l.b16 %v2342
    %v3371 = vunpack.c.h.b16 %v2342
    %v3372 = vunpack.c.l.b16 %v2343
    %v3373 = vunpack.c.h.b16 %v2343
    %v3374 = vunpack.c.l.b16 %v2344
    %v3375 = vunpack.c.h.b16 %v2344
    %v3376 = vunpack.c.l.b16 %v2345
    %v3377 = vunpack.c.h.b16 %v2345
    %v3378 = vunpack.c.l.b16 %v2346
    %v3379 = vunpack.c.h.b16 %v2346
    %v3380 = vunpack.c.l.b16 %v2347
    %v3381 = vunpack.c.h.b16 %v2347
    %v3382 = vunpack.c.l.b16 %v2348
    %v3383 = vunpack.c.h.b16 %v2348
    %v3384 = vunpack.c.l.b16 %v2349
    %v3385 = vunpack.c.h.b16 %v2349
    %v3386 = vunpack.c.l.b16 %v2350
    %v3387 = vunpack.c.h.b16 %v2350
    %v3388 = vunpack.c.l.b16 %v2351
    %v3389 = vunpack.c.h.b16 %v2351
    %v3390 = vunpack.c.l.b16 %v2352
    %v3391 = vunpack.c.h.b16 %v2352
    %v3392 = vunpack.c.l.b16 %v2353
    %v3393 = vunpack.c.h.b16 %v2353
    %v3394 = vunpack.c.l.b16 %v2354
    %v3395 = vunpack.c.h.b16 %v2354
    %v3396 = vunpack.c.l.b16 %v2355
    %v3397 = vunpack.c.h.b16 %v2355
    %v3398 = vunpack.c.l.b16 %v2356
    %v3399 = vunpack.c.h.b16 %v2356
    %v3400 = vunpack.c.l.b16 %v2357
    %v3401 = vunpack.c.h.b16 %v2357
    %v3402 = vunpack.c.l.b16 %v2358
    %v3403 = vunpack.c.h.b16 %v2358
    %v3404 = vunpack.c.l.b16 %v2359
    %v3405 = vunpack.c.h.b16 %v2359
    %v3406 = vunpack.c.l.b16 %v2360
    %v3407 = vunpack.c.h.b16 %v2360
    %v3408 = vunpack.c.l.b16 %v2361
    %v3409 = vunpack.c.h.b16 %v2361
    %v3410 = vunpack.c.l.b16 %v2362
    %v3411 = vunpack.c.h.b16 %v2362
    %v3412 = vunpack.c.l.b16 %v2363
    %v3413 = vunpack.c.h.b16 %v2363
    %v3414 = vunpack.c.l.b16 %v2364
    %v3415 = vunpack.c.h.b16 %v2364
    %v3416 = vunpack.c.l.b16 %v2365
    %v3417 = vunpack.c.h.b16 %v2365
    %v3418 = vunpack.c.l.b16 %v2366
    %v3419 = vunpack.c.h.b16 %v2366
    %v3420 = vunpack.c.l.b16 %v2367
    %v3421 = vunpack.c.h.b16 %v2367
    %v3422 = vunpack.c.l.b16 %v2368
    %v3423 = vunpack.c.h.b16 %v2368
    %v3424 = vunpack.c.l.b16 %v2369
    %v3425 = vunpack.c.h.b16 %v2369
    %v3426 = vunpack.c.l.b16 %v2370
    %v3427 = vunpack.c.h.b16 %v2370
    %v3428 = vunpack.c.l.b16 %v2371
    %v3429 = vunpack.c.h.b16 %v2371
    %v3430 = vunpack.c.l.b16 %v2372
    %v3431 = vunpack.c.h.b16 %v2372
    %v3432 = vunpack.c.l.b16 %v2373
    %v3433 = vunpack.c.h.b16 %v2373
    %v3434 = vunpack.c.l.b16 %v2374
    %v3435 = vunpack.c.h.b16 %v2374
    %v3436 = vunpack.c.l.b16 %v2375
    %v3437 = vunpack.c.h.b16 %v2375
    %v3438 = vunpack.c.l.b16 %v2376
    %v3439 = vunpack.c.h.b16 %v2376
    %v3440 = vunpack.c.l.b16 %v2377
    %v3441 = vunpack.c.h.b16 %v2377
    %v3442 = vunpack.c.l.b16 %v2378
    %v3443 = vunpack.c.h.b16 %v2378
    %v3444 = vunpack.c.l.b16 %v2379
    %v3445 = vunpack.c.h.b16 %v2379
    %v3446 = vunpack.c.l.b16 %v2380
    %v3447 = vunpack.c.h.b16 %v2380
    %v3448 = vunpack.c.l.b16 %v2381
    %v3449 = vunpack.c.h.b16 %v2381
    %v3450 = vunpack.c.l.b16 %v2382
    %v3451 = vunpack.c.h.b16 %v2382
    %v3452 = vunpack.c.l.b16 %v2383
    %v3453 = vunpack.c.h.b16 %v2383
    %v3454 = vunpack.c.l.b16 %v2384
    %v3455 = vunpack.c.h.b16 %v2384
    %v3456 = vunpack.c.l.b16 %v2385
    %v3457 = vunpack.c.h.b16 %v2385
    %v3458 = vunpack.c.l.b16 %v2386
    %v3459 = vunpack.c.h.b16 %v2386
    %v3460 = vunpack.c.l.b16 %v2387
    %v3461 = vunpack.c.h.b16 %v2387
    %v3462 = vunpack.c.l.b16 %v2388
    %v3463 = vunpack.c.h.b16 %v2388
    %v3464 = vunpack.c.l.b16 %v2389
    %v3465 = vunpack.c.h.b16 %v2389
    %v3466 = vunpack.c.l.b16 %v2390
    %v3467 = vunpack.c.h.b16 %v2390
    %v3468 = vunpack.c.l.b16 %v2391
    %v3469 = vunpack.c.h.b16 %v2391
    %v3470 = vunpack.c.l.b16 %v2392
    %v3471 = vunpack.c.h.b16 %v2392
    %v3472 = vunpack.c.l.b16 %v2393
    %v3473 = vunpack.c.h.b16 %v2393
    %v3474 = vunpack.c.l.b16 %v2394
    %v3475 = vunpack.c.h.b16 %v2394
    %v3476 = vunpack.c.l.b16 %v2395
    %v3477 = vunpack.c.h.b16 %v2395
    %v3478 = vunpack.c.l.b16 %v2396
    %v3479 = vunpack.c.h.b16 %v2396
    %v3480 = vunpack.c.l.b16 %v2397
    %v3481 = vunpack.c.h.b16 %v2397
    %v3482 = vunpack.c.l.b16 %v2398
    %v3483 = vunpack.c.h.b16 %v2398
    %v3484 = vunpack.c.l.b16 %v2399
    %v3485 = vunpack.c.h.b16 %v2399
    %v3486 = vunpack.c.l.b16 %v2400
    %v3487 = vunpack.c.h.b16 %v2400
    %v3488 = vunpack.c.l.b16 %v2401
    %v3489 = vunpack.c.h.b16 %v2401
    %v3490 = vunpack.c.l.b16 %v2402
    %v3491 = vunpack.c.h.b16 %v2402
    %v3492 = vunpack.c.l.b16 %v2403
    %v3493 = vunpack.c.h.b16 %v2403
    %v3494 = vunpack.c.l.b16 %v2404
    %v3495 = vunpack.c.h.b16 %v2404
    %v3496 = vunpack.c.l.b16 %v2405
    %v3497 = vunpack.c.h.b16 %v2405
    %v3498 = vunpack.c.l.b16 %v2406
    %v3499 = vunpack.c.h.b16 %v2406
    %v3500 = vunpack.c.l.b16 %v2407
    %v3501 = vunpack.c.h.b16 %v2407
    %v3502 = vunpack.c.l.b16 %v2408
    %v3503 = vunpack.c.h.b16 %v2408
    %v3504 = vunpack.c.l.b16 %v2409
    %v3505 = vunpack.c.h.b16 %v2409
    %v3506 = vunpack.c.l.b16 %v2410
    %v3507 = vunpack.c.h.b16 %v2410
    %v3508 = vunpack.c.l.b16 %v2411
    %v3509 = vunpack.c.h.b16 %v2411
    %v3510 = vunpack.c.l.b16 %v2412
    %v3511 = vunpack.c.h.b16 %v2412
    %v3512 = vunpack.c.l.b16 %v2413
    %v3513 = vunpack.c.h.b16 %v2413
    %v3514 = vunpack.c.l.b16 %v2414
    %v3515 = vunpack.c.h.b16 %v2414
    %v3516 = vunpack.c.l.b16 %v2415
    %v3517 = vunpack.c.h.b16 %v2415
    %v3518 = vunpack.c.l.b16 %v2416
    %v3519 = vunpack.c.h.b16 %v2416
    %v3520 = vunpack.c.l.b16 %v2417
    %v3521 = vunpack.c.h.b16 %v2417
    %v3522 = vunpack.c.l.b16 %v2418
    %v3523 = vunpack.c.h.b16 %v2418
    %v3524 = vunpack.c.l.b16 %v2419
    %v3525 = vunpack.c.h.b16 %v2419
    %v3526 = vunpack.c.l.b16 %v2420
    %v3527 = vunpack.c.h.b16 %v2420
    %v3528 = vunpack.c.l.b16 %v2421
    %v3529 = vunpack.c.h.b16 %v2421
    %v3530 = vunpack.c.l.b16 %v2422
    %v3531 = vunpack.c.h.b16 %v2422
    %v3532 = vunpack.c.l.b16 %v2423
    %v3533 = vunpack.c.h.b16 %v2423
    %v3534 = vunpack.c.l.b16 %v2424
    %v3535 = vunpack.c.h.b16 %v2424
    %v3536 = vunpack.c.l.b16 %v2425
    %v3537 = vunpack.c.h.b16 %v2425
    %v3538 = vunpack.c.l.b16 %v2426
    %v3539 = vunpack.c.h.b16 %v2426
    %v3540 = vunpack.c.l.b16 %v2427
    %v3541 = vunpack.c.h.b16 %v2427
    %v3542 = vunpack.c.l.b16 %v2428
    %v3543 = vunpack.c.h.b16 %v2428
    %v3544 = vunpack.c.l.b16 %v2429
    %v3545 = vunpack.c.h.b16 %v2429
    %v3546 = vunpack.c.l.b16 %v2430
    %v3547 = vunpack.c.h.b16 %v2430
    %v3548 = vunpack.c.l.b16 %v2431
    %v3549 = vunpack.c.h.b16 %v2431
    %v3550 = vunpack.c.l.b16 %v2432
    %v3551 = vunpack.c.h.b16 %v2432
    %v3552 = vunpack.c.l.b16 %v2433
    %v3553 = vunpack.c.h.b16 %v2433
    %v3554 = vunpack.c.l.b16 %v2434
    %v3555 = vunpack.c.h.b16 %v2434
    %v3556 = vunpack.c.l.b16 %v2435
    %v3557 = vunpack.c.h.b16 %v2435
    %v3558 = vunpack.c.l.b16 %v2436
    %v3559 = vunpack.c.h.b16 %v2436
    %v3560 = vunpack.c.l.b16 %v2437
    %v3561 = vunpack.c.h.b16 %v2437
    %v3562 = vunpack.c.l.b16 %v2438
    %v3563 = vunpack.c.h.b16 %v2438
    %v3564 = vunpack.c.l.b16 %v2439
    %v3565 = vunpack.c.h.b16 %v2439
    %v3566 = vunpack.c.l.b16 %v2440
    %v3567 = vunpack.c.h.b16 %v2440
    %v3568 = vunpack.c.l.b16 %v2441
    %v3569 = vunpack.c.h.b16 %v2441
    %v3570 = vunpack.c.l.b16 %v2442
    %v3571 = vunpack.c.h.b16 %v2442
    %v3572 = vunpack.c.l.b16 %v2443
    %v3573 = vunpack.c.h.b16 %v2443
    %v3574 = vunpack.c.l.b16 %v2444
    %v3575 = vunpack.c.h.b16 %v2444
    %v3576 = vunpack.c.l.b16 %v2445
    %v3577 = vunpack.c.h.b16 %v2445
    %v3578 = vunpack.c.l.b16 %v2446
    %v3579 = vunpack.c.h.b16 %v2446
    %v3580 = vunpack.c.l.b16 %v2447
    %v3581 = vunpack.c.h.b16 %v2447
    %v3582 = vunpack.c.l.b16 %v2448
    %v3583 = vunpack.c.h.b16 %v2448
    %v3584 = vunpack.c.l.b16 %v2449
    %v3585 = vunpack.c.h.b16 %v2449
    %v3586 = vunpack.c.l.b16 %v2450
    %v3587 = vunpack.c.h.b16 %v2450
    %v3588 = vunpack.c.l.b16 %v2451
    %v3589 = vunpack.c.h.b16 %v2451
    %v3590 = vunpack.c.l.b16 %v2452
    %v3591 = vunpack.c.h.b16 %v2452
    %v3592 = vunpack.c.l.b16 %v2453
    %v3593 = vunpack.c.h.b16 %v2453
    %v3594 = vunpack.c.l.b16 %v2454
    %v3595 = vunpack.c.h.b16 %v2454
    %v3596 = vunpack.c.l.b16 %v2455
    %v3597 = vunpack.c.h.b16 %v2455
    %v3598 = vunpack.c.l.b16 %v2456
    %v3599 = vunpack.c.h.b16 %v2456
    %v3600 = vunpack.c.l.b16 %v2457
    %v3601 = vunpack.c.h.b16 %v2457
    %v3602 = vunpack.c.l.b16 %v2458
    %v3603 = vunpack.c.h.b16 %v2458
    %v3604 = vunpack.c.l.b16 %v2459
    %v3605 = vunpack.c.h.b16 %v2459
    %v3606 = vunpack.c.l.b16 %v2460
    %v3607 = vunpack.c.h.b16 %v2460
    %v3608 = vunpack.c.l.b16 %v2461
    %v3609 = vunpack.c.h.b16 %v2461
    %v3610 = vunpack.c.l.b16 %v2462
    %v3611 = vunpack.c.h.b16 %v2462
    %v3612 = vunpack.c.l.b16 %v2463
    %v3613 = vunpack.c.h.b16 %v2463
    %v3614 = vunpack.c.l.b16 %v2464
    %v3615 = vunpack.c.h.b16 %v2464
    %v3616 = vunpack.c.l.b16 %v2465
    %v3617 = vunpack.c.h.b16 %v2465
    %v3618 = vunpack.c.l.b16 %v2466
    %v3619 = vunpack.c.h.b16 %v2466
    %v3620 = vunpack.c.l.b16 %v2467
    %v3621 = vunpack.c.h.b16 %v2467
    %v3622 = vunpack.c.l.b16 %v2468
    %v3623 = vunpack.c.h.b16 %v2468
    %v3624 = vunpack.c.l.b16 %v2469
    %v3625 = vunpack.c.h.b16 %v2469
    %v3626 = vunpack.c.l.b16 %v2470
    %v3627 = vunpack.c.h.b16 %v2470
    %v3628 = vunpack.c.l.b16 %v2471
    %v3629 = vunpack.c.h.b16 %v2471
    %v3630 = vunpack.c.l.b16 %v2472
    %v3631 = vunpack.c.h.b16 %v2472
    %v3632 = vunpack.c.l.b16 %v2473
    %v3633 = vunpack.c.h.b16 %v2473
    %v3634 = vunpack.c.l.b16 %v2474
    %v3635 = vunpack.c.h.b16 %v2474
    %v3636 = vunpack.c.l.b16 %v2475
    %v3637 = vunpack.c.h.b16 %v2475
    %v3638 = vunpack.c.l.b16 %v2476
    %v3639 = vunpack.c.h.b16 %v2476
    %v3640 = vunpack.c.l.b16 %v2477
    %v3641 = vunpack.c.h.b16 %v2477
    %v3642 = vunpack.c.l.b16 %v2478
    %v3643 = vunpack.c.h.b16 %v2478
    %v3644 = vunpack.c.l.b16 %v2479
    %v3645 = vunpack.c.h.b16 %v2479
    %v3646 = vunpack.c.l.b16 %v2480
    %v3647 = vunpack.c.h.b16 %v2480
    %v3648 = vunpack.c.l.b16 %v2481
    %v3649 = vunpack.c.h.b16 %v2481
    %v3650 = vunpack.c.l.b16 %v2482
    %v3651 = vunpack.c.h.b16 %v2482
    %v3652 = vunpack.c.l.b16 %v2483
    %v3653 = vunpack.c.h.b16 %v2483
    %v3654 = vunpack.c.l.b16 %v2484
    %v3655 = vunpack.c.h.b16 %v2484
    %v3656 = vunpack.c.l.b16 %v2485
    %v3657 = vunpack.c.h.b16 %v2485
    %v3658 = vunpack.c.l.b16 %v2486
    %v3659 = vunpack.c.h.b16 %v2486
    %v3660 = vunpack.c.l.b16 %v2487
    %v3661 = vunpack.c.h.b16 %v2487
    %v3662 = vunpack.c.l.b16 %v2488
    %v3663 = vunpack.c.h.b16 %v2488
    %v3664 = vunpack.c.l.b16 %v2489
    %v3665 = vunpack.c.h.b16 %v2489
    %v3666 = vunpack.c.l.b16 %v2490
    %v3667 = vunpack.c.h.b16 %v2490
    %v3668 = vunpack.c.l.b16 %v2491
    %v3669 = vunpack.c.h.b16 %v2491
    %v3670 = vunpack.c.l.b16 %v2492
    %v3671 = vunpack.c.h.b16 %v2492
    %v3672 = vunpack.c.l.b16 %v2493
    %v3673 = vunpack.c.h.b16 %v2493
    %v3674 = vunpack.c.l.b16 %v2494
    %v3675 = vunpack.c.h.b16 %v2494
    %v3676 = vunpack.c.l.b16 %v2495
    %v3677 = vunpack.c.h.b16 %v2495
    %v3678 = vunpack.c.l.b16 %v2496
    %v3679 = vunpack.c.h.b16 %v2496
    %v3680 = vunpack.c.l.b16 %v2497
    %v3681 = vunpack.c.h.b16 %v2497
    %v3682 = vunpack.c.l.b16 %v2498
    %v3683 = vunpack.c.h.b16 %v2498
    %v3684 = vunpack.c.l.b16 %v2499
    %v3685 = vunpack.c.h.b16 %v2499
    %v3686 = vunpack.c.l.b16 %v2500
    %v3687 = vunpack.c.h.b16 %v2500
    %v3688 = vunpack.c.l.b16 %v2501
    %v3689 = vunpack.c.h.b16 %v2501
    %v3690 = vunpack.c.l.b16 %v2502
    %v3691 = vunpack.c.h.b16 %v2502
    %v3692 = vunpack.c.l.b16 %v2503
    %v3693 = vunpack.c.h.b16 %v2503
    %v3694 = vunpack.c.l.b16 %v2504
    %v3695 = vunpack.c.h.b16 %v2504
    %v3696 = vunpack.c.l.b16 %v2505
    %v3697 = vunpack.c.h.b16 %v2505
    %v3698 = vunpack.c.l.b16 %v2506
    %v3699 = vunpack.c.h.b16 %v2506
    %v3700 = vunpack.c.l.b16 %v2507
    %v3701 = vunpack.c.h.b16 %v2507
    %v3702 = vunpack.c.l.b16 %v2508
    %v3703 = vunpack.c.h.b16 %v2508
    %v3704 = vunpack.c.l.b16 %v2509
    %v3705 = vunpack.c.h.b16 %v2509
    %v3706 = vunpack.c.l.b16 %v2510
    %v3707 = vunpack.c.h.b16 %v2510
    %v3708 = vunpack.c.l.b16 %v2511
    %v3709 = vunpack.c.h.b16 %v2511
    %v3710 = vunpack.c.l.b16 %v2512
    %v3711 = vunpack.c.h.b16 %v2512
    %v3712 = vunpack.c.l.b16 %v2513
    %v3713 = vunpack.c.h.b16 %v2513
    %v3714 = vunpack.c.l.b16 %v2514
    %v3715 = vunpack.c.h.b16 %v2514
    %v3716 = vunpack.c.l.b16 %v2515
    %v3717 = vunpack.c.h.b16 %v2515
    %v3718 = vunpack.c.l.b16 %v2516
    %v3719 = vunpack.c.h.b16 %v2516
    %v3720 = vunpack.c.l.b16 %v2517
    %v3721 = vunpack.c.h.b16 %v2517
    %v3722 = vunpack.c.l.b16 %v2518
    %v3723 = vunpack.c.h.b16 %v2518
    %v3724 = vunpack.c.l.b16 %v2519
    %v3725 = vunpack.c.h.b16 %v2519
    %v3726 = vunpack.c.l.b16 %v2520
    %v3727 = vunpack.c.h.b16 %v2520
    %v3728 = vunpack.c.l.b16 %v2521
    %v3729 = vunpack.c.h.b16 %v2521
    %v3730 = vunpack.c.l.b16 %v2522
    %v3731 = vunpack.c.h.b16 %v2522
    %v3732 = vunpack.c.l.b16 %v2523
    %v3733 = vunpack.c.h.b16 %v2523
    %v3734 = vpack.c.b16 %v2938, %v2934
    %v3735 = vpack.c.b16 %v2939, %v2935
    %v3736 = vpack.c.b16 %v2940, %v2936
    %v3737 = vpack.c.b16 %v2941, %v2937
    %v3738 = vpack.c.b16 %v2946, %v2942
    %v3739 = vpack.c.b16 %v2947, %v2943
    %v3740 = vpack.c.b16 %v2948, %v2944
    %v3741 = vpack.c.b16 %v2949, %v2945
    %v3742 = vpack.c.b16 %v2954, %v2950
    %v3743 = vpack.c.b16 %v2955, %v2951
    %v3744 = vpack.c.b16 %v2956, %v2952
    %v3745 = vpack.c.b16 %v2957, %v2953
    %v3746 = vpack.c.b16 %v2962, %v2958
    %v3747 = vpack.c.b16 %v2963, %v2959
    %v3748 = vpack.c.b16 %v2964, %v2960
    %v3749 = vpack.c.b16 %v2965, %v2961
    %v3750 = vpack.c.b16 %v2970, %v2966
    %v3751 = vpack.c.b16 %v2971, %v2967
    %v3752 = vpack.c.b16 %v2972, %v2968
    %v3753 = vpack.c.b16 %v2973, %v2969
    %v3754 = vpack.c.b16 %v2978, %v2974
    %v3755 = vpack.c.b16 %v2979, %v2975
    %v3756 = vpack.c.b16 %v2980, %v2976
    %v3757 = vpack.c.b16 %v2981, %v2977
    %v3758 = vpack.c.b16 %v2986, %v2982
    %v3759 = vpack.c.b16 %v2987, %v2983
    %v3760 = vpack.c.b16 %v2988, %v2984
    %v3761 = vpack.c.b16 %v2989, %v2985
    %v3762 = vpack.c.b16 %v2994, %v2990
    %v3763 = vpack.c.b16 %v2995, %v2991
    %v3764 = vpack.c.b16 %v2996, %v2992
    %v3765 = vpack.c.b16 %v2997, %v2993
    %v3766 = vpack.c.b16 %v3002, %v2998
    %v3767 = vpack.c.b16 %v3003, %v2999
    %v3768 = vpack.c.b16 %v3004, %v3000
    %v3769 = vpack.c.b16 %v3005, %v3001
    %v3770 = vpack.c.b16 %v3010, %v3006
    %v3771 = vpack.c.b16 %v3011, %v3007
    %v3772 = vpack.c.b16 %v3012, %v3008
    %v3773 = vpack.c.b16 %v3013, %v3009
    %v3774 = vpack.c.b16 %v3018, %v3014
    %v3775 = vpack.c.b16 %v3019, %v3015
    %v3776 = vpack.c.b16 %v3020, %v3016
    %v3777 = vpack.c.b16 %v3021, %v3017
    %v3778 = vpack.c.b16 %v3026, %v3022
    %v3779 = vpack.c.b16 %v3027, %v3023
    %v3780 = vpack.c.b16 %v3028, %v3024
    %v3781 = vpack.c.b16 %v3029, %v3025
    %v3782 = vpack.c.b16 %v3034, %v3030
    %v3783 = vpack.c.b16 %v3035, %v3031
    %v3784 = vpack.c.b16 %v3036, %v3032
    %v3785 = vpack.c.b16 %v3037, %v3033
    %v3786 = vpack.c.b16 %v3042, %v3038
    %v3787 = vpack.c.b16 %v3043, %v3039
    %v3788 = vpack.c.b16 %v3044, %v3040
    %v3789 = vpack.c.b16 %v3045, %v3041
    %v3790 = vpack.c.b16 %v3050, %v3046
    %v3791 = vpack.c.b16 %v3051, %v3047
    %v3792 = vpack.c.b16 %v3052, %v3048
    %v3793 = vpack.c.b16 %v3053, %v3049
    %v3794 = vpack.c.b16 %v3058, %v3054
    %v3795 = vpack.c.b16 %v3059, %v3055
    %v3796 = vpack.c.b16 %v3060, %v3056
    %v3797 = vpack.c.b16 %v3061, %v3057
    %v3798 = vpack.c.b16 %v3066, %v3062
    %v3799 = vpack.c.b16 %v3067, %v3063
    %v3800 = vpack.c.b16 %v3068, %v3064
    %v3801 = vpack.c.b16 %v3069, %v3065
    %v3802 = vpack.c.b16 %v3074, %v3070
    %v3803 = vpack.c.b16 %v3075, %v3071
    %v3804 = vpack.c.b16 %v3076, %v3072
    %v3805 = vpack.c.b16 %v3077, %v3073
    %v3806 = vpack.c.b16 %v3082, %v3078
    %v3807 = vpack.c.b16 %v3083, %v3079
    %v3808 = vpack.c.b16 %v3084, %v3080
    %v3809 = vpack.c.b16 %v3085, %v3081
    %v3810 = vpack.c.b16 %v3090, %v3086
    %v3811 = vpack.c.b16 %v3091, %v3087
    %v3812 = vpack.c.b16 %v3092, %v3088
    %v3813 = vpack.c.b16 %v3093, %v3089
    %v3814 = vpack.c.b16 %v3098, %v3094
    %v3815 = vpack.c.b16 %v3099, %v3095
    %v3816 = vpack.c.b16 %v3100, %v3096
    %v3817 = vpack.c.b16 %v3101, %v3097
    %v3818 = vpack.c.b16 %v3106, %v3102
    %v3819 = vpack.c.b16 %v3107, %v3103
    %v3820 = vpack.c.b16 %v3108, %v3104
    %v3821 = vpack.c.b16 %v3109, %v3105
    %v3822 = vpack.c.b16 %v3114, %v3110
    %v3823 = vpack.c.b16 %v3115, %v3111
    %v3824 = vpack.c.b16 %v3116, %v3112
    %v3825 = vpack.c.b16 %v3117, %v3113
    %v3826 = vpack.c.b16 %v3122, %v3118
    %v3827 = vpack.c.b16 %v3123, %v3119
    %v3828 = vpack.c.b16 %v3124, %v3120
    %v3829 = vpack.c.b16 %v3125, %v3121
    %v3830 = vpack.c.b16 %v3130, %v3126
    %v3831 = vpack.c.b16 %v3131, %v3127
    %v3832 = vpack.c.b16 %v3132, %v3128
    %v3833 = vpack.c.b16 %v3133, %v3129
    %v3834 = vpack.c.b16 %v3138, %v3134
    %v3835 = vpack.c.b16 %v3139, %v3135
    %v3836 = vpack.c.b16 %v3140, %v3136
    %v3837 = vpack.c.b16 %v3141, %v3137
    %v3838 = vpack.c.b16 %v3146, %v3142
    %v3839 = vpack.c.b16 %v3147, %v3143
    %v3840 = vpack.c.b16 %v3148, %v3144
    %v3841 = vpack.c.b16 %v3149, %v3145
    %v3842 = vpack.c.b16 %v3154, %v3150
    %v3843 = vpack.c.b16 %v3155, %v3151
    %v3844 = vpack.c.b16 %v3156, %v3152
    %v3845 = vpack.c.b16 %v3157, %v3153
    %v3846 = vpack.c.b16 %v3162, %v3158
    %v3847 = vpack.c.b16 %v3163, %v3159
    %v3848 = vpack.c.b16 %v3164, %v3160
    %v3849 = vpack.c.b16 %v3165, %v3161
    %v3850 = vpack.c.b16 %v3170, %v3166
    %v3851 = vpack.c.b16 %v3171, %v3167
    %v3852 = vpack.c.b16 %v3172, %v3168
    %v3853 = vpack.c.b16 %v3173, %v3169
    %v3854 = vpack.c.b16 %v3178, %v3174
    %v3855 = vpack.c.b16 %v3179, %v3175
    %v3856 = vpack.c.b16 %v3180, %v3176
    %v3857 = vpack.c.b16 %v3181, %v3177
    %v3858 = vpack.c.b16 %v3186, %v3182
    %v3859 = vpack.c.b16 %v3187, %v3183
    %v3860 = vpack.c.b16 %v3188, %v3184
    %v3861 = vpack.c.b16 %v3189, %v3185
    %v3862 = vpack.c.b16 %v3194, %v3190
    %v3863 = vpack.c.b16 %v3195, %v3191
    %v3864 = vpack.c.b16 %v3196, %v3192
    %v3865 = vpack.c.b16 %v3197, %v3193
    %v3866 = vpack.c.b16 %v3202, %v3198
    %v3867 = vpack.c.b16 %v3203, %v3199
    %v3868 = vpack.c.b16 %v3204, %v3200
    %v3869 = vpack.c.b16 %v3205, %v3201
    %v3870 = vpack.c.b16 %v3210, %v3206
    %v3871 = vpack.c.b16 %v3211, %v3207
    %v3872 = vpack.c.b16 %v3212, %v3208
    %v3873 = vpack.c.b16 %v3213, %v3209
    %v3874 = vpack.c.b16 %v3218, %v3214
    %v3875 = vpack.c.b16 %v3219, %v3215
    %v3876 = vpack.c.b16 %v3220, %v3216
    %v3877 = vpack.c.b16 %v3221, %v3217
    %v3878 = vpack.c.b16 %v3226, %v3222
    %v3879 = vpack.c.b16 %v3227, %v3223
    %v3880 = vpack.c.b16 %v3228, %v3224
    %v3881 = vpack.c.b16 %v3229, %v3225
    %v3882 = vpack.c.b16 %v3234, %v3230
    %v3883 = vpack.c.b16 %v3235, %v3231
    %v3884 = vpack.c.b16 %v3236, %v3232
    %v3885 = vpack.c.b16 %v3237, %v3233
    %v3886 = vpack.c.b16 %v3242, %v3238
    %v3887 = vpack.c.b16 %v3243, %v3239
    %v3888 = vpack.c.b16 %v3244, %v3240
    %v3889 = vpack.c.b16 %v3245, %v3241
    %v3890 = vpack.c.b16 %v3250, %v3246
    %v3891 = vpack.c.b16 %v3251, %v3247
    %v3892 = vpack.c.b16 %v3252, %v3248
    %v3893 = vpack.c.b16 %v3253, %v3249
    %v3894 = vpack.c.b16 %v3258, %v3254
    %v3895 = vpack.c.b16 %v3259, %v3255
    %v3896 = vpack.c.b16 %v3260, %v3256
    %v3897 = vpack.c.b16 %v3261, %v3257
    %v3898 = vpack.c.b16 %v3266, %v3262
    %v3899 = vpack.c.b16 %v3267, %v3263
    %v3900 = vpack.c.b16 %v3268, %v3264
    %v3901 = vpack.c.b16 %v3269, %v3265
    %v3902 = vpack.c.b16 %v3274, %v3270
    %v3903 = vpack.c.b16 %v3275, %v3271
    %v3904 = vpack.c.b16 %v3276, %v3272
    %v3905 = vpack.c.b16 %v3277, %v3273
    %v3906 = vpack.c.b16 %v3282, %v3278
    %v3907 = vpack.c.b16 %v3283, %v3279
    %v3908 = vpack.c.b16 %v3284, %v3280
    %v3909 = vpack.c.b16 %v3285, %v3281
    %v3910 = vpack.c.b16 %v3290, %v3286
    %v3911 = vpack.c.b16 %v3291, %v3287
    %v3912 = vpack.c.b16 %v3292, %v3288
    %v3913 = vpack.c.b16 %v3293, %v3289
    %v3914 = vpack.c.b16 %v3298, %v3294
    %v3915 = vpack.c.b16 %v3299, %v3295
    %v3916 = vpack.c.b16 %v3300, %v3296
    %v3917 = vpack.c.b16 %v3301, %v3297
    %v3918 = vpack.c.b16 %v3306, %v3302
    %v3919 = vpack.c.b16 %v3307, %v3303
    %v3920 = vpack.c.b16 %v3308, %v3304
    %v3921 = vpack.c.b16 %v3309, %v3305
    %v3922 = vpack.c.b16 %v3314, %v3310
    %v3923 = vpack.c.b16 %v3315, %v3311
    %v3924 = vpack.c.b16 %v3316, %v3312
    %v3925 = vpack.c.b16 %v3317, %v3313
    %v3926 = vpack.c.b16 %v3322, %v3318
    %v3927 = vpack.c.b16 %v3323, %v3319
    %v3928 = vpack.c.b16 %v3324, %v3320
    %v3929 = vpack.c.b16 %v3325, %v3321
    %v3930 = vpack.c.b16 %v3330, %v3326
    %v3931 = vpack.c.b16 %v3331, %v3327
    %v3932 = vpack.c.b16 %v3332, %v3328
    %v3933 = vpack.c.b16 %v3333, %v3329
    %v3934 = vpack.c.b16 %v3338, %v3334
    %v3935 = vpack.c.b16 %v3339, %v3335
    %v3936 = vpack.c.b16 %v3340, %v3336
    %v3937 = vpack.c.b16 %v3341, %v3337
    %v3938 = vpack.c.b16 %v3346, %v3342
    %v3939 = vpack.c.b16 %v3347, %v3343
    %v3940 = vpack.c.b16 %v3348, %v3344
    %v3941 = vpack.c.b16 %v3349, %v3345
    %v3942 = vpack.c.b16 %v3354, %v3350
    %v3943 = vpack.c.b16 %v3355, %v3351
    %v3944 = vpack.c.b16 %v3356, %v3352
    %v3945 = vpack.c.b16 %v3357, %v3353
    %v3946 = vpack.c.b16 %v3362, %v3358
    %v3947 = vpack.c.b16 %v3363, %v3359
    %v3948 = vpack.c.b16 %v3364, %v3360
    %v3949 = vpack.c.b16 %v3365, %v3361
    %v3950 = vpack.c.b16 %v3370, %v3366
    %v3951 = vpack.c.b16 %v3371, %v3367
    %v3952 = vpack.c.b16 %v3372, %v3368
    %v3953 = vpack.c.b16 %v3373, %v3369
    %v3954 = vpack.c.b16 %v3378, %v3374
    %v3955 = vpack.c.b16 %v3379, %v3375
    %v3956 = vpack.c.b16 %v3380, %v3376
    %v3957 = vpack.c.b16 %v3381, %v3377
    %v3958 = vpack.c.b16 %v3386, %v3382
    %v3959 = vpack.c.b16 %v3387, %v3383
    %v3960 = vpack.c.b16 %v3388, %v3384
    %v3961 = vpack.c.b16 %v3389, %v3385
    %v3962 = vpack.c.b16 %v3394, %v3390
    %v3963 = vpack.c.b16 %v3395, %v3391
    %v3964 = vpack.c.b16 %v3396, %v3392
    %v3965 = vpack.c.b16 %v3397, %v3393
    %v3966 = vpack.c.b16 %v3402, %v3398
    %v3967 = vpack.c.b16 %v3403, %v3399
    %v3968 = vpack.c.b16 %v3404, %v3400
    %v3969 = vpack.c.b16 %v3405, %v3401
    %v3970 = vpack.c.b16 %v3410, %v3406
    %v3971 = vpack.c.b16 %v3411, %v3407
    %v3972 = vpack.c.b16 %v3412, %v3408
    %v3973 = vpack.c.b16 %v3413, %v3409
    %v3974 = vpack.c.b16 %v3418, %v3414
    %v3975 = vpack.c.b16 %v3419, %v3415
    %v3976 = vpack.c.b16 %v3420, %v3416
    %v3977 = vpack.c.b16 %v3421, %v3417
    %v3978 = vpack.c.b16 %v3426, %v3422
    %v3979 = vpack.c.b16 %v3427, %v3423
    %v3980 = vpack.c.b16 %v3428, %v3424
    %v3981 = vpack.c.b16 %v3429, %v3425
    %v3982 = vpack.c.b16 %v3434, %v3430
    %v3983 = vpack.c.b16 %v3435, %v3431
    %v3984 = vpack.c.b16 %v3436, %v3432
    %v3985 = vpack.c.b16 %v3437, %v3433
    %v3986 = vpack.c.b16 %v3442, %v3438
    %v3987 = vpack.c.b16 %v3443, %v3439
    %v3988 = vpack.c.b16 %v3444, %v3440
    %v3989 = vpack.c.b16 %v3445, %v3441
    %v3990 = vpack.c.b16 %v3450, %v3446
    %v3991 = vpack.c.b16 %v3451, %v3447
    %v3992 = vpack.c.b16 %v3452, %v3448
    %v3993 = vpack.c.b16 %v3453, %v3449
    %v3994 = vpack.c.b16 %v3458, %v3454
    %v3995 = vpack.c.b16 %v3459, %v3455
    %v3996 = vpack.c.b16 %v3460, %v3456
    %v3997 = vpack.c.b16 %v3461, %v3457
    %v3998 = vpack.c.b16 %v3466, %v3462
    %v3999 = vpack.c.b16 %v3467, %v3463
    %v4000 = vpack.c.b16 %v3468, %v3464
    %v4001 = vpack.c.b16 %v3469, %v3465
    %v4002 = vpack.c.b16 %v3474, %v3470
    %v4003 = vpack.c.b16 %v3475, %v3471
    %v4004 = vpack.c.b16 %v3476, %v3472
    %v4005 = vpack.c.b16 %v3477, %v3473
    %v4006 = vpack.c.b16 %v3482, %v3478
    %v4007 = vpack.c.b16 %v3483, %v3479
    %v4008 = vpack.c.b16 %v3484, %v3480
    %v4009 = vpack.c.b16 %v3485, %v3481
    %v4010 = vpack.c.b16 %v3490, %v3486
    %v4011 = vpack.c.b16 %v3491, %v3487
    %v4012 = vpack.c.b16 %v3492, %v3488
    %v4013 = vpack.c.b16 %v3493, %v3489
    %v4014 = vpack.c.b16 %v3498, %v3494
    %v4015 = vpack.c.b16 %v3499, %v3495
    %v4016 = vpack.c.b16 %v3500, %v3496
    %v4017 = vpack.c.b16 %v3501, %v3497
    %v4018 = vpack.c.b16 %v3506, %v3502
    %v4019 = vpack.c.b16 %v3507, %v3503
    %v4020 = vpack.c.b16 %v3508, %v3504
    %v4021 = vpack.c.b16 %v3509, %v3505
    %v4022 = vpack.c.b16 %v3514, %v3510
    %v4023 = vpack.c.b16 %v3515, %v3511
    %v4024 = vpack.c.b16 %v3516, %v3512
    %v4025 = vpack.c.b16 %v3517, %v3513
    %v4026 = vpack.c.b16 %v3522, %v3518
    %v4027 = vpack.c.b16 %v3523, %v3519
    %v4028 = vpack.c.b16 %v3524, %v3520
    %v4029 = vpack.c.b16 %v3525, %v3521
    %v4030 = vpack.c.b16 %v3530, %v3526
    %v4031 = vpack.c.b16 %v3531, %v3527
    %v4032 = vpack.c.b16 %v3532, %v3528
    %v4033 = vpack.c.b16 %v3533, %v3529
    %v4034 = vpack.c.b16 %v3538, %v3534
    %v4035 = vpack.c.b16 %v3539, %v3535
    %v4036 = vpack.c.b16 %v3540, %v3536
    %v4037 = vpack.c.b16 %v3541, %v3537
    %v4038 = vpack.c.b16 %v3546, %v3542
    %v4039 = vpack.c.b16 %v3547, %v3543
    %v4040 = vpack.c.b16 %v3548, %v3544
    %v4041 = vpack.c.b16 %v3549, %v3545
    %v4042 = vpack.c.b16 %v3554, %v3550
    %v4043 = vpack.c.b16 %v3555, %v3551
    %v4044 = vpack.c.b16 %v3556, %v3552
    %v4045 = vpack.c.b16 %v3557, %v3553
    %v4046 = vpack.c.b16 %v3562, %v3558
    %v4047 = vpack.c.b16 %v3563, %v3559
    %v4048 = vpack.c.b16 %v3564, %v3560
    %v4049 = vpack.c.b16 %v3565, %v3561
    %v4050 = vpack.c.b16 %v3570, %v3566
    %v4051 = vpack.c.b16 %v3571, %v3567
    %v4052 = vpack.c.b16 %v3572, %v3568
    %v4053 = vpack.c.b16 %v3573, %v3569
    %v4054 = vpack.c.b16 %v3578, %v3574
    %v4055 = vpack.c.b16 %v3579, %v3575
    %v4056 = vpack.c.b16 %v3580, %v3576
    %v4057 = vpack.c.b16 %v3581, %v3577
    %v4058 = vpack.c.b16 %v3586, %v3582
    %v4059 = vpack.c.b16 %v3587, %v3583
    %v4060 = vpack.c.b16 %v3588, %v3584
    %v4061 = vpack.c.b16 %v3589, %v3585
    %v4062 = vpack.c.b16 %v3594, %v3590
    %v4063 = vpack.c.b16 %v3595, %v3591
    %v4064 = vpack.c.b16 %v3596, %v3592
    %v4065 = vpack.c.b16 %v3597, %v3593
    %v4066 = vpack.c.b16 %v3602, %v3598
    %v4067 = vpack.c.b16 %v3603, %v3599
    %v4068 = vpack.c.b16 %v3604, %v3600
    %v4069 = vpack.c.b16 %v3605, %v3601
    %v4070 = vpack.c.b16 %v3610, %v3606
    %v4071 = vpack.c.b16 %v3611, %v3607
    %v4072 = vpack.c.b16 %v3612, %v3608
    %v4073 = vpack.c.b16 %v3613, %v3609
    %v4074 = vpack.c.b16 %v3618, %v3614
    %v4075 = vpack.c.b16 %v3619, %v3615
    %v4076 = vpack.c.b16 %v3620, %v3616
    %v4077 = vpack.c.b16 %v3621, %v3617
    %v4078 = vpack.c.b16 %v3626, %v3622
    %v4079 = vpack.c.b16 %v3627, %v3623
    %v4080 = vpack.c.b16 %v3628, %v3624
    %v4081 = vpack.c.b16 %v3629, %v3625
    %v4082 = vpack.c.b16 %v3634, %v3630
    %v4083 = vpack.c.b16 %v3635, %v3631
    %v4084 = vpack.c.b16 %v3636, %v3632
    %v4085 = vpack.c.b16 %v3637, %v3633
    %v4086 = vpack.c.b16 %v3642, %v3638
    %v4087 = vpack.c.b16 %v3643, %v3639
    %v4088 = vpack.c.b16 %v3644, %v3640
    %v4089 = vpack.c.b16 %v3645, %v3641
    %v4090 = vpack.c.b16 %v3650, %v3646
    %v4091 = vpack.c.b16 %v3651, %v3647
    %v4092 = vpack.c.b16 %v3652, %v3648
    %v4093 = vpack.c.b16 %v3653, %v3649
    %v4094 = vpack.c.b16 %v3658, %v3654
    %v4095 = vpack.c.b16 %v3659, %v3655
    %v4096 = vpack.c.b16 %v3660, %v3656
    %v4097 = vpack.c.b16 %v3661, %v3657
    %v4098 = vpack.c.b16 %v3666, %v3662
    %v4099 = vpack.c.b16 %v3667, %v3663
    %v4100 = vpack.c.b16 %v3668, %v3664
    %v4101 = vpack.c.b16 %v3669, %v3665
    %v4102 = vpack.c.b16 %v3674, %v3670
    %v4103 = vpack.c.b16 %v3675, %v3671
    %v4104 = vpack.c.b16 %v3676, %v3672
    %v4105 = vpack.c.b16 %v3677, %v3673
    %v4106 = vpack.c.b16 %v3682, %v3678
    %v4107 = vpack.c.b16 %v3683, %v3679
    %v4108 = vpack.c.b16 %v3684, %v3680
    %v4109 = vpack.c.b16 %v3685, %v3681
    %v4110 = vpack.c.b16 %v3690, %v3686
    %v4111 = vpack.c.b16 %v3691, %v3687
    %v4112 = vpack.c.b16 %v3692, %v3688
    %v4113 = vpack.c.b16 %v3693, %v3689
    %v4114 = vpack.c.b16 %v3698, %v3694
    %v4115 = vpack.c.b16 %v3699, %v3695
    %v4116 = vpack.c.b16 %v3700, %v3696
    %v4117 = vpack.c.b16 %v3701, %v3697
    %v4118 = vpack.c.b16 %v3706, %v3702
    %v4119 = vpack.c.b16 %v3707, %v3703
    %v4120 = vpack.c.b16 %v3708, %v3704
    %v4121 = vpack.c.b16 %v3709, %v3705
    %v4122 = vpack.c.b16 %v3714, %v3710
    %v4123 = vpack.c.b16 %v3715, %v3711
    %v4124 = vpack.c.b16 %v3716, %v3712
    %v4125 = vpack.c.b16 %v3717, %v3713
    %v4126 = vpack.c.b16 %v3722, %v3718
    %v4127 = vpack.c.b16 %v3723, %v3719
    %v4128 = vpack.c.b16 %v3724, %v3720
    %v4129 = vpack.c.b16 %v3725, %v3721
    %v4130 = vpack.c.b16 %v3730, %v3726
    %v4131 = vpack.c.b16 %v3731, %v3727
    %v4132 = vpack.c.b16 %v3732, %v3728
    %v4133 = vpack.c.b16 %v3733, %v3729
    %v4535 = vsel %vm326, %v2123, 0
    %4537 = vmatpush.bf16.msra.mxu0 %v3762
    %4538 = vmatpush.bf16.msra.mxu0 %v3758
    %4539 = vmatpush.bf16.msra.mxu0 %v3754
    %4540 = vmatpush.bf16.msra.mxu0 %v3750
    %4541 = vmatpush.bf16.msra.mxu0 %v3746
    %4542 = vmatpush.bf16.msra.mxu0 %v3742
    %4543 = vmatpush.bf16.msra.mxu0 %v3738
    %4544 = vmatpush.bf16.msra.mxu0 %v3734
    %4545 = vmatmul.bf16.gmra.mxu0 %v2111
    %v4546 = vpop.f32.mrf.mxu0
    %v4547 = vadd.f32 %v2526, %v4546
    %v4548 = vpop.f32.mrf.mxu0
    %4549 = vdwg.mxu0
    %4550 = vmatpush.bf16.msra.mxu0 %v3794
    %4551 = vmatpush.bf16.msra.mxu0 %v3790
    %4552 = vmatpush.bf16.msra.mxu0 %v3786
    %4553 = vmatpush.bf16.msra.mxu0 %v3782
    %4554 = vmatpush.bf16.msra.mxu0 %v3778
    %4555 = vmatpush.bf16.msra.mxu0 %v3774
    %4556 = vmatpush.bf16.msra.mxu0 %v3770
    %4557 = vmatpush.bf16.msra.mxu0 %v3766
    %4558 = vmatmul.bf16.gmra.mxu0 %v2112
    %v4559 = vpop.f32.mrf.mxu0
    %v4560 = vadd.f32 %v4547, %v4559
    %v4561 = vpop.f32.mrf.mxu0
    %4562 = vdwg.mxu0
    %4563 = vmatpush.bf16.msra.mxu0 %v3826
    %4564 = vmatpush.bf16.msra.mxu0 %v3822
    %4565 = vmatpush.bf16.msra.mxu0 %v3818
    %4566 = vmatpush.bf16.msra.mxu0 %v3814
    %4567 = vmatpush.bf16.msra.mxu0 %v3810
    %4568 = vmatpush.bf16.msra.mxu0 %v3806
    %4569 = vmatpush.bf16.msra.mxu0 %v3802
    %4570 = vmatpush.bf16.msra.mxu0 %v3798
    %4571 = vmatmul.bf16.gmra.mxu0 %v2113
    %v4572 = vpop.f32.mrf.mxu0
    %v4573 = vadd.f32 %v4560, %v4572
    %v4574 = vpop.f32.mrf.mxu0
    %4575 = vdwg.mxu0
    %4576 = vmatpush.bf16.msra.mxu0 %v3858
    %4577 = vmatpush.bf16.msra.mxu0 %v3854
    %4578 = vmatpush.bf16.msra.mxu0 %v3850
    %4579 = vmatpush.bf16.msra.mxu0 %v3846
    %4580 = vmatpush.bf16.msra.mxu0 %v3842
    %4581 = vmatpush.bf16.msra.mxu0 %v3838
    %4582 = vmatpush.bf16.msra.mxu0 %v3834
    %4583 = vmatpush.bf16.msra.mxu0 %v3830
    %4584 = vmatmul.bf16.gmra.mxu0 %v2114
    %v4585 = vpop.f32.mrf.mxu0
    %v4586 = vadd.f32 %v4573, %v4585
    %v4587 = vpop.f32.mrf.mxu0
    %4588 = vdwg.mxu0
    %4589 = vmatpush.bf16.msra.mxu0 %v3890
    %4590 = vmatpush.bf16.msra.mxu0 %v3886
    %4591 = vmatpush.bf16.msra.mxu0 %v3882
    %4592 = vmatpush.bf16.msra.mxu0 %v3878
    %4593 = vmatpush.bf16.msra.mxu0 %v3874
    %4594 = vmatpush.bf16.msra.mxu0 %v3870
    %4595 = vmatpush.bf16.msra.mxu0 %v3866
    %4596 = vmatpush.bf16.msra.mxu0 %v3862
    %4597 = vmatmul.bf16.gmra.mxu0 %v2115
    %v4598 = vpop.f32.mrf.mxu0
    %v4599 = vadd.f32 %v4586, %v4598
    %v4600 = vpop.f32.mrf.mxu0
    %4601 = vdwg.mxu0
    %4602 = vmatpush.bf16.msra.mxu0 %v3922
    %4603 = vmatpush.bf16.msra.mxu0 %v3918
    %4604 = vmatpush.bf16.msra.mxu0 %v3914
    %4605 = vmatpush.bf16.msra.mxu0 %v3910
    %4606 = vmatpush.bf16.msra.mxu0 %v3906
    %4607 = vmatpush.bf16.msra.mxu0 %v3902
    %4608 = vmatpush.bf16.msra.mxu0 %v3898
    %4609 = vmatpush.bf16.msra.mxu0 %v3894
    %4610 = vmatmul.bf16.gmra.mxu0 %v2116
    %v4611 = vpop.f32.mrf.mxu0
    %v4612 = vadd.f32 %v4599, %v4611
    %v4613 = vpop.f32.mrf.mxu0
    %4614 = vdwg.mxu0
    %4615 = vmatpush.bf16.msra.mxu0 %v3954
    %4616 = vmatpush.bf16.msra.mxu0 %v3950
    %4617 = vmatpush.bf16.msra.mxu0 %v3946
    %4618 = vmatpush.bf16.msra.mxu0 %v3942
    %4619 = vmatpush.bf16.msra.mxu0 %v3938
    %4620 = vmatpush.bf16.msra.mxu0 %v3934
    %4621 = vmatpush.bf16.msra.mxu0 %v3930
    %4622 = vmatpush.bf16.msra.mxu0 %v3926
    %4623 = vmatmul.bf16.gmra.mxu0 %v2117
    %v4624 = vpop.f32.mrf.mxu0
    %v4625 = vadd.f32 %v4612, %v4624
    %v4626 = vpop.f32.mrf.mxu0
    %4627 = vdwg.mxu0
    %4628 = vmatpush.bf16.msra.mxu0 %v3986
    %4629 = vmatpush.bf16.msra.mxu0 %v3982
    %4630 = vmatpush.bf16.msra.mxu0 %v3978
    %4631 = vmatpush.bf16.msra.mxu0 %v3974
    %4632 = vmatpush.bf16.msra.mxu0 %v3970
    %4633 = vmatpush.bf16.msra.mxu0 %v3966
    %4634 = vmatpush.bf16.msra.mxu0 %v3962
    %4635 = vmatpush.bf16.msra.mxu0 %v3958
    %4636 = vmatmul.bf16.gmra.mxu0 %v2118
    %v4637 = vpop.f32.mrf.mxu0
    %v4638 = vadd.f32 %v4625, %v4637
    %v4639 = vpop.f32.mrf.mxu0
    %4640 = vdwg.mxu0
    %4641 = vmatpush.bf16.msra.mxu0 %v4018
    %4642 = vmatpush.bf16.msra.mxu0 %v4014
    %4643 = vmatpush.bf16.msra.mxu0 %v4010
    %4644 = vmatpush.bf16.msra.mxu0 %v4006
    %4645 = vmatpush.bf16.msra.mxu0 %v4002
    %4646 = vmatpush.bf16.msra.mxu0 %v3998
    %4647 = vmatpush.bf16.msra.mxu0 %v3994
    %4648 = vmatpush.bf16.msra.mxu0 %v3990
    %4649 = vmatmul.bf16.gmra.mxu0 %v2119
    %v4650 = vpop.f32.mrf.mxu0
    %v4651 = vadd.f32 %v4638, %v4650
    %v4652 = vpop.f32.mrf.mxu0
    %4653 = vdwg.mxu0
    %4654 = vmatpush.bf16.msra.mxu0 %v4050
    %4655 = vmatpush.bf16.msra.mxu0 %v4046
    %4656 = vmatpush.bf16.msra.mxu0 %v4042
    %4657 = vmatpush.bf16.msra.mxu0 %v4038
    %4658 = vmatpush.bf16.msra.mxu0 %v4034
    %4659 = vmatpush.bf16.msra.mxu0 %v4030
    %4660 = vmatpush.bf16.msra.mxu0 %v4026
    %4661 = vmatpush.bf16.msra.mxu0 %v4022
    %4662 = vmatmul.bf16.gmra.mxu0 %v2120
    %v4663 = vpop.f32.mrf.mxu0
    %v4664 = vadd.f32 %v4651, %v4663
    %v4665 = vpop.f32.mrf.mxu0
    %4666 = vdwg.mxu0
    %4667 = vmatpush.bf16.msra.mxu0 %v4082
    %4668 = vmatpush.bf16.msra.mxu0 %v4078
    %4669 = vmatpush.bf16.msra.mxu0 %v4074
    %4670 = vmatpush.bf16.msra.mxu0 %v4070
    %4671 = vmatpush.bf16.msra.mxu0 %v4066
    %4672 = vmatpush.bf16.msra.mxu0 %v4062
    %4673 = vmatpush.bf16.msra.mxu0 %v4058
    %4674 = vmatpush.bf16.msra.mxu0 %v4054
    %4675 = vmatmul.bf16.gmra.mxu0 %v2121
    %v4676 = vpop.f32.mrf.mxu0
    %v4677 = vadd.f32 %v4664, %v4676
    %v4678 = vpop.f32.mrf.mxu0
    %4679 = vdwg.mxu0
    %4680 = vmatpush.bf16.msra.mxu0 %v4114
    %4681 = vmatpush.bf16.msra.mxu0 %v4110
    %4682 = vmatpush.bf16.msra.mxu0 %v4106
    %4683 = vmatpush.bf16.msra.mxu0 %v4102
    %4684 = vmatpush.bf16.msra.mxu0 %v4098
    %4685 = vmatpush.bf16.msra.mxu0 %v4094
    %4686 = vmatpush.bf16.msra.mxu0 %v4090
    %4687 = vmatpush.bf16.msra.mxu0 %v4086
    %4688 = vmatmul.bf16.gmra.mxu0 %v2122
    %v4689 = vpop.f32.mrf.mxu0
    %v4690 = vadd.f32 %v4677, %v4689
    %v4691 = vpop.f32.mrf.mxu0
    %4692 = vdwg.mxu0
    %4693 = vmatpush.bf16.msra.mxu0 0
    %4694 = vmatpush.bf16.msra.mxu0 0
    %4695 = vmatpush.bf16.msra.mxu0 0
    %4696 = vmatpush.bf16.msra.mxu0 0
    %4697 = vmatpush.bf16.msra.mxu0 %v4130
    %4698 = vmatpush.bf16.msra.mxu0 %v4126
    %4699 = vmatpush.bf16.msra.mxu0 %v4122
    %4700 = vmatpush.bf16.msra.mxu0 %v4118
    %4701 = vmatmul.bf16.gmra.mxu0 %v4535
    %v4702 = vpop.f32.mrf.mxu0
    %v4703 = vadd.f32 %v4690, %v4702
    %v4704 = vpop.f32.mrf.mxu0
    %4705 = vdwg.mxu0
    %4706 = vmatpush.bf16.msra.mxu0 %v3763
    %4707 = vmatpush.bf16.msra.mxu0 %v3759
    %4708 = vmatpush.bf16.msra.mxu0 %v3755
    %4709 = vmatpush.bf16.msra.mxu0 %v3751
    %4710 = vmatpush.bf16.msra.mxu0 %v3747
    %4711 = vmatpush.bf16.msra.mxu0 %v3743
    %4712 = vmatpush.bf16.msra.mxu0 %v3739
    %4713 = vmatpush.bf16.msra.mxu0 %v3735
    %4714 = vmatmul.bf16.gmra.mxu0 %v2111
    %v4715 = vpop.f32.mrf.mxu0
    %v4716 = vadd.f32 %v2527, %v4715
    %v4717 = vpop.f32.mrf.mxu0
    %4718 = vdwg.mxu0
    %4719 = vmatpush.bf16.msra.mxu0 %v3795
    %4720 = vmatpush.bf16.msra.mxu0 %v3791
    %4721 = vmatpush.bf16.msra.mxu0 %v3787
    %4722 = vmatpush.bf16.msra.mxu0 %v3783
    %4723 = vmatpush.bf16.msra.mxu0 %v3779
    %4724 = vmatpush.bf16.msra.mxu0 %v3775
    %4725 = vmatpush.bf16.msra.mxu0 %v3771
    %4726 = vmatpush.bf16.msra.mxu0 %v3767
    %4727 = vmatmul.bf16.gmra.mxu0 %v2112
    %v4728 = vpop.f32.mrf.mxu0
    %v4729 = vadd.f32 %v4716, %v4728
    %v4730 = vpop.f32.mrf.mxu0
    %4731 = vdwg.mxu0
    %4732 = vmatpush.bf16.msra.mxu0 %v3827
    %4733 = vmatpush.bf16.msra.mxu0 %v3823
    %4734 = vmatpush.bf16.msra.mxu0 %v3819
    %4735 = vmatpush.bf16.msra.mxu0 %v3815
    %4736 = vmatpush.bf16.msra.mxu0 %v3811
    %4737 = vmatpush.bf16.msra.mxu0 %v3807
    %4738 = vmatpush.bf16.msra.mxu0 %v3803
    %4739 = vmatpush.bf16.msra.mxu0 %v3799
    %4740 = vmatmul.bf16.gmra.mxu0 %v2113
    %v4741 = vpop.f32.mrf.mxu0
    %v4742 = vadd.f32 %v4729, %v4741
    %v4743 = vpop.f32.mrf.mxu0
    %4744 = vdwg.mxu0
    %4745 = vmatpush.bf16.msra.mxu0 %v3859
    %4746 = vmatpush.bf16.msra.mxu0 %v3855
    %4747 = vmatpush.bf16.msra.mxu0 %v3851
    %4748 = vmatpush.bf16.msra.mxu0 %v3847
    %4749 = vmatpush.bf16.msra.mxu0 %v3843
    %4750 = vmatpush.bf16.msra.mxu0 %v3839
    %4751 = vmatpush.bf16.msra.mxu0 %v3835
    %4752 = vmatpush.bf16.msra.mxu0 %v3831
    %4753 = vmatmul.bf16.gmra.mxu0 %v2114
    %v4754 = vpop.f32.mrf.mxu0
    %v4755 = vadd.f32 %v4742, %v4754
    %v4756 = vpop.f32.mrf.mxu0
    %4757 = vdwg.mxu0
    %4758 = vmatpush.bf16.msra.mxu0 %v3891
    %4759 = vmatpush.bf16.msra.mxu0 %v3887
    %4760 = vmatpush.bf16.msra.mxu0 %v3883
    %4761 = vmatpush.bf16.msra.mxu0 %v3879
    %4762 = vmatpush.bf16.msra.mxu0 %v3875
    %4763 = vmatpush.bf16.msra.mxu0 %v3871
    %4764 = vmatpush.bf16.msra.mxu0 %v3867
    %4765 = vmatpush.bf16.msra.mxu0 %v3863
    %4766 = vmatmul.bf16.gmra.mxu0 %v2115
    %v4767 = vpop.f32.mrf.mxu0
    %v4768 = vadd.f32 %v4755, %v4767
    %v4769 = vpop.f32.mrf.mxu0
    %4770 = vdwg.mxu0
    %4771 = vmatpush.bf16.msra.mxu0 %v3923
    %4772 = vmatpush.bf16.msra.mxu0 %v3919
    %4773 = vmatpush.bf16.msra.mxu0 %v3915
    %4774 = vmatpush.bf16.msra.mxu0 %v3911
    %4775 = vmatpush.bf16.msra.mxu0 %v3907
    %4776 = vmatpush.bf16.msra.mxu0 %v3903
    %4777 = vmatpush.bf16.msra.mxu0 %v3899
    %4778 = vmatpush.bf16.msra.mxu0 %v3895
    %4779 = vmatmul.bf16.gmra.mxu0 %v2116
    %v4780 = vpop.f32.mrf.mxu0
    %v4781 = vadd.f32 %v4768, %v4780
    %v4782 = vpop.f32.mrf.mxu0
    %4783 = vdwg.mxu0
    %4784 = vmatpush.bf16.msra.mxu0 %v3955
    %4785 = vmatpush.bf16.msra.mxu0 %v3951
    %4786 = vmatpush.bf16.msra.mxu0 %v3947
    %4787 = vmatpush.bf16.msra.mxu0 %v3943
    %4788 = vmatpush.bf16.msra.mxu0 %v3939
    %4789 = vmatpush.bf16.msra.mxu0 %v3935
    %4790 = vmatpush.bf16.msra.mxu0 %v3931
    %4791 = vmatpush.bf16.msra.mxu0 %v3927
    %4792 = vmatmul.bf16.gmra.mxu0 %v2117
    %v4793 = vpop.f32.mrf.mxu0
    %v4794 = vadd.f32 %v4781, %v4793
    %v4795 = vpop.f32.mrf.mxu0
    %4796 = vdwg.mxu0
    %4797 = vmatpush.bf16.msra.mxu0 %v3987
    %4798 = vmatpush.bf16.msra.mxu0 %v3983
    %4799 = vmatpush.bf16.msra.mxu0 %v3979
    %4800 = vmatpush.bf16.msra.mxu0 %v3975
    %4801 = vmatpush.bf16.msra.mxu0 %v3971
    %4802 = vmatpush.bf16.msra.mxu0 %v3967
    %4803 = vmatpush.bf16.msra.mxu0 %v3963
    %4804 = vmatpush.bf16.msra.mxu0 %v3959
    %4805 = vmatmul.bf16.gmra.mxu0 %v2118
    %v4806 = vpop.f32.mrf.mxu0
    %v4807 = vadd.f32 %v4794, %v4806
    %v4808 = vpop.f32.mrf.mxu0
    %4809 = vdwg.mxu0
    %4810 = vmatpush.bf16.msra.mxu0 %v4019
    %4811 = vmatpush.bf16.msra.mxu0 %v4015
    %4812 = vmatpush.bf16.msra.mxu0 %v4011
    %4813 = vmatpush.bf16.msra.mxu0 %v4007
    %4814 = vmatpush.bf16.msra.mxu0 %v4003
    %4815 = vmatpush.bf16.msra.mxu0 %v3999
    %4816 = vmatpush.bf16.msra.mxu0 %v3995
    %4817 = vmatpush.bf16.msra.mxu0 %v3991
    %4818 = vmatmul.bf16.gmra.mxu0 %v2119
    %v4819 = vpop.f32.mrf.mxu0
    %v4820 = vadd.f32 %v4807, %v4819
    %v4821 = vpop.f32.mrf.mxu0
    %4822 = vdwg.mxu0
    %4823 = vmatpush.bf16.msra.mxu0 %v4051
    %4824 = vmatpush.bf16.msra.mxu0 %v4047
    %4825 = vmatpush.bf16.msra.mxu0 %v4043
    %4826 = vmatpush.bf16.msra.mxu0 %v4039
    %4827 = vmatpush.bf16.msra.mxu0 %v4035
    %4828 = vmatpush.bf16.msra.mxu0 %v4031
    %4829 = vmatpush.bf16.msra.mxu0 %v4027
    %4830 = vmatpush.bf16.msra.mxu0 %v4023
    %4831 = vmatmul.bf16.gmra.mxu0 %v2120
    %v4832 = vpop.f32.mrf.mxu0
    %v4833 = vadd.f32 %v4820, %v4832
    %v4834 = vpop.f32.mrf.mxu0
    %4835 = vdwg.mxu0
    %4836 = vmatpush.bf16.msra.mxu0 %v4083
    %4837 = vmatpush.bf16.msra.mxu0 %v4079
    %4838 = vmatpush.bf16.msra.mxu0 %v4075
    %4839 = vmatpush.bf16.msra.mxu0 %v4071
    %4840 = vmatpush.bf16.msra.mxu0 %v4067
    %4841 = vmatpush.bf16.msra.mxu0 %v4063
    %4842 = vmatpush.bf16.msra.mxu0 %v4059
    %4843 = vmatpush.bf16.msra.mxu0 %v4055
    %4844 = vmatmul.bf16.gmra.mxu0 %v2121
    %v4845 = vpop.f32.mrf.mxu0
    %v4846 = vadd.f32 %v4833, %v4845
    %v4847 = vpop.f32.mrf.mxu0
    %4848 = vdwg.mxu0
    %4849 = vmatpush.bf16.msra.mxu0 %v4115
    %4850 = vmatpush.bf16.msra.mxu0 %v4111
    %4851 = vmatpush.bf16.msra.mxu0 %v4107
    %4852 = vmatpush.bf16.msra.mxu0 %v4103
    %4853 = vmatpush.bf16.msra.mxu0 %v4099
    %4854 = vmatpush.bf16.msra.mxu0 %v4095
    %4855 = vmatpush.bf16.msra.mxu0 %v4091
    %4856 = vmatpush.bf16.msra.mxu0 %v4087
    %4857 = vmatmul.bf16.gmra.mxu0 %v2122
    %v4858 = vpop.f32.mrf.mxu0
    %v4859 = vadd.f32 %v4846, %v4858
    %v4860 = vpop.f32.mrf.mxu0
    %4861 = vdwg.mxu0
    %4862 = vmatpush.bf16.msra.mxu0 0
    %4863 = vmatpush.bf16.msra.mxu0 0
    %4864 = vmatpush.bf16.msra.mxu0 0
    %4865 = vmatpush.bf16.msra.mxu0 0
    %4866 = vmatpush.bf16.msra.mxu0 %v4131
    %4867 = vmatpush.bf16.msra.mxu0 %v4127
    %4868 = vmatpush.bf16.msra.mxu0 %v4123
    %4869 = vmatpush.bf16.msra.mxu0 %v4119
    %4870 = vmatmul.bf16.gmra.mxu0 %v4535
    %v4871 = vpop.f32.mrf.mxu0
    %v4872 = vadd.f32 %v4859, %v4871
    %v4873 = vpop.f32.mrf.mxu0
    %4874 = vdwg.mxu0
    %4875 = vmatpush.bf16.msra.mxu0 %v3764
    %4876 = vmatpush.bf16.msra.mxu0 %v3760
    %4877 = vmatpush.bf16.msra.mxu0 %v3756
    %4878 = vmatpush.bf16.msra.mxu0 %v3752
    %4879 = vmatpush.bf16.msra.mxu0 %v3748
    %4880 = vmatpush.bf16.msra.mxu0 %v3744
    %4881 = vmatpush.bf16.msra.mxu0 %v3740
    %4882 = vmatpush.bf16.msra.mxu0 %v3736
    %4883 = vmatmul.bf16.gmra.mxu0 %v2111
    %v4884 = vpop.f32.mrf.mxu0
    %v4885 = vadd.f32 %v2528, %v4884
    %v4886 = vpop.f32.mrf.mxu0
    %4887 = vdwg.mxu0
    %4888 = vmatpush.bf16.msra.mxu0 %v3796
    %4889 = vmatpush.bf16.msra.mxu0 %v3792
    %4890 = vmatpush.bf16.msra.mxu0 %v3788
    %4891 = vmatpush.bf16.msra.mxu0 %v3784
    %4892 = vmatpush.bf16.msra.mxu0 %v3780
    %4893 = vmatpush.bf16.msra.mxu0 %v3776
    %4894 = vmatpush.bf16.msra.mxu0 %v3772
    %4895 = vmatpush.bf16.msra.mxu0 %v3768
    %4896 = vmatmul.bf16.gmra.mxu0 %v2112
    %v4897 = vpop.f32.mrf.mxu0
    %v4898 = vadd.f32 %v4885, %v4897
    %v4899 = vpop.f32.mrf.mxu0
    %4900 = vdwg.mxu0
    %4901 = vmatpush.bf16.msra.mxu0 %v3828
    %4902 = vmatpush.bf16.msra.mxu0 %v3824
    %4903 = vmatpush.bf16.msra.mxu0 %v3820
    %4904 = vmatpush.bf16.msra.mxu0 %v3816
    %4905 = vmatpush.bf16.msra.mxu0 %v3812
    %4906 = vmatpush.bf16.msra.mxu0 %v3808
    %4907 = vmatpush.bf16.msra.mxu0 %v3804
    %4908 = vmatpush.bf16.msra.mxu0 %v3800
    %4909 = vmatmul.bf16.gmra.mxu0 %v2113
    %v4910 = vpop.f32.mrf.mxu0
    %v4911 = vadd.f32 %v4898, %v4910
    %v4912 = vpop.f32.mrf.mxu0
    %4913 = vdwg.mxu0
    %4914 = vmatpush.bf16.msra.mxu0 %v3860
    %4915 = vmatpush.bf16.msra.mxu0 %v3856
    %4916 = vmatpush.bf16.msra.mxu0 %v3852
    %4917 = vmatpush.bf16.msra.mxu0 %v3848
    %4918 = vmatpush.bf16.msra.mxu0 %v3844
    %4919 = vmatpush.bf16.msra.mxu0 %v3840
    %4920 = vmatpush.bf16.msra.mxu0 %v3836
    %4921 = vmatpush.bf16.msra.mxu0 %v3832
    %4922 = vmatmul.bf16.gmra.mxu0 %v2114
    %v4923 = vpop.f32.mrf.mxu0
    %v4924 = vadd.f32 %v4911, %v4923
    %v4925 = vpop.f32.mrf.mxu0
    %4926 = vdwg.mxu0
    %4927 = vmatpush.bf16.msra.mxu0 %v3892
    %4928 = vmatpush.bf16.msra.mxu0 %v3888
    %4929 = vmatpush.bf16.msra.mxu0 %v3884
    %4930 = vmatpush.bf16.msra.mxu0 %v3880
    %4931 = vmatpush.bf16.msra.mxu0 %v3876
    %4932 = vmatpush.bf16.msra.mxu0 %v3872
    %4933 = vmatpush.bf16.msra.mxu0 %v3868
    %4934 = vmatpush.bf16.msra.mxu0 %v3864
    %4935 = vmatmul.bf16.gmra.mxu0 %v2115
    %v4936 = vpop.f32.mrf.mxu0
    %v4937 = vadd.f32 %v4924, %v4936
    %v4938 = vpop.f32.mrf.mxu0
    %4939 = vdwg.mxu0
    %4940 = vmatpush.bf16.msra.mxu0 %v3924
    %4941 = vmatpush.bf16.msra.mxu0 %v3920
    %4942 = vmatpush.bf16.msra.mxu0 %v3916
    %4943 = vmatpush.bf16.msra.mxu0 %v3912
    %4944 = vmatpush.bf16.msra.mxu0 %v3908
    %4945 = vmatpush.bf16.msra.mxu0 %v3904
    %4946 = vmatpush.bf16.msra.mxu0 %v3900
    %4947 = vmatpush.bf16.msra.mxu0 %v3896
    %4948 = vmatmul.bf16.gmra.mxu0 %v2116
    %v4949 = vpop.f32.mrf.mxu0
    %v4950 = vadd.f32 %v4937, %v4949
    %v4951 = vpop.f32.mrf.mxu0
    %4952 = vdwg.mxu0
    %4953 = vmatpush.bf16.msra.mxu0 %v3956
    %4954 = vmatpush.bf16.msra.mxu0 %v3952
    %4955 = vmatpush.bf16.msra.mxu0 %v3948
    %4956 = vmatpush.bf16.msra.mxu0 %v3944
    %4957 = vmatpush.bf16.msra.mxu0 %v3940
    %4958 = vmatpush.bf16.msra.mxu0 %v3936
    %4959 = vmatpush.bf16.msra.mxu0 %v3932
    %4960 = vmatpush.bf16.msra.mxu0 %v3928
    %4961 = vmatmul.bf16.gmra.mxu0 %v2117
    %v4962 = vpop.f32.mrf.mxu0
    %v4963 = vadd.f32 %v4950, %v4962
    %v4964 = vpop.f32.mrf.mxu0
    %4965 = vdwg.mxu0
    %4966 = vmatpush.bf16.msra.mxu0 %v3988
    %4967 = vmatpush.bf16.msra.mxu0 %v3984
    %4968 = vmatpush.bf16.msra.mxu0 %v3980
    %4969 = vmatpush.bf16.msra.mxu0 %v3976
    %4970 = vmatpush.bf16.msra.mxu0 %v3972
    %4971 = vmatpush.bf16.msra.mxu0 %v3968
    %4972 = vmatpush.bf16.msra.mxu0 %v3964
    %4973 = vmatpush.bf16.msra.mxu0 %v3960
    %4974 = vmatmul.bf16.gmra.mxu0 %v2118
    %v4975 = vpop.f32.mrf.mxu0
    %v4976 = vadd.f32 %v4963, %v4975
    %v4977 = vpop.f32.mrf.mxu0
    %4978 = vdwg.mxu0
    %4979 = vmatpush.bf16.msra.mxu0 %v4020
    %4980 = vmatpush.bf16.msra.mxu0 %v4016
    %4981 = vmatpush.bf16.msra.mxu0 %v4012
    %4982 = vmatpush.bf16.msra.mxu0 %v4008
    %4983 = vmatpush.bf16.msra.mxu0 %v4004
    %4984 = vmatpush.bf16.msra.mxu0 %v4000
    %4985 = vmatpush.bf16.msra.mxu0 %v3996
    %4986 = vmatpush.bf16.msra.mxu0 %v3992
    %4987 = vmatmul.bf16.gmra.mxu0 %v2119
    %v4988 = vpop.f32.mrf.mxu0
    %v4989 = vadd.f32 %v4976, %v4988
    %v4990 = vpop.f32.mrf.mxu0
    %4991 = vdwg.mxu0
    %4992 = vmatpush.bf16.msra.mxu0 %v4052
    %4993 = vmatpush.bf16.msra.mxu0 %v4048
    %4994 = vmatpush.bf16.msra.mxu0 %v4044
    %4995 = vmatpush.bf16.msra.mxu0 %v4040
    %4996 = vmatpush.bf16.msra.mxu0 %v4036
    %4997 = vmatpush.bf16.msra.mxu0 %v4032
    %4998 = vmatpush.bf16.msra.mxu0 %v4028
    %4999 = vmatpush.bf16.msra.mxu0 %v4024
    %5000 = vmatmul.bf16.gmra.mxu0 %v2120
    %v5001 = vpop.f32.mrf.mxu0
    %v5002 = vadd.f32 %v4989, %v5001
    %v5003 = vpop.f32.mrf.mxu0
    %5004 = vdwg.mxu0
    %5005 = vmatpush.bf16.msra.mxu0 %v4084
    %5006 = vmatpush.bf16.msra.mxu0 %v4080
    %5007 = vmatpush.bf16.msra.mxu0 %v4076
    %5008 = vmatpush.bf16.msra.mxu0 %v4072
    %5009 = vmatpush.bf16.msra.mxu0 %v4068
    %5010 = vmatpush.bf16.msra.mxu0 %v4064
    %5011 = vmatpush.bf16.msra.mxu0 %v4060
    %5012 = vmatpush.bf16.msra.mxu0 %v4056
    %5013 = vmatmul.bf16.gmra.mxu0 %v2121
    %v5014 = vpop.f32.mrf.mxu0
    %v5015 = vadd.f32 %v5002, %v5014
    %v5016 = vpop.f32.mrf.mxu0
    %5017 = vdwg.mxu0
    %5018 = vmatpush.bf16.msra.mxu0 %v4116
    %5019 = vmatpush.bf16.msra.mxu0 %v4112
    %5020 = vmatpush.bf16.msra.mxu0 %v4108
    %5021 = vmatpush.bf16.msra.mxu0 %v4104
    %5022 = vmatpush.bf16.msra.mxu0 %v4100
    %5023 = vmatpush.bf16.msra.mxu0 %v4096
    %5024 = vmatpush.bf16.msra.mxu0 %v4092
    %5025 = vmatpush.bf16.msra.mxu0 %v4088
    %5026 = vmatmul.bf16.gmra.mxu0 %v2122
    %v5027 = vpop.f32.mrf.mxu0
    %v5028 = vadd.f32 %v5015, %v5027
    %v5029 = vpop.f32.mrf.mxu0
    %5030 = vdwg.mxu0
    %5031 = vmatpush.bf16.msra.mxu0 0
    %5032 = vmatpush.bf16.msra.mxu0 0
    %5033 = vmatpush.bf16.msra.mxu0 0
    %5034 = vmatpush.bf16.msra.mxu0 0
    %5035 = vmatpush.bf16.msra.mxu0 %v4132
    %5036 = vmatpush.bf16.msra.mxu0 %v4128
    %5037 = vmatpush.bf16.msra.mxu0 %v4124
    %5038 = vmatpush.bf16.msra.mxu0 %v4120
    %5039 = vmatmul.bf16.gmra.mxu0 %v4535
    %v5040 = vpop.f32.mrf.mxu0
    %v5041 = vadd.f32 %v5028, %v5040
    %v5042 = vpop.f32.mrf.mxu0
    %5043 = vdwg.mxu0
    %5044 = vmatpush.bf16.msra.mxu0 %v3765
    %5045 = vmatpush.bf16.msra.mxu0 %v3761
    %5046 = vmatpush.bf16.msra.mxu0 %v3757
    %5047 = vmatpush.bf16.msra.mxu0 %v3753
    %5048 = vmatpush.bf16.msra.mxu0 %v3749
    %5049 = vmatpush.bf16.msra.mxu0 %v3745
    %5050 = vmatpush.bf16.msra.mxu0 %v3741
    %5051 = vmatpush.bf16.msra.mxu0 %v3737
    %5052 = vmatmul.bf16.gmra.mxu0 %v2111
    %v5053 = vpop.f32.mrf.mxu0
    %v5054 = vadd.f32 %v2529, %v5053
    %v5055 = vpop.f32.mrf.mxu0
    %5056 = vdwg.mxu0
    %5057 = vmatpush.bf16.msra.mxu0 %v3797
    %5058 = vmatpush.bf16.msra.mxu0 %v3793
    %5059 = vmatpush.bf16.msra.mxu0 %v3789
    %5060 = vmatpush.bf16.msra.mxu0 %v3785
    %5061 = vmatpush.bf16.msra.mxu0 %v3781
    %5062 = vmatpush.bf16.msra.mxu0 %v3777
    %5063 = vmatpush.bf16.msra.mxu0 %v3773
    %5064 = vmatpush.bf16.msra.mxu0 %v3769
    %5065 = vmatmul.bf16.gmra.mxu0 %v2112
    %v5066 = vpop.f32.mrf.mxu0
    %v5067 = vadd.f32 %v5054, %v5066
    %v5068 = vpop.f32.mrf.mxu0
    %5069 = vdwg.mxu0
    %5070 = vmatpush.bf16.msra.mxu0 %v3829
    %5071 = vmatpush.bf16.msra.mxu0 %v3825
    %5072 = vmatpush.bf16.msra.mxu0 %v3821
    %5073 = vmatpush.bf16.msra.mxu0 %v3817
    %5074 = vmatpush.bf16.msra.mxu0 %v3813
    %5075 = vmatpush.bf16.msra.mxu0 %v3809
    %5076 = vmatpush.bf16.msra.mxu0 %v3805
    %5077 = vmatpush.bf16.msra.mxu0 %v3801
    %5078 = vmatmul.bf16.gmra.mxu0 %v2113
    %v5079 = vpop.f32.mrf.mxu0
    %v5080 = vadd.f32 %v5067, %v5079
    %v5081 = vpop.f32.mrf.mxu0
    %5082 = vdwg.mxu0
    %5083 = vmatpush.bf16.msra.mxu0 %v3861
    %5084 = vmatpush.bf16.msra.mxu0 %v3857
    %5085 = vmatpush.bf16.msra.mxu0 %v3853
    %5086 = vmatpush.bf16.msra.mxu0 %v3849
    %5087 = vmatpush.bf16.msra.mxu0 %v3845
    %5088 = vmatpush.bf16.msra.mxu0 %v3841
    %5089 = vmatpush.bf16.msra.mxu0 %v3837
    %5090 = vmatpush.bf16.msra.mxu0 %v3833
    %5091 = vmatmul.bf16.gmra.mxu0 %v2114
    %v5092 = vpop.f32.mrf.mxu0
    %v5093 = vadd.f32 %v5080, %v5092
    %v5094 = vpop.f32.mrf.mxu0
    %5095 = vdwg.mxu0
    %5096 = vmatpush.bf16.msra.mxu0 %v3893
    %5097 = vmatpush.bf16.msra.mxu0 %v3889
    %5098 = vmatpush.bf16.msra.mxu0 %v3885
    %5099 = vmatpush.bf16.msra.mxu0 %v3881
    %5100 = vmatpush.bf16.msra.mxu0 %v3877
    %5101 = vmatpush.bf16.msra.mxu0 %v3873
    %5102 = vmatpush.bf16.msra.mxu0 %v3869
    %5103 = vmatpush.bf16.msra.mxu0 %v3865
    %5104 = vmatmul.bf16.gmra.mxu0 %v2115
    %v5105 = vpop.f32.mrf.mxu0
    %v5106 = vadd.f32 %v5093, %v5105
    %v5107 = vpop.f32.mrf.mxu0
    %5108 = vdwg.mxu0
    %5109 = vmatpush.bf16.msra.mxu0 %v3925
    %5110 = vmatpush.bf16.msra.mxu0 %v3921
    %5111 = vmatpush.bf16.msra.mxu0 %v3917
    %5112 = vmatpush.bf16.msra.mxu0 %v3913
    %5113 = vmatpush.bf16.msra.mxu0 %v3909
    %5114 = vmatpush.bf16.msra.mxu0 %v3905
    %5115 = vmatpush.bf16.msra.mxu0 %v3901
    %5116 = vmatpush.bf16.msra.mxu0 %v3897
    %5117 = vmatmul.bf16.gmra.mxu0 %v2116
    %v5118 = vpop.f32.mrf.mxu0
    %v5119 = vadd.f32 %v5106, %v5118
    %v5120 = vpop.f32.mrf.mxu0
    %5121 = vdwg.mxu0
    %5122 = vmatpush.bf16.msra.mxu0 %v3957
    %5123 = vmatpush.bf16.msra.mxu0 %v3953
    %5124 = vmatpush.bf16.msra.mxu0 %v3949
    %5125 = vmatpush.bf16.msra.mxu0 %v3945
    %5126 = vmatpush.bf16.msra.mxu0 %v3941
    %5127 = vmatpush.bf16.msra.mxu0 %v3937
    %5128 = vmatpush.bf16.msra.mxu0 %v3933
    %5129 = vmatpush.bf16.msra.mxu0 %v3929
    %5130 = vmatmul.bf16.gmra.mxu0 %v2117
    %v5131 = vpop.f32.mrf.mxu0
    %v5132 = vadd.f32 %v5119, %v5131
    %v5133 = vpop.f32.mrf.mxu0
    %5134 = vdwg.mxu0
    %5135 = vmatpush.bf16.msra.mxu0 %v3989
    %5136 = vmatpush.bf16.msra.mxu0 %v3985
    %5137 = vmatpush.bf16.msra.mxu0 %v3981
    %5138 = vmatpush.bf16.msra.mxu0 %v3977
    %5139 = vmatpush.bf16.msra.mxu0 %v3973
    %5140 = vmatpush.bf16.msra.mxu0 %v3969
    %5141 = vmatpush.bf16.msra.mxu0 %v3965
    %5142 = vmatpush.bf16.msra.mxu0 %v3961
    %5143 = vmatmul.bf16.gmra.mxu0 %v2118
    %v5144 = vpop.f32.mrf.mxu0
    %v5145 = vadd.f32 %v5132, %v5144
    %v5146 = vpop.f32.mrf.mxu0
    %5147 = vdwg.mxu0
    %5148 = vmatpush.bf16.msra.mxu0 %v4021
    %5149 = vmatpush.bf16.msra.mxu0 %v4017
    %5150 = vmatpush.bf16.msra.mxu0 %v4013
    %5151 = vmatpush.bf16.msra.mxu0 %v4009
    %5152 = vmatpush.bf16.msra.mxu0 %v4005
    %5153 = vmatpush.bf16.msra.mxu0 %v4001
    %5154 = vmatpush.bf16.msra.mxu0 %v3997
    %5155 = vmatpush.bf16.msra.mxu0 %v3993
    %5156 = vmatmul.bf16.gmra.mxu0 %v2119
    %v5157 = vpop.f32.mrf.mxu0
    %v5158 = vadd.f32 %v5145, %v5157
    %v5159 = vpop.f32.mrf.mxu0
    %5160 = vdwg.mxu0
    %5161 = vmatpush.bf16.msra.mxu0 %v4053
    %5162 = vmatpush.bf16.msra.mxu0 %v4049
    %5163 = vmatpush.bf16.msra.mxu0 %v4045
    %5164 = vmatpush.bf16.msra.mxu0 %v4041
    %5165 = vmatpush.bf16.msra.mxu0 %v4037
    %5166 = vmatpush.bf16.msra.mxu0 %v4033
    %5167 = vmatpush.bf16.msra.mxu0 %v4029
    %5168 = vmatpush.bf16.msra.mxu0 %v4025
    %5169 = vmatmul.bf16.gmra.mxu0 %v2120
    %v5170 = vpop.f32.mrf.mxu0
    %v5171 = vadd.f32 %v5158, %v5170
    %v5172 = vpop.f32.mrf.mxu0
    %5173 = vdwg.mxu0
    %5174 = vmatpush.bf16.msra.mxu0 %v4085
    %5175 = vmatpush.bf16.msra.mxu0 %v4081
    %5176 = vmatpush.bf16.msra.mxu0 %v4077
    %5177 = vmatpush.bf16.msra.mxu0 %v4073
    %5178 = vmatpush.bf16.msra.mxu0 %v4069
    %5179 = vmatpush.bf16.msra.mxu0 %v4065
    %5180 = vmatpush.bf16.msra.mxu0 %v4061
    %5181 = vmatpush.bf16.msra.mxu0 %v4057
    %5182 = vmatmul.bf16.gmra.mxu0 %v2121
    %v5183 = vpop.f32.mrf.mxu0
    %v5184 = vadd.f32 %v5171, %v5183
    %v5185 = vpop.f32.mrf.mxu0
    %5186 = vdwg.mxu0
    %5187 = vmatpush.bf16.msra.mxu0 %v4117
    %5188 = vmatpush.bf16.msra.mxu0 %v4113
    %5189 = vmatpush.bf16.msra.mxu0 %v4109
    %5190 = vmatpush.bf16.msra.mxu0 %v4105
    %5191 = vmatpush.bf16.msra.mxu0 %v4101
    %5192 = vmatpush.bf16.msra.mxu0 %v4097
    %5193 = vmatpush.bf16.msra.mxu0 %v4093
    %5194 = vmatpush.bf16.msra.mxu0 %v4089
    %5195 = vmatmul.bf16.gmra.mxu0 %v2122
    %v5196 = vpop.f32.mrf.mxu0
    %v5197 = vadd.f32 %v5184, %v5196
    %v5198 = vpop.f32.mrf.mxu0
    %5199 = vdwg.mxu0
    %5200 = vmatpush.bf16.msra.mxu0 0
    %5201 = vmatpush.bf16.msra.mxu0 0
    %5202 = vmatpush.bf16.msra.mxu0 0
    %5203 = vmatpush.bf16.msra.mxu0 0
    %5204 = vmatpush.bf16.msra.mxu0 %v4133
    %5205 = vmatpush.bf16.msra.mxu0 %v4129
    %5206 = vmatpush.bf16.msra.mxu0 %v4125
    %5207 = vmatpush.bf16.msra.mxu0 %v4121
    %5208 = vmatmul.bf16.gmra.mxu0 %v4535
    %v5209 = vpop.f32.mrf.mxu0
    %v5210 = vadd.f32 %v5197, %v5209
    %v5211 = vpop.f32.mrf.mxu0
    %5212 = vdwg.mxu0
    %v5213 = vmax.f32 %v4703, 0.0
    %v5214 = vmax.f32 %v4872, 0.0
    %v5215 = vmax.f32 %v5041, 0.0
    %v5216 = vmax.f32 %v5210, 0.0
    %v5217 = vpack.c.bf16 %v5213, %v5213
    %v5218 = vpack.c.bf16 %v5214, %v5214
    %v5219 = vpack.c.bf16 %v5215, %v5215
    %v5220 = vpack.c.bf16 %v5216, %v5216
    %v5221 = vld [vmem:[#allocation5] sm:$0xff]
    %v5222 = vld [vmem:[#allocation5 + $0x8] sm:$0xff]
    %v5223 = vld [vmem:[#allocation5 + $0x10] sm:$0xff]
    %v5224 = vld [vmem:[#allocation5 + $0x18] sm:$0xff]
    %v5225 = vld [vmem:[#allocation5 + $0x20] sm:$0xff]
    %v5226 = vld [vmem:[#allocation5 + $0x28] sm:$0xff]
    %v5227 = vld [vmem:[#allocation5 + $0x30] sm:$0xff]
    %v5228 = vld [vmem:[#allocation5 + $0x38] sm:$0xff]
    %v5229 = vld [vmem:[#allocation5 + $0x40] sm:$0xff]
    %v5230 = vld [vmem:[#allocation5 + $0x48] sm:$0xff]
    %v5231 = vld [vmem:[#allocation5 + $0x50] sm:$0xff]
    %v5232 = vld [vmem:[#allocation5 + $0x58] sm:$0xff]
    %v5233 = vld [vmem:[#allocation5 + $0x60] sm:$0xff]
    %v5234 = vld [vmem:[#allocation5 + $0x68] sm:$0xff]
    %v5235 = vld [vmem:[#allocation5 + $0x70] sm:$0xff]
    %v5236 = vld [vmem:[#allocation5 + $0x78] sm:$0xff]
    %v5237 = vld [vmem:[#allocation5 + $0x80] sm:$0xff]
    %v5238 = vld [vmem:[#allocation5 + $0x88] sm:$0xff]
    %v5239 = vld [vmem:[#allocation5 + $0x90] sm:$0xff]
    %v5240 = vld [vmem:[#allocation5 + $0x98] sm:$0xff]
    %v5241 = vld [vmem:[#allocation5 + $0xa0] sm:$0xff]
    %v5242 = vld [vmem:[#allocation5 + $0xa8] sm:$0xff]
    %v5243 = vld [vmem:[#allocation5 + $0xb0] sm:$0xff]
    %v5244 = vld [vmem:[#allocation5 + $0xb8] sm:$0xff]
    %v5245 = vld [vmem:[#allocation5 + $0xc0] sm:$0xff]
    %v5246 = vld [vmem:[#allocation5 + $0xc8] sm:$0xff]
    %v5247 = vld [vmem:[#allocation5 + $0xd0] sm:$0xff]
    %v5248 = vld [vmem:[#allocation5 + $0xd8] sm:$0xff]
    %v5249 = vld [vmem:[#allocation5 + $0xe0] sm:$0xff]
    %v5250 = vld [vmem:[#allocation5 + $0xe8] sm:$0xff]
    %v5251 = vld [vmem:[#allocation5 + $0xf0] sm:$0xff]
    %v5252 = vld [vmem:[#allocation5 + $0xf8] sm:$0xff]
    %v5253 = vld [vmem:[#allocation5 + $0x100] sm:$0xff]
    %v5254 = vld [vmem:[#allocation5 + $0x108] sm:$0xff]
    %v5255 = vld [vmem:[#allocation5 + $0x110] sm:$0xff]
    %v5256 = vld [vmem:[#allocation5 + $0x118] sm:$0xff]
    %v5257 = vld [vmem:[#allocation5 + $0x120] sm:$0xff]
    %v5258 = vld [vmem:[#allocation5 + $0x128] sm:$0xff]
    %v5259 = vld [vmem:[#allocation5 + $0x130] sm:$0xff]
    %v5260 = vld [vmem:[#allocation5 + $0x138] sm:$0xff]
    %v5261 = vld [vmem:[#allocation5 + $0x140] sm:$0xff]
    %v5262 = vld [vmem:[#allocation5 + $0x148] sm:$0xff]
    %v5263 = vld [vmem:[#allocation5 + $0x150] sm:$0xff]
    %v5264 = vld [vmem:[#allocation5 + $0x158] sm:$0xff]
    %v5265 = vld [vmem:[#allocation5 + $0x160] sm:$0xff]
    %v5266 = vld [vmem:[#allocation5 + $0x168] sm:$0xff]
    %v5267 = vld [vmem:[#allocation5 + $0x170] sm:$0xff]
    %v5268 = vld [vmem:[#allocation5 + $0x178] sm:$0xff]
    %v5269 = vld [vmem:[#allocation5 + $0x180] sm:$0xff]
    %v5270 = vld [vmem:[#allocation5 + $0x188] sm:$0xff]
    %v5271 = vld [vmem:[#allocation5 + $0x190] sm:$0xff]
    %v5272 = vld [vmem:[#allocation5 + $0x198] sm:$0xff]
    %v5273 = vld [vmem:[#allocation5 + $0x1a0] sm:$0xff]
    %v5274 = vld [vmem:[#allocation5 + $0x1a8] sm:$0xff]
    %v5275 = vld [vmem:[#allocation5 + $0x1b0] sm:$0xff]
    %v5276 = vld [vmem:[#allocation5 + $0x1b8] sm:$0xff]
    %v5277 = vld [vmem:[#allocation5 + $0x1c0] sm:$0xff]
    %v5278 = vld [vmem:[#allocation5 + $0x1c8] sm:$0xff]
    %v5279 = vld [vmem:[#allocation5 + $0x1d0] sm:$0xff]
    %v5280 = vld [vmem:[#allocation5 + $0x1d8] sm:$0xff]
    %v5281 = vld [vmem:[#allocation5 + $0x1e0] sm:$0xff]
    %v5282 = vld [vmem:[#allocation5 + $0x1e8] sm:$0xff]
    %v5283 = vld [vmem:[#allocation5 + $0x1f0] sm:$0xff]
    %v5284 = vld [vmem:[#allocation5 + $0x1f8] sm:$0xff]
    %v5285 = vld [vmem:[#allocation5 + $0x200] sm:$0xff]
    %v5286 = vld [vmem:[#allocation5 + $0x208] sm:$0xff]
    %v5287 = vld [vmem:[#allocation5 + $0x210] sm:$0xff]
    %v5288 = vld [vmem:[#allocation5 + $0x218] sm:$0xff]
    %v5289 = vld [vmem:[#allocation5 + $0x220] sm:$0xff]
    %v5290 = vld [vmem:[#allocation5 + $0x228] sm:$0xff]
    %v5291 = vld [vmem:[#allocation5 + $0x230] sm:$0xff]
    %v5292 = vld [vmem:[#allocation5 + $0x238] sm:$0xff]
    %v5293 = vld [vmem:[#allocation5 + $0x240] sm:$0xff]
    %v5294 = vld [vmem:[#allocation5 + $0x248] sm:$0xff]
    %v5295 = vld [vmem:[#allocation5 + $0x250] sm:$0xff]
    %v5296 = vld [vmem:[#allocation5 + $0x258] sm:$0xff]
    %v5297 = vld [vmem:[#allocation5 + $0x260] sm:$0xff]
    %v5298 = vld [vmem:[#allocation5 + $0x268] sm:$0xff]
    %v5299 = vld [vmem:[#allocation5 + $0x270] sm:$0xff]
    %v5300 = vld [vmem:[#allocation5 + $0x278] sm:$0xff]
    %v5301 = vld [vmem:[#allocation5 + $0x280] sm:$0xff]
    %v5302 = vld [vmem:[#allocation5 + $0x288] sm:$0xff]
    %v5303 = vld [vmem:[#allocation5 + $0x290] sm:$0xff]
    %v5304 = vld [vmem:[#allocation5 + $0x298] sm:$0xff]
    %v5305 = vld [vmem:[#allocation5 + $0x2a0] sm:$0xff]
    %v5306 = vld [vmem:[#allocation5 + $0x2a8] sm:$0xff]
    %v5307 = vld [vmem:[#allocation5 + $0x2b0] sm:$0xff]
    %v5308 = vld [vmem:[#allocation5 + $0x2b8] sm:$0xff]
    %v5309 = vld [vmem:[#allocation5 + $0x2c0] sm:$0xff]
    %v5310 = vld [vmem:[#allocation5 + $0x2c8] sm:$0xff]
    %v5311 = vld [vmem:[#allocation5 + $0x2d0] sm:$0xff]
    %v5312 = vld [vmem:[#allocation5 + $0x2d8] sm:$0xff]
    %v5313 = vld [vmem:[#allocation5 + $0x2e0] sm:$0xff]
    %v5314 = vld [vmem:[#allocation5 + $0x2e8] sm:$0xff]
    %v5315 = vld [vmem:[#allocation5 + $0x2f0] sm:$0xff]
    %v5316 = vld [vmem:[#allocation5 + $0x2f8] sm:$0xff]
    %v5317 = vld [vmem:[#allocation5 + $0x300] sm:$0xff]
    %v5318 = vld [vmem:[#allocation5 + $0x308] sm:$0xff]
    %v5319 = vld [vmem:[#allocation5 + $0x310] sm:$0xff]
    %v5320 = vld [vmem:[#allocation5 + $0x318] sm:$0xff]
    %v5321 = vld [vmem:[#allocation5 + $0x320] sm:$0xff]
    %v5322 = vld [vmem:[#allocation5 + $0x328] sm:$0xff]
    %v5323 = vld [vmem:[#allocation5 + $0x330] sm:$0xff]
    %v5324 = vld [vmem:[#allocation5 + $0x338] sm:$0xff]
    %v5325 = vld [vmem:[#allocation5 + $0x340] sm:$0xff]
    %v5326 = vld [vmem:[#allocation5 + $0x348] sm:$0xff]
    %v5327 = vld [vmem:[#allocation5 + $0x350] sm:$0xff]
    %v5328 = vld [vmem:[#allocation5 + $0x358] sm:$0xff]
    %v5329 = vld [vmem:[#allocation5 + $0x360] sm:$0xff]
    %v5330 = vld [vmem:[#allocation5 + $0x368] sm:$0xff]
    %v5331 = vld [vmem:[#allocation5 + $0x370] sm:$0xff]
    %v5332 = vld [vmem:[#allocation5 + $0x378] sm:$0xff]
    %v5333 = vld [vmem:[#allocation5 + $0x380] sm:$0xff]
    %v5334 = vld [vmem:[#allocation5 + $0x388] sm:$0xff]
    %v5335 = vld [vmem:[#allocation5 + $0x390] sm:$0xff]
    %v5336 = vld [vmem:[#allocation5 + $0x398] sm:$0xff]
    %v5337 = vld [vmem:[#allocation5 + $0x3a0] sm:$0xff]
    %v5338 = vld [vmem:[#allocation5 + $0x3a8] sm:$0xff]
    %v5339 = vld [vmem:[#allocation5 + $0x3b0] sm:$0xff]
    %v5340 = vld [vmem:[#allocation5 + $0x3b8] sm:$0xff]
    %v5341 = vld [vmem:[#allocation5 + $0x3c0] sm:$0xff]
    %v5342 = vld [vmem:[#allocation5 + $0x3c8] sm:$0xff]
    %v5343 = vld [vmem:[#allocation5 + $0x3d0] sm:$0xff]
    %v5344 = vld [vmem:[#allocation5 + $0x3d8] sm:$0xff]
    %v5345 = vld [vmem:[#allocation5 + $0x3e0] sm:$0xff]
    %v5346 = vld [vmem:[#allocation5 + $0x3e8] sm:$0xff]
    %v5347 = vld [vmem:[#allocation5 + $0x3f0] sm:$0xff]
    %v5348 = vld [vmem:[#allocation5 + $0x3f8] sm:$0xff]
    %v5349 = vld [vmem:[%s8] sm:$0xf]
    %v5351 = vperm.slane %v5349, 0
    %v5352 = vperm.slane %v5349, 1
    %v5353 = vperm.slane %v5349, 2
    %v5354 = vperm.slane %v5349, 3
    %v5487 = vunpack.c.l.b16 %v5221
    %v5488 = vunpack.c.h.b16 %v5221
    %v5489 = vunpack.c.l.b16 %v5222
    %v5490 = vunpack.c.h.b16 %v5222
    %v5491 = vunpack.c.l.b16 %v5223
    %v5492 = vunpack.c.h.b16 %v5223
    %v5493 = vunpack.c.l.b16 %v5224
    %v5494 = vunpack.c.h.b16 %v5224
    %v5495 = vunpack.c.l.b16 %v5225
    %v5496 = vunpack.c.h.b16 %v5225
    %v5497 = vunpack.c.l.b16 %v5226
    %v5498 = vunpack.c.h.b16 %v5226
    %v5499 = vunpack.c.l.b16 %v5227
    %v5500 = vunpack.c.h.b16 %v5227
    %v5501 = vunpack.c.l.b16 %v5228
    %v5502 = vunpack.c.h.b16 %v5228
    %v5503 = vunpack.c.l.b16 %v5229
    %v5504 = vunpack.c.h.b16 %v5229
    %v5505 = vunpack.c.l.b16 %v5230
    %v5506 = vunpack.c.h.b16 %v5230
    %v5507 = vunpack.c.l.b16 %v5231
    %v5508 = vunpack.c.h.b16 %v5231
    %v5509 = vunpack.c.l.b16 %v5232
    %v5510 = vunpack.c.h.b16 %v5232
    %v5511 = vunpack.c.l.b16 %v5233
    %v5512 = vunpack.c.h.b16 %v5233
    %v5513 = vunpack.c.l.b16 %v5234
    %v5514 = vunpack.c.h.b16 %v5234
    %v5515 = vunpack.c.l.b16 %v5235
    %v5516 = vunpack.c.h.b16 %v5235
    %v5517 = vunpack.c.l.b16 %v5236
    %v5518 = vunpack.c.h.b16 %v5236
    %v5519 = vunpack.c.l.b16 %v5237
    %v5520 = vunpack.c.h.b16 %v5237
    %v5521 = vunpack.c.l.b16 %v5238
    %v5522 = vunpack.c.h.b16 %v5238
    %v5523 = vunpack.c.l.b16 %v5239
    %v5524 = vunpack.c.h.b16 %v5239
    %v5525 = vunpack.c.l.b16 %v5240
    %v5526 = vunpack.c.h.b16 %v5240
    %v5527 = vunpack.c.l.b16 %v5241
    %v5528 = vunpack.c.h.b16 %v5241
    %v5529 = vunpack.c.l.b16 %v5242
    %v5530 = vunpack.c.h.b16 %v5242
    %v5531 = vunpack.c.l.b16 %v5243
    %v5532 = vunpack.c.h.b16 %v5243
    %v5533 = vunpack.c.l.b16 %v5244
    %v5534 = vunpack.c.h.b16 %v5244
    %v5535 = vunpack.c.l.b16 %v5245
    %v5536 = vunpack.c.h.b16 %v5245
    %v5537 = vunpack.c.l.b16 %v5246
    %v5538 = vunpack.c.h.b16 %v5246
    %v5539 = vunpack.c.l.b16 %v5247
    %v5540 = vunpack.c.h.b16 %v5247
    %v5541 = vunpack.c.l.b16 %v5248
    %v5542 = vunpack.c.h.b16 %v5248
    %v5543 = vunpack.c.l.b16 %v5249
    %v5544 = vunpack.c.h.b16 %v5249
    %v5545 = vunpack.c.l.b16 %v5250
    %v5546 = vunpack.c.h.b16 %v5250
    %v5547 = vunpack.c.l.b16 %v5251
    %v5548 = vunpack.c.h.b16 %v5251
    %v5549 = vunpack.c.l.b16 %v5252
    %v5550 = vunpack.c.h.b16 %v5252
    %v5551 = vunpack.c.l.b16 %v5253
    %v5552 = vunpack.c.h.b16 %v5253
    %v5553 = vunpack.c.l.b16 %v5254
    %v5554 = vunpack.c.h.b16 %v5254
    %v5555 = vunpack.c.l.b16 %v5255
    %v5556 = vunpack.c.h.b16 %v5255
    %v5557 = vunpack.c.l.b16 %v5256
    %v5558 = vunpack.c.h.b16 %v5256
    %v5559 = vunpack.c.l.b16 %v5257
    %v5560 = vunpack.c.h.b16 %v5257
    %v5561 = vunpack.c.l.b16 %v5258
    %v5562 = vunpack.c.h.b16 %v5258
    %v5563 = vunpack.c.l.b16 %v5259
    %v5564 = vunpack.c.h.b16 %v5259
    %v5565 = vunpack.c.l.b16 %v5260
    %v5566 = vunpack.c.h.b16 %v5260
    %v5567 = vunpack.c.l.b16 %v5261
    %v5568 = vunpack.c.h.b16 %v5261
    %v5569 = vunpack.c.l.b16 %v5262
    %v5570 = vunpack.c.h.b16 %v5262
    %v5571 = vunpack.c.l.b16 %v5263
    %v5572 = vunpack.c.h.b16 %v5263
    %v5573 = vunpack.c.l.b16 %v5264
    %v5574 = vunpack.c.h.b16 %v5264
    %v5575 = vunpack.c.l.b16 %v5265
    %v5576 = vunpack.c.h.b16 %v5265
    %v5577 = vunpack.c.l.b16 %v5266
    %v5578 = vunpack.c.h.b16 %v5266
    %v5579 = vunpack.c.l.b16 %v5267
    %v5580 = vunpack.c.h.b16 %v5267
    %v5581 = vunpack.c.l.b16 %v5268
    %v5582 = vunpack.c.h.b16 %v5268
    %v5583 = vunpack.c.l.b16 %v5269
    %v5584 = vunpack.c.h.b16 %v5269
    %v5585 = vunpack.c.l.b16 %v5270
    %v5586 = vunpack.c.h.b16 %v5270
    %v5587 = vunpack.c.l.b16 %v5271
    %v5588 = vunpack.c.h.b16 %v5271
    %v5589 = vunpack.c.l.b16 %v5272
    %v5590 = vunpack.c.h.b16 %v5272
    %v5591 = vunpack.c.l.b16 %v5273
    %v5592 = vunpack.c.h.b16 %v5273
    %v5593 = vunpack.c.l.b16 %v5274
    %v5594 = vunpack.c.h.b16 %v5274
    %v5595 = vunpack.c.l.b16 %v5275
    %v5596 = vunpack.c.h.b16 %v5275
    %v5597 = vunpack.c.l.b16 %v5276
    %v5598 = vunpack.c.h.b16 %v5276
    %v5599 = vunpack.c.l.b16 %v5277
    %v5600 = vunpack.c.h.b16 %v5277
    %v5601 = vunpack.c.l.b16 %v5278
    %v5602 = vunpack.c.h.b16 %v5278
    %v5603 = vunpack.c.l.b16 %v5279
    %v5604 = vunpack.c.h.b16 %v5279
    %v5605 = vunpack.c.l.b16 %v5280
    %v5606 = vunpack.c.h.b16 %v5280
    %v5607 = vunpack.c.l.b16 %v5281
    %v5608 = vunpack.c.h.b16 %v5281
    %v5609 = vunpack.c.l.b16 %v5282
    %v5610 = vunpack.c.h.b16 %v5282
    %v5611 = vunpack.c.l.b16 %v5283
    %v5612 = vunpack.c.h.b16 %v5283
    %v5613 = vunpack.c.l.b16 %v5284
    %v5614 = vunpack.c.h.b16 %v5284
    %v5615 = vunpack.c.l.b16 %v5285
    %v5616 = vunpack.c.h.b16 %v5285
    %v5617 = vunpack.c.l.b16 %v5286
    %v5618 = vunpack.c.h.b16 %v5286
    %v5619 = vunpack.c.l.b16 %v5287
    %v5620 = vunpack.c.h.b16 %v5287
    %v5621 = vunpack.c.l.b16 %v5288
    %v5622 = vunpack.c.h.b16 %v5288
    %v5623 = vunpack.c.l.b16 %v5289
    %v5624 = vunpack.c.h.b16 %v5289
    %v5625 = vunpack.c.l.b16 %v5290
    %v5626 = vunpack.c.h.b16 %v5290
    %v5627 = vunpack.c.l.b16 %v5291
    %v5628 = vunpack.c.h.b16 %v5291
    %v5629 = vunpack.c.l.b16 %v5292
    %v5630 = vunpack.c.h.b16 %v5292
    %v5631 = vunpack.c.l.b16 %v5293
    %v5632 = vunpack.c.h.b16 %v5293
    %v5633 = vunpack.c.l.b16 %v5294
    %v5634 = vunpack.c.h.b16 %v5294
    %v5635 = vunpack.c.l.b16 %v5295
    %v5636 = vunpack.c.h.b16 %v5295
    %v5637 = vunpack.c.l.b16 %v5296
    %v5638 = vunpack.c.h.b16 %v5296
    %v5639 = vunpack.c.l.b16 %v5297
    %v5640 = vunpack.c.h.b16 %v5297
    %v5641 = vunpack.c.l.b16 %v5298
    %v5642 = vunpack.c.h.b16 %v5298
    %v5643 = vunpack.c.l.b16 %v5299
    %v5644 = vunpack.c.h.b16 %v5299
    %v5645 = vunpack.c.l.b16 %v5300
    %v5646 = vunpack.c.h.b16 %v5300
    %v5647 = vunpack.c.l.b16 %v5301
    %v5648 = vunpack.c.h.b16 %v5301
    %v5649 = vunpack.c.l.b16 %v5302
    %v5650 = vunpack.c.h.b16 %v5302
    %v5651 = vunpack.c.l.b16 %v5303
    %v5652 = vunpack.c.h.b16 %v5303
    %v5653 = vunpack.c.l.b16 %v5304
    %v5654 = vunpack.c.h.b16 %v5304
    %v5655 = vunpack.c.l.b16 %v5305
    %v5656 = vunpack.c.h.b16 %v5305
    %v5657 = vunpack.c.l.b16 %v5306
    %v5658 = vunpack.c.h.b16 %v5306
    %v5659 = vunpack.c.l.b16 %v5307
    %v5660 = vunpack.c.h.b16 %v5307
    %v5661 = vunpack.c.l.b16 %v5308
    %v5662 = vunpack.c.h.b16 %v5308
    %v5663 = vunpack.c.l.b16 %v5309
    %v5664 = vunpack.c.h.b16 %v5309
    %v5665 = vunpack.c.l.b16 %v5310
    %v5666 = vunpack.c.h.b16 %v5310
    %v5667 = vunpack.c.l.b16 %v5311
    %v5668 = vunpack.c.h.b16 %v5311
    %v5669 = vunpack.c.l.b16 %v5312
    %v5670 = vunpack.c.h.b16 %v5312
    %v5671 = vunpack.c.l.b16 %v5313
    %v5672 = vunpack.c.h.b16 %v5313
    %v5673 = vunpack.c.l.b16 %v5314
    %v5674 = vunpack.c.h.b16 %v5314
    %v5675 = vunpack.c.l.b16 %v5315
    %v5676 = vunpack.c.h.b16 %v5315
    %v5677 = vunpack.c.l.b16 %v5316
    %v5678 = vunpack.c.h.b16 %v5316
    %v5679 = vunpack.c.l.b16 %v5317
    %v5680 = vunpack.c.h.b16 %v5317
    %v5681 = vunpack.c.l.b16 %v5318
    %v5682 = vunpack.c.h.b16 %v5318
    %v5683 = vunpack.c.l.b16 %v5319
    %v5684 = vunpack.c.h.b16 %v5319
    %v5685 = vunpack.c.l.b16 %v5320
    %v5686 = vunpack.c.h.b16 %v5320
    %v5687 = vunpack.c.l.b16 %v5321
    %v5688 = vunpack.c.h.b16 %v5321
    %v5689 = vunpack.c.l.b16 %v5322
    %v5690 = vunpack.c.h.b16 %v5322
    %v5691 = vunpack.c.l.b16 %v5323
    %v5692 = vunpack.c.h.b16 %v5323
    %v5693 = vunpack.c.l.b16 %v5324
    %v5694 = vunpack.c.h.b16 %v5324
    %v5695 = vunpack.c.l.b16 %v5325
    %v5696 = vunpack.c.h.b16 %v5325
    %v5697 = vunpack.c.l.b16 %v5326
    %v5698 = vunpack.c.h.b16 %v5326
    %v5699 = vunpack.c.l.b16 %v5327
    %v5700 = vunpack.c.h.b16 %v5327
    %v5701 = vunpack.c.l.b16 %v5328
    %v5702 = vunpack.c.h.b16 %v5328
    %v5703 = vunpack.c.l.b16 %v5329
    %v5704 = vunpack.c.h.b16 %v5329
    %v5705 = vunpack.c.l.b16 %v5330
    %v5706 = vunpack.c.h.b16 %v5330
    %v5707 = vunpack.c.l.b16 %v5331
    %v5708 = vunpack.c.h.b16 %v5331
    %v5709 = vunpack.c.l.b16 %v5332
    %v5710 = vunpack.c.h.b16 %v5332
    %v5711 = vunpack.c.l.b16 %v5333
    %v5712 = vunpack.c.h.b16 %v5333
    %v5713 = vunpack.c.l.b16 %v5334
    %v5714 = vunpack.c.h.b16 %v5334
    %v5715 = vunpack.c.l.b16 %v5335
    %v5716 = vunpack.c.h.b16 %v5335
    %v5717 = vunpack.c.l.b16 %v5336
    %v5718 = vunpack.c.h.b16 %v5336
    %v5719 = vunpack.c.l.b16 %v5337
    %v5720 = vunpack.c.h.b16 %v5337
    %v5721 = vunpack.c.l.b16 %v5338
    %v5722 = vunpack.c.h.b16 %v5338
    %v5723 = vunpack.c.l.b16 %v5339
    %v5724 = vunpack.c.h.b16 %v5339
    %v5725 = vunpack.c.l.b16 %v5340
    %v5726 = vunpack.c.h.b16 %v5340
    %v5727 = vunpack.c.l.b16 %v5341
    %v5728 = vunpack.c.h.b16 %v5341
    %v5729 = vunpack.c.l.b16 %v5342
    %v5730 = vunpack.c.h.b16 %v5342
    %v5731 = vunpack.c.l.b16 %v5343
    %v5732 = vunpack.c.h.b16 %v5343
    %v5733 = vunpack.c.l.b16 %v5344
    %v5734 = vunpack.c.h.b16 %v5344
    %v5735 = vunpack.c.l.b16 %v5345
    %v5736 = vunpack.c.h.b16 %v5345
    %v5737 = vunpack.c.l.b16 %v5346
    %v5738 = vunpack.c.h.b16 %v5346
    %v5739 = vunpack.c.l.b16 %v5347
    %v5740 = vunpack.c.h.b16 %v5347
    %v5741 = vunpack.c.l.b16 %v5348
    %v5742 = vunpack.c.h.b16 %v5348
    %v5743 = vpack.c.b16 %v5491, %v5487
    %v5744 = vpack.c.b16 %v5492, %v5488
    %v5745 = vpack.c.b16 %v5493, %v5489
    %v5746 = vpack.c.b16 %v5494, %v5490
    %v5747 = vpack.c.b16 %v5499, %v5495
    %v5748 = vpack.c.b16 %v5500, %v5496
    %v5749 = vpack.c.b16 %v5501, %v5497
    %v5750 = vpack.c.b16 %v5502, %v5498
    %v5751 = vpack.c.b16 %v5507, %v5503
    %v5752 = vpack.c.b16 %v5508, %v5504
    %v5753 = vpack.c.b16 %v5509, %v5505
    %v5754 = vpack.c.b16 %v5510, %v5506
    %v5755 = vpack.c.b16 %v5515, %v5511
    %v5756 = vpack.c.b16 %v5516, %v5512
    %v5757 = vpack.c.b16 %v5517, %v5513
    %v5758 = vpack.c.b16 %v5518, %v5514
    %v5759 = vpack.c.b16 %v5523, %v5519
    %v5760 = vpack.c.b16 %v5524, %v5520
    %v5761 = vpack.c.b16 %v5525, %v5521
    %v5762 = vpack.c.b16 %v5526, %v5522
    %v5763 = vpack.c.b16 %v5531, %v5527
    %v5764 = vpack.c.b16 %v5532, %v5528
    %v5765 = vpack.c.b16 %v5533, %v5529
    %v5766 = vpack.c.b16 %v5534, %v5530
    %v5767 = vpack.c.b16 %v5539, %v5535
    %v5768 = vpack.c.b16 %v5540, %v5536
    %v5769 = vpack.c.b16 %v5541, %v5537
    %v5770 = vpack.c.b16 %v5542, %v5538
    %v5771 = vpack.c.b16 %v5547, %v5543
    %v5772 = vpack.c.b16 %v5548, %v5544
    %v5773 = vpack.c.b16 %v5549, %v5545
    %v5774 = vpack.c.b16 %v5550, %v5546
    %v5775 = vpack.c.b16 %v5555, %v5551
    %v5776 = vpack.c.b16 %v5556, %v5552
    %v5777 = vpack.c.b16 %v5557, %v5553
    %v5778 = vpack.c.b16 %v5558, %v5554
    %v5779 = vpack.c.b16 %v5563, %v5559
    %v5780 = vpack.c.b16 %v5564, %v5560
    %v5781 = vpack.c.b16 %v5565, %v5561
    %v5782 = vpack.c.b16 %v5566, %v5562
    %v5783 = vpack.c.b16 %v5571, %v5567
    %v5784 = vpack.c.b16 %v5572, %v5568
    %v5785 = vpack.c.b16 %v5573, %v5569
    %v5786 = vpack.c.b16 %v5574, %v5570
    %v5787 = vpack.c.b16 %v5579, %v5575
    %v5788 = vpack.c.b16 %v5580, %v5576
    %v5789 = vpack.c.b16 %v5581, %v5577
    %v5790 = vpack.c.b16 %v5582, %v5578
    %v5791 = vpack.c.b16 %v5587, %v5583
    %v5792 = vpack.c.b16 %v5588, %v5584
    %v5793 = vpack.c.b16 %v5589, %v5585
    %v5794 = vpack.c.b16 %v5590, %v5586
    %v5795 = vpack.c.b16 %v5595, %v5591
    %v5796 = vpack.c.b16 %v5596, %v5592
    %v5797 = vpack.c.b16 %v5597, %v5593
    %v5798 = vpack.c.b16 %v5598, %v5594
    %v5799 = vpack.c.b16 %v5603, %v5599
    %v5800 = vpack.c.b16 %v5604, %v5600
    %v5801 = vpack.c.b16 %v5605, %v5601
    %v5802 = vpack.c.b16 %v5606, %v5602
    %v5803 = vpack.c.b16 %v5611, %v5607
    %v5804 = vpack.c.b16 %v5612, %v5608
    %v5805 = vpack.c.b16 %v5613, %v5609
    %v5806 = vpack.c.b16 %v5614, %v5610
    %v5807 = vpack.c.b16 %v5619, %v5615
    %v5808 = vpack.c.b16 %v5620, %v5616
    %v5809 = vpack.c.b16 %v5621, %v5617
    %v5810 = vpack.c.b16 %v5622, %v5618
    %v5811 = vpack.c.b16 %v5627, %v5623
    %v5812 = vpack.c.b16 %v5628, %v5624
    %v5813 = vpack.c.b16 %v5629, %v5625
    %v5814 = vpack.c.b16 %v5630, %v5626
    %v5815 = vpack.c.b16 %v5635, %v5631
    %v5816 = vpack.c.b16 %v5636, %v5632
    %v5817 = vpack.c.b16 %v5637, %v5633
    %v5818 = vpack.c.b16 %v5638, %v5634
    %v5819 = vpack.c.b16 %v5643, %v5639
    %v5820 = vpack.c.b16 %v5644, %v5640
    %v5821 = vpack.c.b16 %v5645, %v5641
    %v5822 = vpack.c.b16 %v5646, %v5642
    %v5823 = vpack.c.b16 %v5651, %v5647
    %v5824 = vpack.c.b16 %v5652, %v5648
    %v5825 = vpack.c.b16 %v5653, %v5649
    %v5826 = vpack.c.b16 %v5654, %v5650
    %v5827 = vpack.c.b16 %v5659, %v5655
    %v5828 = vpack.c.b16 %v5660, %v5656
    %v5829 = vpack.c.b16 %v5661, %v5657
    %v5830 = vpack.c.b16 %v5662, %v5658
    %v5831 = vpack.c.b16 %v5667, %v5663
    %v5832 = vpack.c.b16 %v5668, %v5664
    %v5833 = vpack.c.b16 %v5669, %v5665
    %v5834 = vpack.c.b16 %v5670, %v5666
    %v5835 = vpack.c.b16 %v5675, %v5671
    %v5836 = vpack.c.b16 %v5676, %v5672
    %v5837 = vpack.c.b16 %v5677, %v5673
    %v5838 = vpack.c.b16 %v5678, %v5674
    %v5839 = vpack.c.b16 %v5683, %v5679
    %v5840 = vpack.c.b16 %v5684, %v5680
    %v5841 = vpack.c.b16 %v5685, %v5681
    %v5842 = vpack.c.b16 %v5686, %v5682
    %v5843 = vpack.c.b16 %v5691, %v5687
    %v5844 = vpack.c.b16 %v5692, %v5688
    %v5845 = vpack.c.b16 %v5693, %v5689
    %v5846 = vpack.c.b16 %v5694, %v5690
    %v5847 = vpack.c.b16 %v5699, %v5695
    %v5848 = vpack.c.b16 %v5700, %v5696
    %v5849 = vpack.c.b16 %v5701, %v5697
    %v5850 = vpack.c.b16 %v5702, %v5698
    %v5851 = vpack.c.b16 %v5707, %v5703
    %v5852 = vpack.c.b16 %v5708, %v5704
    %v5853 = vpack.c.b16 %v5709, %v5705
    %v5854 = vpack.c.b16 %v5710, %v5706
    %v5855 = vpack.c.b16 %v5715, %v5711
    %v5856 = vpack.c.b16 %v5716, %v5712
    %v5857 = vpack.c.b16 %v5717, %v5713
    %v5858 = vpack.c.b16 %v5718, %v5714
    %v5859 = vpack.c.b16 %v5723, %v5719
    %v5860 = vpack.c.b16 %v5724, %v5720
    %v5861 = vpack.c.b16 %v5725, %v5721
    %v5862 = vpack.c.b16 %v5726, %v5722
    %v5863 = vpack.c.b16 %v5731, %v5727
    %v5864 = vpack.c.b16 %v5732, %v5728
    %v5865 = vpack.c.b16 %v5733, %v5729
    %v5866 = vpack.c.b16 %v5734, %v5730
    %v5867 = vpack.c.b16 %v5739, %v5735
    %v5868 = vpack.c.b16 %v5740, %v5736
    %v5869 = vpack.c.b16 %v5741, %v5737
    %v5870 = vpack.c.b16 %v5742, %v5738
    %5999 = vmatpush.bf16.msra.mxu0 %v5771
    %6000 = vmatpush.bf16.msra.mxu0 %v5767
    %6001 = vmatpush.bf16.msra.mxu0 %v5763
    %6002 = vmatpush.bf16.msra.mxu0 %v5759
    %6003 = vmatpush.bf16.msra.mxu0 %v5755
    %6004 = vmatpush.bf16.msra.mxu0 %v5751
    %6005 = vmatpush.bf16.msra.mxu0 %v5747
    %6006 = vmatpush.bf16.msra.mxu0 %v5743
    %6007 = vmatmul.bf16.gmra.mxu0 %v5217
    %v6008 = vpop.f32.mrf.mxu0
    %v6009 = vadd.f32 %v5351, %v6008
    %v6010 = vpop.f32.mrf.mxu0
    %6011 = vdwg.mxu0
    %6012 = vmatpush.bf16.msra.mxu0 %v5803
    %6013 = vmatpush.bf16.msra.mxu0 %v5799
    %6014 = vmatpush.bf16.msra.mxu0 %v5795
    %6015 = vmatpush.bf16.msra.mxu0 %v5791
    %6016 = vmatpush.bf16.msra.mxu0 %v5787
    %6017 = vmatpush.bf16.msra.mxu0 %v5783
    %6018 = vmatpush.bf16.msra.mxu0 %v5779
    %6019 = vmatpush.bf16.msra.mxu0 %v5775
    %6020 = vmatmul.bf16.gmra.mxu0 %v5218
    %v6021 = vpop.f32.mrf.mxu0
    %v6022 = vadd.f32 %v6009, %v6021
    %v6023 = vpop.f32.mrf.mxu0
    %6024 = vdwg.mxu0
    %6025 = vmatpush.bf16.msra.mxu0 %v5835
    %6026 = vmatpush.bf16.msra.mxu0 %v5831
    %6027 = vmatpush.bf16.msra.mxu0 %v5827
    %6028 = vmatpush.bf16.msra.mxu0 %v5823
    %6029 = vmatpush.bf16.msra.mxu0 %v5819
    %6030 = vmatpush.bf16.msra.mxu0 %v5815
    %6031 = vmatpush.bf16.msra.mxu0 %v5811
    %6032 = vmatpush.bf16.msra.mxu0 %v5807
    %6033 = vmatmul.bf16.gmra.mxu0 %v5219
    %v6034 = vpop.f32.mrf.mxu0
    %v6035 = vadd.f32 %v6022, %v6034
    %v6036 = vpop.f32.mrf.mxu0
    %6037 = vdwg.mxu0
    %6038 = vmatpush.bf16.msra.mxu0 %v5867
    %6039 = vmatpush.bf16.msra.mxu0 %v5863
    %6040 = vmatpush.bf16.msra.mxu0 %v5859
    %6041 = vmatpush.bf16.msra.mxu0 %v5855
    %6042 = vmatpush.bf16.msra.mxu0 %v5851
    %6043 = vmatpush.bf16.msra.mxu0 %v5847
    %6044 = vmatpush.bf16.msra.mxu0 %v5843
    %6045 = vmatpush.bf16.msra.mxu0 %v5839
    %6046 = vmatmul.bf16.gmra.mxu0 %v5220
    %v6047 = vpop.f32.mrf.mxu0
    %v6048 = vadd.f32 %v6035, %v6047
    %v6049 = vpop.f32.mrf.mxu0
    %6050 = vdwg.mxu0
    %6051 = vmatpush.bf16.msra.mxu0 %v5772
    %6052 = vmatpush.bf16.msra.mxu0 %v5768
    %6053 = vmatpush.bf16.msra.mxu0 %v5764
    %6054 = vmatpush.bf16.msra.mxu0 %v5760
    %6055 = vmatpush.bf16.msra.mxu0 %v5756
    %6056 = vmatpush.bf16.msra.mxu0 %v5752
    %6057 = vmatpush.bf16.msra.mxu0 %v5748
    %6058 = vmatpush.bf16.msra.mxu0 %v5744
    %6059 = vmatmul.bf16.gmra.mxu0 %v5217
    %v6060 = vpop.f32.mrf.mxu0
    %v6061 = vadd.f32 %v5352, %v6060
    %v6062 = vpop.f32.mrf.mxu0
    %6063 = vdwg.mxu0
    %6064 = vmatpush.bf16.msra.mxu0 %v5804
    %6065 = vmatpush.bf16.msra.mxu0 %v5800
    %6066 = vmatpush.bf16.msra.mxu0 %v5796
    %6067 = vmatpush.bf16.msra.mxu0 %v5792
    %6068 = vmatpush.bf16.msra.mxu0 %v5788
    %6069 = vmatpush.bf16.msra.mxu0 %v5784
    %6070 = vmatpush.bf16.msra.mxu0 %v5780
    %6071 = vmatpush.bf16.msra.mxu0 %v5776
    %6072 = vmatmul.bf16.gmra.mxu0 %v5218
    %v6073 = vpop.f32.mrf.mxu0
    %v6074 = vadd.f32 %v6061, %v6073
    %v6075 = vpop.f32.mrf.mxu0
    %6076 = vdwg.mxu0
    %6077 = vmatpush.bf16.msra.mxu0 %v5836
    %6078 = vmatpush.bf16.msra.mxu0 %v5832
    %6079 = vmatpush.bf16.msra.mxu0 %v5828
    %6080 = vmatpush.bf16.msra.mxu0 %v5824
    %6081 = vmatpush.bf16.msra.mxu0 %v5820
    %6082 = vmatpush.bf16.msra.mxu0 %v5816
    %6083 = vmatpush.bf16.msra.mxu0 %v5812
    %6084 = vmatpush.bf16.msra.mxu0 %v5808
    %6085 = vmatmul.bf16.gmra.mxu0 %v5219
    %v6086 = vpop.f32.mrf.mxu0
    %v6087 = vadd.f32 %v6074, %v6086
    %v6088 = vpop.f32.mrf.mxu0
    %6089 = vdwg.mxu0
    %6090 = vmatpush.bf16.msra.mxu0 %v5868
    %6091 = vmatpush.bf16.msra.mxu0 %v5864
    %6092 = vmatpush.bf16.msra.mxu0 %v5860
    %6093 = vmatpush.bf16.msra.mxu0 %v5856
    %6094 = vmatpush.bf16.msra.mxu0 %v5852
    %6095 = vmatpush.bf16.msra.mxu0 %v5848
    %6096 = vmatpush.bf16.msra.mxu0 %v5844
    %6097 = vmatpush.bf16.msra.mxu0 %v5840
    %6098 = vmatmul.bf16.gmra.mxu0 %v5220
    %v6099 = vpop.f32.mrf.mxu0
    %v6100 = vadd.f32 %v6087, %v6099
    %v6101 = vpop.f32.mrf.mxu0
    %6102 = vdwg.mxu0
    %6103 = vmatpush.bf16.msra.mxu0 %v5773
    %6104 = vmatpush.bf16.msra.mxu0 %v5769
    %6105 = vmatpush.bf16.msra.mxu0 %v5765
    %6106 = vmatpush.bf16.msra.mxu0 %v5761
    %6107 = vmatpush.bf16.msra.mxu0 %v5757
    %6108 = vmatpush.bf16.msra.mxu0 %v5753
    %6109 = vmatpush.bf16.msra.mxu0 %v5749
    %6110 = vmatpush.bf16.msra.mxu0 %v5745
    %6111 = vmatmul.bf16.gmra.mxu0 %v5217
    %v6112 = vpop.f32.mrf.mxu0
    %v6113 = vadd.f32 %v5353, %v6112
    %v6114 = vpop.f32.mrf.mxu0
    %6115 = vdwg.mxu0
    %6116 = vmatpush.bf16.msra.mxu0 %v5805
    %6117 = vmatpush.bf16.msra.mxu0 %v5801
    %6118 = vmatpush.bf16.msra.mxu0 %v5797
    %6119 = vmatpush.bf16.msra.mxu0 %v5793
    %6120 = vmatpush.bf16.msra.mxu0 %v5789
    %6121 = vmatpush.bf16.msra.mxu0 %v5785
    %6122 = vmatpush.bf16.msra.mxu0 %v5781
    %6123 = vmatpush.bf16.msra.mxu0 %v5777
    %6124 = vmatmul.bf16.gmra.mxu0 %v5218
    %v6125 = vpop.f32.mrf.mxu0
    %v6126 = vadd.f32 %v6113, %v6125
    %v6127 = vpop.f32.mrf.mxu0
    %6128 = vdwg.mxu0
    %6129 = vmatpush.bf16.msra.mxu0 %v5837
    %6130 = vmatpush.bf16.msra.mxu0 %v5833
    %6131 = vmatpush.bf16.msra.mxu0 %v5829
    %6132 = vmatpush.bf16.msra.mxu0 %v5825
    %6133 = vmatpush.bf16.msra.mxu0 %v5821
    %6134 = vmatpush.bf16.msra.mxu0 %v5817
    %6135 = vmatpush.bf16.msra.mxu0 %v5813
    %6136 = vmatpush.bf16.msra.mxu0 %v5809
    %6137 = vmatmul.bf16.gmra.mxu0 %v5219
    %v6138 = vpop.f32.mrf.mxu0
    %v6139 = vadd.f32 %v6126, %v6138
    %v6140 = vpop.f32.mrf.mxu0
    %6141 = vdwg.mxu0
    %6142 = vmatpush.bf16.msra.mxu0 %v5869
    %6143 = vmatpush.bf16.msra.mxu0 %v5865
    %6144 = vmatpush.bf16.msra.mxu0 %v5861
    %6145 = vmatpush.bf16.msra.mxu0 %v5857
    %6146 = vmatpush.bf16.msra.mxu0 %v5853
    %6147 = vmatpush.bf16.msra.mxu0 %v5849
    %6148 = vmatpush.bf16.msra.mxu0 %v5845
    %6149 = vmatpush.bf16.msra.mxu0 %v5841
    %6150 = vmatmul.bf16.gmra.mxu0 %v5220
    %v6151 = vpop.f32.mrf.mxu0
    %v6152 = vadd.f32 %v6139, %v6151
    %v6153 = vpop.f32.mrf.mxu0
    %6154 = vdwg.mxu0
    %6155 = vmatpush.bf16.msra.mxu0 %v5774
    %6156 = vmatpush.bf16.msra.mxu0 %v5770
    %6157 = vmatpush.bf16.msra.mxu0 %v5766
    %6158 = vmatpush.bf16.msra.mxu0 %v5762
    %6159 = vmatpush.bf16.msra.mxu0 %v5758
    %6160 = vmatpush.bf16.msra.mxu0 %v5754
    %6161 = vmatpush.bf16.msra.mxu0 %v5750
    %6162 = vmatpush.bf16.msra.mxu0 %v5746
    %6163 = vmatmul.bf16.gmra.mxu0 %v5217
    %v6164 = vpop.f32.mrf.mxu0
    %v6165 = vadd.f32 %v5354, %v6164
    %v6166 = vpop.f32.mrf.mxu0
    %6167 = vdwg.mxu0
    %6168 = vmatpush.bf16.msra.mxu0 %v5806
    %6169 = vmatpush.bf16.msra.mxu0 %v5802
    %6170 = vmatpush.bf16.msra.mxu0 %v5798
    %6171 = vmatpush.bf16.msra.mxu0 %v5794
    %6172 = vmatpush.bf16.msra.mxu0 %v5790
    %6173 = vmatpush.bf16.msra.mxu0 %v5786
    %6174 = vmatpush.bf16.msra.mxu0 %v5782
    %6175 = vmatpush.bf16.msra.mxu0 %v5778
    %6176 = vmatmul.bf16.gmra.mxu0 %v5218
    %v6177 = vpop.f32.mrf.mxu0
    %v6178 = vadd.f32 %v6165, %v6177
    %v6179 = vpop.f32.mrf.mxu0
    %6180 = vdwg.mxu0
    %6181 = vmatpush.bf16.msra.mxu0 %v5838
    %6182 = vmatpush.bf16.msra.mxu0 %v5834
    %6183 = vmatpush.bf16.msra.mxu0 %v5830
    %6184 = vmatpush.bf16.msra.mxu0 %v5826
    %6185 = vmatpush.bf16.msra.mxu0 %v5822
    %6186 = vmatpush.bf16.msra.mxu0 %v5818
    %6187 = vmatpush.bf16.msra.mxu0 %v5814
    %6188 = vmatpush.bf16.msra.mxu0 %v5810
    %6189 = vmatmul.bf16.gmra.mxu0 %v5219
    %v6190 = vpop.f32.mrf.mxu0
    %v6191 = vadd.f32 %v6178, %v6190
    %v6192 = vpop.f32.mrf.mxu0
    %6193 = vdwg.mxu0
    %6194 = vmatpush.bf16.msra.mxu0 %v5870
    %6195 = vmatpush.bf16.msra.mxu0 %v5866
    %6196 = vmatpush.bf16.msra.mxu0 %v5862
    %6197 = vmatpush.bf16.msra.mxu0 %v5858
    %6198 = vmatpush.bf16.msra.mxu0 %v5854
    %6199 = vmatpush.bf16.msra.mxu0 %v5850
    %6200 = vmatpush.bf16.msra.mxu0 %v5846
    %6201 = vmatpush.bf16.msra.mxu0 %v5842
    %6202 = vmatmul.bf16.gmra.mxu0 %v5220
    %v6203 = vpop.f32.mrf.mxu0
    %v6204 = vadd.f32 %v6191, %v6203
    %v6205 = vpop.f32.mrf.mxu0
    %6206 = vdwg.mxu0
    %v6207 = vmax.f32 %v6048, 0.0
    %v6208 = vmax.f32 %v6100, 0.0
    %v6209 = vmax.f32 %v6152, 0.0
    %v6210 = vmax.f32 %v6204, 0.0
    %v6211 = vpack.c.bf16 %v6207, %v6207
    %v6212 = vpack.c.bf16 %v6208, %v6208
    %v6213 = vpack.c.bf16 %v6209, %v6209
    %v6214 = vpack.c.bf16 %v6210, %v6210
    %v6215 = vld [vmem:[#allocation7] sm:$0xff]
    %v6216 = vld [vmem:[#allocation7 + $0x8] sm:$0xff]
    %v6217 = vld [vmem:[#allocation7 + $0x10] sm:$0xff]
    %v6218 = vld [vmem:[#allocation7 + $0x18] sm:$0xff]
    %v6219 = vld [vmem:[#allocation7 + $0x20] sm:$0xff]
    %v6220 = vld [vmem:[#allocation7 + $0x28] sm:$0xff]
    %v6221 = vld [vmem:[#allocation7 + $0x30] sm:$0xff]
    %v6222 = vld [vmem:[#allocation7 + $0x38] sm:$0xff]
    %v6223 = vld [vmem:[#allocation7 + $0x40] sm:$0xff]
    %v6224 = vld [vmem:[#allocation7 + $0x48] sm:$0xff]
    %v6225 = vld [vmem:[#allocation7 + $0x50] sm:$0xff]
    %v6226 = vld [vmem:[#allocation7 + $0x58] sm:$0xff]
    %v6227 = vld [vmem:[#allocation7 + $0x60] sm:$0xff]
    %v6228 = vld [vmem:[#allocation7 + $0x68] sm:$0xff]
    %v6229 = vld [vmem:[#allocation7 + $0x70] sm:$0xff]
    %v6230 = vld [vmem:[#allocation7 + $0x78] sm:$0xff]
    %v6231 = vld [vmem:[#allocation7 + $0x80] sm:$0xff]
    %v6232 = vld [vmem:[#allocation7 + $0x88] sm:$0xff]
    %v6233 = vld [vmem:[#allocation7 + $0x90] sm:$0xff]
    %v6234 = vld [vmem:[#allocation7 + $0x98] sm:$0xff]
    %v6235 = vld [vmem:[#allocation7 + $0xa0] sm:$0xff]
    %v6236 = vld [vmem:[#allocation7 + $0xa8] sm:$0xff]
    %v6237 = vld [vmem:[#allocation7 + $0xb0] sm:$0xff]
    %v6238 = vld [vmem:[#allocation7 + $0xb8] sm:$0xff]
    %v6239 = vld [vmem:[#allocation7 + $0xc0] sm:$0xff]
    %v6240 = vld [vmem:[#allocation7 + $0xc8] sm:$0xff]
    %v6241 = vld [vmem:[#allocation7 + $0xd0] sm:$0xff]
    %v6242 = vld [vmem:[#allocation7 + $0xd8] sm:$0xff]
    %v6243 = vld [vmem:[#allocation7 + $0xe0] sm:$0xff]
    %v6244 = vld [vmem:[#allocation7 + $0xe8] sm:$0xff]
    %v6245 = vld [vmem:[#allocation7 + $0xf0] sm:$0xff]
    %v6246 = vld [vmem:[#allocation7 + $0xf8] sm:$0xff]
    %v6247 = vld [vmem:[#allocation7 + $0x100] sm:$0xff]
    %v6248 = vld [vmem:[#allocation7 + $0x108] sm:$0xff]
    %v6249 = vld [vmem:[#allocation7 + $0x110] sm:$0xff]
    %v6250 = vld [vmem:[#allocation7 + $0x118] sm:$0xff]
    %v6251 = vld [vmem:[#allocation7 + $0x120] sm:$0xff]
    %v6252 = vld [vmem:[#allocation7 + $0x128] sm:$0xff]
    %v6253 = vld [vmem:[#allocation7 + $0x130] sm:$0xff]
    %v6254 = vld [vmem:[#allocation7 + $0x138] sm:$0xff]
    %v6255 = vld [vmem:[#allocation7 + $0x140] sm:$0xff]
    %v6256 = vld [vmem:[#allocation7 + $0x148] sm:$0xff]
    %v6257 = vld [vmem:[#allocation7 + $0x150] sm:$0xff]
    %v6258 = vld [vmem:[#allocation7 + $0x158] sm:$0xff]
    %v6259 = vld [vmem:[#allocation7 + $0x160] sm:$0xff]
    %v6260 = vld [vmem:[#allocation7 + $0x168] sm:$0xff]
    %v6261 = vld [vmem:[#allocation7 + $0x170] sm:$0xff]
    %v6262 = vld [vmem:[#allocation7 + $0x178] sm:$0xff]
    %v6263 = vld [vmem:[#allocation7 + $0x180] sm:$0xff]
    %v6264 = vld [vmem:[#allocation7 + $0x188] sm:$0xff]
    %v6265 = vld [vmem:[#allocation7 + $0x190] sm:$0xff]
    %v6266 = vld [vmem:[#allocation7 + $0x198] sm:$0xff]
    %v6267 = vld [vmem:[#allocation7 + $0x1a0] sm:$0xff]
    %v6268 = vld [vmem:[#allocation7 + $0x1a8] sm:$0xff]
    %v6269 = vld [vmem:[#allocation7 + $0x1b0] sm:$0xff]
    %v6270 = vld [vmem:[#allocation7 + $0x1b8] sm:$0xff]
    %v6271 = vld [vmem:[#allocation7 + $0x1c0] sm:$0xff]
    %v6272 = vld [vmem:[#allocation7 + $0x1c8] sm:$0xff]
    %v6273 = vld [vmem:[#allocation7 + $0x1d0] sm:$0xff]
    %v6274 = vld [vmem:[#allocation7 + $0x1d8] sm:$0xff]
    %v6275 = vld [vmem:[#allocation7 + $0x1e0] sm:$0xff]
    %v6276 = vld [vmem:[#allocation7 + $0x1e8] sm:$0xff]
    %v6277 = vld [vmem:[#allocation7 + $0x1f0] sm:$0xff]
    %v6278 = vld [vmem:[#allocation7 + $0x1f8] sm:$0xff]
    %v6279 = vld [vmem:[#allocation8] sm:$0x3]
    %v6281 = vperm.slane %v6279, 0
    %v6282 = vperm.slane %v6279, 1
    %v6349 = vunpack.c.l.b16 %v6215
    %v6350 = vunpack.c.h.b16 %v6215
    %v6351 = vunpack.c.l.b16 %v6216
    %v6352 = vunpack.c.h.b16 %v6216
    %v6353 = vunpack.c.l.b16 %v6217
    %v6354 = vunpack.c.h.b16 %v6217
    %v6355 = vunpack.c.l.b16 %v6218
    %v6356 = vunpack.c.h.b16 %v6218
    %v6357 = vunpack.c.l.b16 %v6219
    %v6358 = vunpack.c.h.b16 %v6219
    %v6359 = vunpack.c.l.b16 %v6220
    %v6360 = vunpack.c.h.b16 %v6220
    %v6361 = vunpack.c.l.b16 %v6221
    %v6362 = vunpack.c.h.b16 %v6221
    %v6363 = vunpack.c.l.b16 %v6222
    %v6364 = vunpack.c.h.b16 %v6222
    %v6365 = vunpack.c.l.b16 %v6223
    %v6366 = vunpack.c.h.b16 %v6223
    %v6367 = vunpack.c.l.b16 %v6224
    %v6368 = vunpack.c.h.b16 %v6224
    %v6369 = vunpack.c.l.b16 %v6225
    %v6370 = vunpack.c.h.b16 %v6225
    %v6371 = vunpack.c.l.b16 %v6226
    %v6372 = vunpack.c.h.b16 %v6226
    %v6373 = vunpack.c.l.b16 %v6227
    %v6374 = vunpack.c.h.b16 %v6227
    %v6375 = vunpack.c.l.b16 %v6228
    %v6376 = vunpack.c.h.b16 %v6228
    %v6377 = vunpack.c.l.b16 %v6229
    %v6378 = vunpack.c.h.b16 %v6229
    %v6379 = vunpack.c.l.b16 %v6230
    %v6380 = vunpack.c.h.b16 %v6230
    %v6381 = vunpack.c.l.b16 %v6231
    %v6382 = vunpack.c.h.b16 %v6231
    %v6383 = vunpack.c.l.b16 %v6232
    %v6384 = vunpack.c.h.b16 %v6232
    %v6385 = vunpack.c.l.b16 %v6233
    %v6386 = vunpack.c.h.b16 %v6233
    %v6387 = vunpack.c.l.b16 %v6234
    %v6388 = vunpack.c.h.b16 %v6234
    %v6389 = vunpack.c.l.b16 %v6235
    %v6390 = vunpack.c.h.b16 %v6235
    %v6391 = vunpack.c.l.b16 %v6236
    %v6392 = vunpack.c.h.b16 %v6236
    %v6393 = vunpack.c.l.b16 %v6237
    %v6394 = vunpack.c.h.b16 %v6237
    %v6395 = vunpack.c.l.b16 %v6238
    %v6396 = vunpack.c.h.b16 %v6238
    %v6397 = vunpack.c.l.b16 %v6239
    %v6398 = vunpack.c.h.b16 %v6239
    %v6399 = vunpack.c.l.b16 %v6240
    %v6400 = vunpack.c.h.b16 %v6240
    %v6401 = vunpack.c.l.b16 %v6241
    %v6402 = vunpack.c.h.b16 %v6241
    %v6403 = vunpack.c.l.b16 %v6242
    %v6404 = vunpack.c.h.b16 %v6242
    %v6405 = vunpack.c.l.b16 %v6243
    %v6406 = vunpack.c.h.b16 %v6243
    %v6407 = vunpack.c.l.b16 %v6244
    %v6408 = vunpack.c.h.b16 %v6244
    %v6409 = vunpack.c.l.b16 %v6245
    %v6410 = vunpack.c.h.b16 %v6245
    %v6411 = vunpack.c.l.b16 %v6246
    %v6412 = vunpack.c.h.b16 %v6246
    %v6413 = vunpack.c.l.b16 %v6247
    %v6414 = vunpack.c.h.b16 %v6247
    %v6415 = vunpack.c.l.b16 %v6248
    %v6416 = vunpack.c.h.b16 %v6248
    %v6417 = vunpack.c.l.b16 %v6249
    %v6418 = vunpack.c.h.b16 %v6249
    %v6419 = vunpack.c.l.b16 %v6250
    %v6420 = vunpack.c.h.b16 %v6250
    %v6421 = vunpack.c.l.b16 %v6251
    %v6422 = vunpack.c.h.b16 %v6251
    %v6423 = vunpack.c.l.b16 %v6252
    %v6424 = vunpack.c.h.b16 %v6252
    %v6425 = vunpack.c.l.b16 %v6253
    %v6426 = vunpack.c.h.b16 %v6253
    %v6427 = vunpack.c.l.b16 %v6254
    %v6428 = vunpack.c.h.b16 %v6254
    %v6429 = vunpack.c.l.b16 %v6255
    %v6430 = vunpack.c.h.b16 %v6255
    %v6431 = vunpack.c.l.b16 %v6256
    %v6432 = vunpack.c.h.b16 %v6256
    %v6433 = vunpack.c.l.b16 %v6257
    %v6434 = vunpack.c.h.b16 %v6257
    %v6435 = vunpack.c.l.b16 %v6258
    %v6436 = vunpack.c.h.b16 %v6258
    %v6437 = vunpack.c.l.b16 %v6259
    %v6438 = vunpack.c.h.b16 %v6259
    %v6439 = vunpack.c.l.b16 %v6260
    %v6440 = vunpack.c.h.b16 %v6260
    %v6441 = vunpack.c.l.b16 %v6261
    %v6442 = vunpack.c.h.b16 %v6261
    %v6443 = vunpack.c.l.b16 %v6262
    %v6444 = vunpack.c.h.b16 %v6262
    %v6445 = vunpack.c.l.b16 %v6263
    %v6446 = vunpack.c.h.b16 %v6263
    %v6447 = vunpack.c.l.b16 %v6264
    %v6448 = vunpack.c.h.b16 %v6264
    %v6449 = vunpack.c.l.b16 %v6265
    %v6450 = vunpack.c.h.b16 %v6265
    %v6451 = vunpack.c.l.b16 %v6266
    %v6452 = vunpack.c.h.b16 %v6266
    %v6453 = vunpack.c.l.b16 %v6267
    %v6454 = vunpack.c.h.b16 %v6267
    %v6455 = vunpack.c.l.b16 %v6268
    %v6456 = vunpack.c.h.b16 %v6268
    %v6457 = vunpack.c.l.b16 %v6269
    %v6458 = vunpack.c.h.b16 %v6269
    %v6459 = vunpack.c.l.b16 %v6270
    %v6460 = vunpack.c.h.b16 %v6270
    %v6461 = vunpack.c.l.b16 %v6271
    %v6462 = vunpack.c.h.b16 %v6271
    %v6463 = vunpack.c.l.b16 %v6272
    %v6464 = vunpack.c.h.b16 %v6272
    %v6465 = vunpack.c.l.b16 %v6273
    %v6466 = vunpack.c.h.b16 %v6273
    %v6467 = vunpack.c.l.b16 %v6274
    %v6468 = vunpack.c.h.b16 %v6274
    %v6469 = vunpack.c.l.b16 %v6275
    %v6470 = vunpack.c.h.b16 %v6275
    %v6471 = vunpack.c.l.b16 %v6276
    %v6472 = vunpack.c.h.b16 %v6276
    %v6473 = vunpack.c.l.b16 %v6277
    %v6474 = vunpack.c.h.b16 %v6277
    %v6475 = vunpack.c.l.b16 %v6278
    %v6476 = vunpack.c.h.b16 %v6278
    %v6477 = vpack.c.b16 %v6351, %v6349
    %v6478 = vpack.c.b16 %v6352, %v6350
    %v6479 = vpack.c.b16 %v6355, %v6353
    %v6480 = vpack.c.b16 %v6356, %v6354
    %v6481 = vpack.c.b16 %v6359, %v6357
    %v6482 = vpack.c.b16 %v6360, %v6358
    %v6483 = vpack.c.b16 %v6363, %v6361
    %v6484 = vpack.c.b16 %v6364, %v6362
    %v6485 = vpack.c.b16 %v6367, %v6365
    %v6486 = vpack.c.b16 %v6368, %v6366
    %v6487 = vpack.c.b16 %v6371, %v6369
    %v6488 = vpack.c.b16 %v6372, %v6370
    %v6489 = vpack.c.b16 %v6375, %v6373
    %v6490 = vpack.c.b16 %v6376, %v6374
    %v6491 = vpack.c.b16 %v6379, %v6377
    %v6492 = vpack.c.b16 %v6380, %v6378
    %v6493 = vpack.c.b16 %v6383, %v6381
    %v6494 = vpack.c.b16 %v6384, %v6382
    %v6495 = vpack.c.b16 %v6387, %v6385
    %v6496 = vpack.c.b16 %v6388, %v6386
    %v6497 = vpack.c.b16 %v6391, %v6389
    %v6498 = vpack.c.b16 %v6392, %v6390
    %v6499 = vpack.c.b16 %v6395, %v6393
    %v6500 = vpack.c.b16 %v6396, %v6394
    %v6501 = vpack.c.b16 %v6399, %v6397
    %v6502 = vpack.c.b16 %v6400, %v6398
    %v6503 = vpack.c.b16 %v6403, %v6401
    %v6504 = vpack.c.b16 %v6404, %v6402
    %v6505 = vpack.c.b16 %v6407, %v6405
    %v6506 = vpack.c.b16 %v6408, %v6406
    %v6507 = vpack.c.b16 %v6411, %v6409
    %v6508 = vpack.c.b16 %v6412, %v6410
    %v6509 = vpack.c.b16 %v6415, %v6413
    %v6510 = vpack.c.b16 %v6416, %v6414
    %v6511 = vpack.c.b16 %v6419, %v6417
    %v6512 = vpack.c.b16 %v6420, %v6418
    %v6513 = vpack.c.b16 %v6423, %v6421
    %v6514 = vpack.c.b16 %v6424, %v6422
    %v6515 = vpack.c.b16 %v6427, %v6425
    %v6516 = vpack.c.b16 %v6428, %v6426
    %v6517 = vpack.c.b16 %v6431, %v6429
    %v6518 = vpack.c.b16 %v6432, %v6430
    %v6519 = vpack.c.b16 %v6435, %v6433
    %v6520 = vpack.c.b16 %v6436, %v6434
    %v6521 = vpack.c.b16 %v6439, %v6437
    %v6522 = vpack.c.b16 %v6440, %v6438
    %v6523 = vpack.c.b16 %v6443, %v6441
    %v6524 = vpack.c.b16 %v6444, %v6442
    %v6525 = vpack.c.b16 %v6447, %v6445
    %v6526 = vpack.c.b16 %v6448, %v6446
    %v6527 = vpack.c.b16 %v6451, %v6449
    %v6528 = vpack.c.b16 %v6452, %v6450
    %v6529 = vpack.c.b16 %v6455, %v6453
    %v6530 = vpack.c.b16 %v6456, %v6454
    %v6531 = vpack.c.b16 %v6459, %v6457
    %v6532 = vpack.c.b16 %v6460, %v6458
    %v6533 = vpack.c.b16 %v6463, %v6461
    %v6534 = vpack.c.b16 %v6464, %v6462
    %v6535 = vpack.c.b16 %v6467, %v6465
    %v6536 = vpack.c.b16 %v6468, %v6466
    %v6537 = vpack.c.b16 %v6471, %v6469
    %v6538 = vpack.c.b16 %v6472, %v6470
    %v6539 = vpack.c.b16 %v6475, %v6473
    %v6540 = vpack.c.b16 %v6476, %v6474
    %6605 = vmatpush.bf16.msra.mxu0 %v6491
    %6606 = vmatpush.bf16.msra.mxu0 %v6489
    %6607 = vmatpush.bf16.msra.mxu0 %v6487
    %6608 = vmatpush.bf16.msra.mxu0 %v6485
    %6609 = vmatpush.bf16.msra.mxu0 %v6483
    %6610 = vmatpush.bf16.msra.mxu0 %v6481
    %6611 = vmatpush.bf16.msra.mxu0 %v6479
    %6612 = vmatpush.bf16.msra.mxu0 %v6477
    %6613 = vmatmul.bf16.gmra.mxu0 %v6211
    %v6614 = vpop.f32.mrf.mxu0
    %v6615 = vadd.f32 %v6281, %v6614
    %v6616 = vpop.f32.mrf.mxu0
    %6617 = vdwg.mxu0
    %6618 = vmatpush.bf16.msra.mxu0 %v6507
    %6619 = vmatpush.bf16.msra.mxu0 %v6505
    %6620 = vmatpush.bf16.msra.mxu0 %v6503
    %6621 = vmatpush.bf16.msra.mxu0 %v6501
    %6622 = vmatpush.bf16.msra.mxu0 %v6499
    %6623 = vmatpush.bf16.msra.mxu0 %v6497
    %6624 = vmatpush.bf16.msra.mxu0 %v6495
    %6625 = vmatpush.bf16.msra.mxu0 %v6493
    %6626 = vmatmul.bf16.gmra.mxu0 %v6212
    %v6627 = vpop.f32.mrf.mxu0
    %v6628 = vadd.f32 %v6615, %v6627
    %v6629 = vpop.f32.mrf.mxu0
    %6630 = vdwg.mxu0
    %6631 = vmatpush.bf16.msra.mxu0 %v6523
    %6632 = vmatpush.bf16.msra.mxu0 %v6521
    %6633 = vmatpush.bf16.msra.mxu0 %v6519
    %6634 = vmatpush.bf16.msra.mxu0 %v6517
    %6635 = vmatpush.bf16.msra.mxu0 %v6515
    %6636 = vmatpush.bf16.msra.mxu0 %v6513
    %6637 = vmatpush.bf16.msra.mxu0 %v6511
    %6638 = vmatpush.bf16.msra.mxu0 %v6509
    %6639 = vmatmul.bf16.gmra.mxu0 %v6213
    %v6640 = vpop.f32.mrf.mxu0
    %v6641 = vadd.f32 %v6628, %v6640
    %v6642 = vpop.f32.mrf.mxu0
    %6643 = vdwg.mxu0
    %6644 = vmatpush.bf16.msra.mxu0 %v6539
    %6645 = vmatpush.bf16.msra.mxu0 %v6537
    %6646 = vmatpush.bf16.msra.mxu0 %v6535
    %6647 = vmatpush.bf16.msra.mxu0 %v6533
    %6648 = vmatpush.bf16.msra.mxu0 %v6531
    %6649 = vmatpush.bf16.msra.mxu0 %v6529
    %6650 = vmatpush.bf16.msra.mxu0 %v6527
    %6651 = vmatpush.bf16.msra.mxu0 %v6525
    %6652 = vmatmul.bf16.gmra.mxu0 %v6214
    %v6653 = vpop.f32.mrf.mxu0
    %v6654 = vadd.f32 %v6641, %v6653
    %v6655 = vpop.f32.mrf.mxu0
    %6656 = vdwg.mxu0
    %6657 = vmatpush.bf16.msra.mxu0 %v6492
    %6658 = vmatpush.bf16.msra.mxu0 %v6490
    %6659 = vmatpush.bf16.msra.mxu0 %v6488
    %6660 = vmatpush.bf16.msra.mxu0 %v6486
    %6661 = vmatpush.bf16.msra.mxu0 %v6484
    %6662 = vmatpush.bf16.msra.mxu0 %v6482
    %6663 = vmatpush.bf16.msra.mxu0 %v6480
    %6664 = vmatpush.bf16.msra.mxu0 %v6478
    %6665 = vmatmul.bf16.gmra.mxu0 %v6211
    %v6666 = vpop.f32.mrf.mxu0
    %v6667 = vadd.f32 %v6282, %v6666
    %v6668 = vpop.f32.mrf.mxu0
    %6669 = vdwg.mxu0
    %6670 = vmatpush.bf16.msra.mxu0 %v6508
    %6671 = vmatpush.bf16.msra.mxu0 %v6506
    %6672 = vmatpush.bf16.msra.mxu0 %v6504
    %6673 = vmatpush.bf16.msra.mxu0 %v6502
    %6674 = vmatpush.bf16.msra.mxu0 %v6500
    %6675 = vmatpush.bf16.msra.mxu0 %v6498
    %6676 = vmatpush.bf16.msra.mxu0 %v6496
    %6677 = vmatpush.bf16.msra.mxu0 %v6494
    %6678 = vmatmul.bf16.gmra.mxu0 %v6212
    %v6679 = vpop.f32.mrf.mxu0
    %v6680 = vadd.f32 %v6667, %v6679
    %v6681 = vpop.f32.mrf.mxu0
    %6682 = vdwg.mxu0
    %6683 = vmatpush.bf16.msra.mxu0 %v6524
    %6684 = vmatpush.bf16.msra.mxu0 %v6522
    %6685 = vmatpush.bf16.msra.mxu0 %v6520
    %6686 = vmatpush.bf16.msra.mxu0 %v6518
    %6687 = vmatpush.bf16.msra.mxu0 %v6516
    %6688 = vmatpush.bf16.msra.mxu0 %v6514
    %6689 = vmatpush.bf16.msra.mxu0 %v6512
    %6690 = vmatpush.bf16.msra.mxu0 %v6510
    %6691 = vmatmul.bf16.gmra.mxu0 %v6213
    %v6692 = vpop.f32.mrf.mxu0
    %v6693 = vadd.f32 %v6680, %v6692
    %v6694 = vpop.f32.mrf.mxu0
    %6695 = vdwg.mxu0
    %6696 = vmatpush.bf16.msra.mxu0 %v6540
    %6697 = vmatpush.bf16.msra.mxu0 %v6538
    %6698 = vmatpush.bf16.msra.mxu0 %v6536
    %6699 = vmatpush.bf16.msra.mxu0 %v6534
    %6700 = vmatpush.bf16.msra.mxu0 %v6532
    %6701 = vmatpush.bf16.msra.mxu0 %v6530
    %6702 = vmatpush.bf16.msra.mxu0 %v6528
    %6703 = vmatpush.bf16.msra.mxu0 %v6526
    %6704 = vmatmul.bf16.gmra.mxu0 %v6214
    %v6705 = vpop.f32.mrf.mxu0
    %v6706 = vadd.f32 %v6693, %v6705
    %v6707 = vpop.f32.mrf.mxu0
    %6708 = vdwg.mxu0
    %v6709 = vmax.f32 %v6654, 0.0
    %v6710 = vmax.f32 %v6706, 0.0
    %v6711 = vpack.c.bf16 %v6709, %v6709
    %v6712 = vpack.c.bf16 %v6710, %v6710
    %v6713 = vld [vmem:[%s11] sm:$0xf]
    %v6714 = vld [vmem:[%s11 + $0x4] sm:$0xf]
    %v6715 = vld [vmem:[%s11 + $0x8] sm:$0xf]
    %v6716 = vld [vmem:[%s11 + $0xc] sm:$0xf]
    %v6717 = vld [vmem:[%s11 + $0x10] sm:$0xf]
    %v6718 = vld [vmem:[%s11 + $0x14] sm:$0xf]
    %v6719 = vld [vmem:[%s11 + $0x18] sm:$0xf]
    %v6720 = vld [vmem:[%s11 + $0x1c] sm:$0xf]
    %v6721 = vld [vmem:[%s11 + $0x20] sm:$0xf]
    %v6722 = vld [vmem:[%s11 + $0x24] sm:$0xf]
    %v6723 = vld [vmem:[%s11 + $0x28] sm:$0xf]
    %v6724 = vld [vmem:[%s11 + $0x2c] sm:$0xf]
    %v6725 = vld [vmem:[%s11 + $0x30] sm:$0xf]
    %v6726 = vld [vmem:[%s11 + $0x34] sm:$0xf]
    %v6727 = vld [vmem:[%s11 + $0x38] sm:$0xf]
    %v6728 = vld [vmem:[%s11 + $0x3c] sm:$0xf]
    %v6729 = vld [vmem:[%s11 + $0x40] sm:$0xf]
    %v6730 = vld [vmem:[%s11 + $0x44] sm:$0xf]
    %v6731 = vld [vmem:[%s11 + $0x48] sm:$0xf]
    %v6732 = vld [vmem:[%s11 + $0x4c] sm:$0xf]
    %v6733 = vld [vmem:[%s11 + $0x50] sm:$0xf]
    %v6734 = vld [vmem:[%s11 + $0x54] sm:$0xf]
    %v6735 = vld [vmem:[%s11 + $0x58] sm:$0xf]
    %v6736 = vld [vmem:[%s11 + $0x5c] sm:$0xf]
    %v6737 = vld [vmem:[%s11 + $0x60] sm:$0xf]
    %v6738 = vld [vmem:[%s11 + $0x64] sm:$0xf]
    %v6739 = vld [vmem:[%s11 + $0x68] sm:$0xf]
    %v6740 = vld [vmem:[%s11 + $0x6c] sm:$0xf]
    %v6741 = vld [vmem:[%s11 + $0x70] sm:$0xf]
    %v6742 = vld [vmem:[%s11 + $0x74] sm:$0xf]
    %v6743 = vld [vmem:[%s11 + $0x78] sm:$0xf]
    %v6744 = vld [vmem:[%s11 + $0x7c] sm:$0xf]
    %v6745 = vld [vmem:[%s12] sm:$0x1]
    %v6747 = vperm.slane %v6745, 0
    %v6781 = vunpack.c.l.b16 %v6713
    %v6782 = vunpack.c.l.b16 %v6714
    %v6783 = vunpack.c.l.b16 %v6715
    %v6784 = vunpack.c.l.b16 %v6716
    %v6785 = vunpack.c.l.b16 %v6717
    %v6786 = vunpack.c.l.b16 %v6718
    %v6787 = vunpack.c.l.b16 %v6719
    %v6788 = vunpack.c.l.b16 %v6720
    %v6789 = vunpack.c.l.b16 %v6721
    %v6790 = vunpack.c.l.b16 %v6722
    %v6791 = vunpack.c.l.b16 %v6723
    %v6792 = vunpack.c.l.b16 %v6724
    %v6793 = vunpack.c.l.b16 %v6725
    %v6794 = vunpack.c.l.b16 %v6726
    %v6795 = vunpack.c.l.b16 %v6727
    %v6796 = vunpack.c.l.b16 %v6728
    %v6797 = vunpack.c.l.b16 %v6729
    %v6798 = vunpack.c.l.b16 %v6730
    %v6799 = vunpack.c.l.b16 %v6731
    %v6800 = vunpack.c.l.b16 %v6732
    %v6801 = vunpack.c.l.b16 %v6733
    %v6802 = vunpack.c.l.b16 %v6734
    %v6803 = vunpack.c.l.b16 %v6735
    %v6804 = vunpack.c.l.b16 %v6736
    %v6805 = vunpack.c.l.b16 %v6737
    %v6806 = vunpack.c.l.b16 %v6738
    %v6807 = vunpack.c.l.b16 %v6739
    %v6808 = vunpack.c.l.b16 %v6740
    %v6809 = vunpack.c.l.b16 %v6741
    %v6810 = vunpack.c.l.b16 %v6742
    %v6811 = vunpack.c.l.b16 %v6743
    %v6812 = vunpack.c.l.b16 %v6744
    %v6813 = vpack.c.b16 %v6782, %v6781
    %v6814 = vpack.c.b16 %v6784, %v6783
    %v6815 = vpack.c.b16 %v6786, %v6785
    %v6816 = vpack.c.b16 %v6788, %v6787
    %v6817 = vpack.c.b16 %v6790, %v6789
    %v6818 = vpack.c.b16 %v6792, %v6791
    %v6819 = vpack.c.b16 %v6794, %v6793
    %v6820 = vpack.c.b16 %v6796, %v6795
    %v6821 = vpack.c.b16 %v6798, %v6797
    %v6822 = vpack.c.b16 %v6800, %v6799
    %v6823 = vpack.c.b16 %v6802, %v6801
    %v6824 = vpack.c.b16 %v6804, %v6803
    %v6825 = vpack.c.b16 %v6806, %v6805
    %v6826 = vpack.c.b16 %v6808, %v6807
    %v6827 = vpack.c.b16 %v6810, %v6809
    %v6828 = vpack.c.b16 %v6812, %v6811
    %6845 = vmatpush.bf16.msra.mxu0 %v6820
    %6846 = vmatpush.bf16.msra.mxu0 %v6819
    %6847 = vmatpush.bf16.msra.mxu0 %v6818
    %6848 = vmatpush.bf16.msra.mxu0 %v6817
    %6849 = vmatpush.bf16.msra.mxu0 %v6816
    %6850 = vmatpush.bf16.msra.mxu0 %v6815
    %6851 = vmatpush.bf16.msra.mxu0 %v6814
    %6852 = vmatpush.bf16.msra.mxu0 %v6813
    %6853 = vmatmul.bf16.gmra.mxu0 %v6711
    %v6854 = vpop.f32.mrf.mxu0
    %v6855 = vadd.f32 %v6747, %v6854
    %v6856 = vpop.f32.mrf.mxu0
    %6857 = vdwg.mxu0
    %6858 = vmatpush.bf16.msra.mxu0 %v6828
    %6859 = vmatpush.bf16.msra.mxu0 %v6827
    %6860 = vmatpush.bf16.msra.mxu0 %v6826
    %6861 = vmatpush.bf16.msra.mxu0 %v6825
    %6862 = vmatpush.bf16.msra.mxu0 %v6824
    %6863 = vmatpush.bf16.msra.mxu0 %v6823
    %6864 = vmatpush.bf16.msra.mxu0 %v6822
    %6865 = vmatpush.bf16.msra.mxu0 %v6821
    %6866 = vmatmul.bf16.gmra.mxu0 %v6712
    %v6867 = vpop.f32.mrf.mxu0
    %v6868 = vadd.f32 %v6855, %v6867
    %v6869 = vpop.f32.mrf.mxu0
    %6870 = vdwg.mxu0
    %v6871 = vmax.f32 %v6868, 0.0
    %v6872 = vpack.c.bf16 %v6871, %v6871
    %v6873 = vld [vmem:[%s13] sm:$0xf]
    %v6874 = vld [vmem:[%s13 + $0x4] sm:$0xf]
    %v6875 = vld [vmem:[%s13 + $0x8] sm:$0xf]
    %v6876 = vld [vmem:[%s13 + $0xc] sm:$0xf]
    %v6877 = vld [vmem:[%s13 + $0x10] sm:$0xf]
    %v6878 = vld [vmem:[%s13 + $0x14] sm:$0xf]
    %v6879 = vld [vmem:[%s13 + $0x18] sm:$0xf]
    %v6880 = vld [vmem:[%s13 + $0x1c] sm:$0xf]
    %v6881 = vld [vmem:[%s13 + $0x20] sm:$0xf]
    %v6882 = vld [vmem:[%s13 + $0x24] sm:$0xf]
    %v6883 = vld [vmem:[%s13 + $0x28] sm:$0xf]
    %v6884 = vld [vmem:[%s13 + $0x2c] sm:$0xf]
    %v6885 = vld [vmem:[%s13 + $0x30] sm:$0xf]
    %v6886 = vld [vmem:[%s13 + $0x34] sm:$0xf]
    %v6887 = vld [vmem:[%s13 + $0x38] sm:$0xf]
    %v6888 = vld [vmem:[%s13 + $0x3c] sm:$0xf]
    %v6889 = vld [vmem:[#allocation2] sm:$0x1]
    %v6891 = vperm.slane %v6889, 0
    %v6909 = vunpack.c.l.b16 %v6873
    %v6910 = vunpack.c.l.b16 %v6874
    %v6911 = vunpack.c.l.b16 %v6875
    %v6912 = vunpack.c.l.b16 %v6876
    %v6913 = vunpack.c.l.b16 %v6877
    %v6914 = vunpack.c.l.b16 %v6878
    %v6915 = vunpack.c.l.b16 %v6879
    %v6916 = vunpack.c.l.b16 %v6880
    %v6917 = vunpack.c.l.b16 %v6881
    %v6918 = vunpack.c.l.b16 %v6882
    %v6919 = vunpack.c.l.b16 %v6883
    %v6920 = vunpack.c.l.b16 %v6884
    %v6921 = vunpack.c.l.b16 %v6885
    %v6922 = vunpack.c.l.b16 %v6886
    %v6923 = vunpack.c.l.b16 %v6887
    %v6924 = vunpack.c.l.b16 %v6888
    %v6925 = vpack.c.b16 %v6910, %v6909
    %v6926 = vpack.c.b16 %v6912, %v6911
    %v6927 = vpack.c.b16 %v6914, %v6913
    %v6928 = vpack.c.b16 %v6916, %v6915
    %v6929 = vpack.c.b16 %v6918, %v6917
    %v6930 = vpack.c.b16 %v6920, %v6919
    %v6931 = vpack.c.b16 %v6922, %v6921
    %v6932 = vpack.c.b16 %v6924, %v6923
    %6941 = vmatpush.bf16.msra.mxu0 %v6932
    %6942 = vmatpush.bf16.msra.mxu0 %v6931
    %6943 = vmatpush.bf16.msra.mxu0 %v6930
    %6944 = vmatpush.bf16.msra.mxu0 %v6929
    %6945 = vmatpush.bf16.msra.mxu0 %v6928
    %6946 = vmatpush.bf16.msra.mxu0 %v6927
    %6947 = vmatpush.bf16.msra.mxu0 %v6926
    %6948 = vmatpush.bf16.msra.mxu0 %v6925
    %6949 = vmatmul.bf16.gmra.mxu0 %v6872
    %v6950 = vpop.f32.mrf.mxu0
    %v6951 = vadd.f32 %v6891, %v6950
    %v6952 = vpop.f32.mrf.mxu0
    %6953 = vdwg.mxu0
    %v6954 = vxor.u32 %v6951, 2147483648
    %v6955 = vmul.f32 %v6954, 1.442695
    %v6956 = vpow.pop %v6955
    %v6957 = vadd.f32 %v6956, 1.0
    %v6958 = vrcp.pop %v6957
    %v6959 = vmul.f32 %v6957, %v6958
    %v6960 = vsub.f32 1.0, %v6959
    %v6961 = vmul.f32 %v6958, %v6960
    %v6962 = vadd.f32 %v6958, %v6961
    %vm6963 = vweird.f32 %v6957
    %vm6964 = vweird.f32 %v6958
    %vm6965 = vmor %vm6963, %vm6964
    %v6966 = vsel %vm6965, %v6958, %v6962
    %v6967 = vand.u32 2147483647, %v6957
    %vm6968 = vcmp.eq.f32.partialorder %v6967, 8.507059e+37
    %v6969 = vand.u32 %v6957, 2147483648
    %v6970 = vor.u32 1.1754944e-38, %v6969
    %v6971 = vsel %vm6968, %v6970, %v6966
    %v6972 = vmul.f32 1.0, %v6971
    %vm6973 = vcmask 1024
    %6974 = vst.msk [vmem:[%s15] sm:$0x3] %vm6973, %v6972
    // Predicated region
    $region78: #{lenet8_forward.1} parent=1 // pred_check
      _
    $region79: #{lenet8_forward.1} parent=1 // pred_check_branch
      %6976 = sbr.rel (0) target = $region81
    $region80: #{lenet8_forward.1} parent=1 // pred_region
      _
    $region81: #{lenet8_forward.1} parent=1 // pred_fallthru
      _
    // Predicated region
    $region82: #{lenet8_forward.1} parent=1 // pred_check
      _
    $region83: #{lenet8_forward.1} parent=1 // pred_check_branch
      %6978 = sbr.rel (0) target = $region85
    $region84: #{lenet8_forward.1} parent=1 // pred_region
      _
    $region85: #{lenet8_forward.1} parent=1 // pred_fallthru
      _
    %6979 = vsyncpa [#allocation4], 1
    %6980 = vsyncpa [#allocation6], 1
    %6981 = vsyncpa [#allocation9], 1

</llo_original>
